<compile_context>
chip_gen: v5e
topology: v5e:2x2
jax: 0.10.0
libtpu: 0.0.40
codegen_flags: <defaults>
</compile_context>

<pallas_src>
import jax
import jax.numpy as jnp
from jax import lax
from jax.experimental import pallas as pl
from jax.experimental.pallas import tpu as pltpu


def _round_up(x, m):
    return ((x + m - 1) // m) * m


# ---------------------------------------------------------------------------
# Fused SPPF kernel: maxpool pyramid + 1x1 conv for one batch element.
# ---------------------------------------------------------------------------
def _sppf_kernel(x_ref, w_ref, b_ref, o_ref, pad_ref):
    # x_ref : [1, H, Wp, Cp] bf16      w_ref : [4*Cp, Cp] bf16
    # b_ref : [1, Cp] f32              o_ref : [1, H, Wp, Cp] f32
    # pad_ref: VMEM [(H+4), Wp, Cp] bf16 scratch (rows 0:2 and H+2:H+4 = -inf halo)
    H, Wp, C = x_ref.shape[1], x_ref.shape[2], x_ref.shape[3]
    dt = pad_ref.dtype

    # -inf halo rows only (interior rows are fully rewritten for every level).
    pad_ref[0:2, :, :] = jnp.full((2, Wp, C), -jnp.inf, dt)
    pad_ref[H + 2:H + 4, :, :] = jnp.full((2, Wp, C), -jnp.inf, dt)

    neg1 = jnp.full((H, 1, C), -jnp.inf, dt)
    neg2 = jnp.full((H, 2, C), -jnp.inf, dt)

    def maxpool5(a):
        # 5x5, stride 1, pad 2 max-pool; separable (H direction via the halo
        # scratch, W direction in registers via shifted value slices).
        pad_ref[2:H + 2, :, :] = a                     # aligned full-width store
        t = pad_ref[0:H, :, :]
        for s in range(1, 5):                          # aligned H-slab loads
            t = jnp.maximum(t, pad_ref[s:s + H, :, :])
        out = t
        out = jnp.maximum(out, jnp.concatenate([neg1, t[:, :-1, :]], axis=1))  # w-1
        out = jnp.maximum(out, jnp.concatenate([neg2, t[:, :-2, :]], axis=1))  # w-2
        out = jnp.maximum(out, jnp.concatenate([t[:, 1:, :], neg1], axis=1))   # w+1
        out = jnp.maximum(out, jnp.concatenate([t[:, 2:, :], neg2], axis=1))   # w+2
        return out

    x = x_ref[0]                     # [H, Wp, Cp] bf16
    p1 = maxpool5(x)                 # maxpool5
    p2 = maxpool5(p1)                # maxpool9  (cascaded)
    p3 = maxpool5(p2)                # maxpool13 (cascaded)

    # Lane-concat the pyramid -> one K=4*Cp bf16 MXU matmul with f32 accumulation.
    hw = H * Wp
    cat = jnp.concatenate([x, p1, p2, p3], axis=-1).reshape(hw, 4 * C)
    acc = jnp.dot(cat, w_ref[...], preferred_element_type=jnp.float32)
    acc = acc + b_ref[...]                              # [1, Cp] broadcast over rows
    o_ref[0] = acc.reshape(H, Wp, C).astype(o_ref.dtype)


# ---------------------------------------------------------------------------
# Wrapper: NCHW <-> channels-last, channel padding to 128, W padding to 8.
# ---------------------------------------------------------------------------
def sppf_forward(x_nchw, w_conv, b_conv):
    """x_nchw: [N, C, H, W]; w_conv: [C, 4*C, 1, 1] (PyTorch layout); b_conv: [C]."""
    N, C, H, W = x_nchw.shape
    Cp = _round_up(C, 128)           # lane-dense channels
    Wp = _round_up(W, 8)             # sublane-dense width => layout-free reshape

    # Stacked weights: out = concat(x,p1,p2,p3) @ W2 + b, W2: [4*Cp, Cp] (bf16).
    wk = jnp.transpose(w_conv.reshape(C, 4, C), (1, 2, 0))   # [level, Cin, Cout]
    wk = jnp.pad(wk, ((0, 0), (0, Cp - C), (0, Cp - C)))
    w2 = wk.reshape(4 * Cp, Cp).astype(jnp.bfloat16)
    bp = jnp.pad(b_conv.astype(jnp.float32), (0, Cp - C)).reshape(1, Cp)

    x_nhwc = jnp.transpose(x_nchw, (0, 2, 3, 1)).astype(jnp.bfloat16)
    if Cp != C:
        x_nhwc = jnp.pad(x_nhwc, ((0, 0), (0, 0), (0, 0), (0, Cp - C)))
    if Wp != W:
        # -inf spatial pad keeps the cascaded pools exact for columns < W;
        # the padded output columns are sliced away below.
        x_nhwc = jnp.pad(x_nhwc, ((0, 0), (0, 0), (0, Wp - W), (0, 0)),
                         constant_values=-jnp.inf)

    # Generation-aware VMEM limit (v5e/v6e: 128 MiB physical, v7x: 64 MiB).
    try:
        vmem_cap = pltpu.get_tpu_info().vmem_capacity_bytes
        vmem_limit = max(32 << 20, min(int(vmem_cap * 3 // 4), 100 << 20))
    except Exception:
        vmem_limit = 64 << 20

    out = pl.pallas_call(
        _sppf_kernel,
        out_shape=jax.ShapeDtypeStruct((N, H, Wp, Cp), jnp.float32),
        grid_spec=pltpu.PrefetchScalarGridSpec(
            num_scalar_prefetch=0,
            grid=(N,),
            in_specs=[
                pl.BlockSpec((1, H, Wp, Cp), lambda n: (n, 0, 0, 0)),
                # Grid-invariant weights / bias: single-buffered, no per-step re-DMA.
                pl.BlockSpec((4 * Cp, Cp), lambda n: (0, 0),
                             pipeline_mode=pl.Buffered(1)),
                pl.BlockSpec((1, Cp), lambda n: (0, 0),
                             pipeline_mode=pl.Buffered(1)),
            ],
            out_specs=pl.BlockSpec((1, H, Wp, Cp), lambda n: (n, 0, 0, 0)),
            scratch_shapes=[pltpu.VMEM((H + 4, Wp, Cp), jnp.bfloat16)],
        ),
        compiler_params=pltpu.CompilerParams(
            dimension_semantics=("parallel",),   # batch axis shards across TCs
            vmem_limit_bytes=vmem_limit,
        ),
    )(x_nhwc, w2, bp)

    out = out[:, :, :W, :C]
    return jnp.transpose(out, (0, 3, 1, 2))


# ---------------------------------------------------------------------------
# Pure-JAX reference (for correctness check).
# ---------------------------------------------------------------------------
def _sppf_reference(x, w, b):
    def mp5(v):
        return lax.reduce_window(
            v, -jnp.inf, lax.max,
            window_dimensions=(1, 1, 5, 5),
            window_strides=(1, 1, 1, 1),
            padding=((0, 0), (0, 0), (2, 2), (2, 2)))

    m1 = mp5(x)
    m2 = mp5(m1)
    m3 = mp5(m2)
    cat = jnp.concatenate([x, m1, m2, m3], axis=1)
    wf = w.reshape(w.shape[0], -1)                       # [C, 4C]
    out = jnp.einsum('oi,nihw->nohw', wf, cat)
    return out + b[None, :, None, None]


if __name__ == "__main__":
    key = jax.random.PRNGKey(0)
    k_x, k_w, k_b = jax.random.split(key, 3)

    N, depth, Hs, Ws = 2, 128, 16, 16                    # small, lane-dense test shapes
    x = jax.random.normal(k_x, (N, depth, Hs, Ws), jnp.float32)
    w = 0.05 * jax.random.normal(k_w, (depth, 4 * depth, 1, 1), jnp.float32)
    b = 0.05 * jax.random.normal(k_b, (depth,), jnp.float32)

    out = jax.jit(sppf_forward)(x, w, b)
    out = jax.block_until_ready(out)
    assert out.shape == (N, depth, Hs, Ws), out.shape

    # Reference with bf16-rounded activations/weights (kernel uses bf16 MXU operands
    # with f32 accumulation; bias stays f32).
    xq = x.astype(jnp.bfloat16).astype(jnp.float32)
    wq = w.astype(jnp.bfloat16).astype(jnp.float32)
    ref = _sppf_reference(xq, wq, b)
    err = float(jnp.max(jnp.abs(out - ref)))
    assert jnp.allclose(out, ref, atol=1e-2, rtol=1e-2), f"max abs err {err}"
    print("KERNEL_OK")
</pallas_src>

<mosaic_0001>
module attributes {stable_mosaic.version = 11 : i64} {
  func.func @_sppf_kernel(%arg0: i32, %arg1: memref<1x16x16x128xbf16, #tpu.memory_space<vmem>>, %arg2: memref<512x128xbf16, #tpu.memory_space<vmem>>, %arg3: memref<1x128xf32, #tpu.memory_space<vmem>>, %arg4: memref<1x16x16x128xf32, #tpu.memory_space<vmem>>, %arg5: memref<20x16x128xbf16, #tpu.memory_space<vmem>>) attributes {dimension_semantics = [#tpu.dimension_semantics<parallel>], iteration_bounds = array<i64: 2>, scalar_prefetch = 0 : i64, scratch_operands = 1 : i64, tpu.core_type = #tpu.core_type<tc>, window_params = [{transform_indices = @transform_0, window_bounds = array<i64: 1, 16, 16, 128>}, {pipeline_mode = #tpu.pipeline_mode<synchronous>, transform_indices = @transform_1, window_bounds = array<i64: 512, 128>}, {pipeline_mode = #tpu.pipeline_mode<synchronous>, transform_indices = @transform_2, window_bounds = array<i64: 1, 128>}, {transform_indices = @transform_3, window_bounds = array<i64: 1, 16, 16, 128>}]} {
    %cst = arith.constant 0xFF80 : bf16
    %0 = vector.broadcast %cst : bf16 to vector<2x16x128xbf16>
    %c0 = arith.constant 0 : index
    %c0_0 = arith.constant 0 : index
    %c0_1 = arith.constant 0 : index
    %1 = vector.load %arg5[%c0, %c0_0, %c0_1] : memref<20x16x128xbf16, #tpu.memory_space<vmem>>, vector<2x16x128xbf16>
    tpu.vector_store %arg5[%c0, %c0_0, %c0_1], %0 {strides = array<i32>} : memref<20x16x128xbf16, #tpu.memory_space<vmem>>, vector<2x16x128xbf16>,
    %cst_2 = arith.constant 0xFF80 : bf16
    %2 = vector.broadcast %cst_2 : bf16 to vector<2x16x128xbf16>
    %c18 = arith.constant 18 : index
    %c0_3 = arith.constant 0 : index
    %c0_4 = arith.constant 0 : index
    %3 = vector.load %arg5[%c18, %c0_3, %c0_4] : memref<20x16x128xbf16, #tpu.memory_space<vmem>>, vector<2x16x128xbf16>
    tpu.vector_store %arg5[%c18, %c0_3, %c0_4], %2 {strides = array<i32>} : memref<20x16x128xbf16, #tpu.memory_space<vmem>>, vector<2x16x128xbf16>,
    %cst_5 = arith.constant 0xFF80 : bf16
    %4 = vector.broadcast %cst_5 : bf16 to vector<16x1x128xbf16>
    %cst_6 = arith.constant 0xFF80 : bf16
    %5 = vector.broadcast %cst_6 : bf16 to vector<16x2x128xbf16>
    %c0_7 = arith.constant 0 : index
    %c0_8 = arith.constant 0 : index
    %c0_9 = arith.constant 0 : index
    %c0_10 = arith.constant 0 : index
    %6 = vector.load %arg1[%c0_7, %c0_8, %c0_9, %c0_10] : memref<1x16x16x128xbf16, #tpu.memory_space<vmem>>, vector<1x16x16x128xbf16>
    %7 = vector.shape_cast %6 : vector<1x16x16x128xbf16> to vector<16x16x128xbf16>
    %c2 = arith.constant 2 : index
    %c0_11 = arith.constant 0 : index
    %c0_12 = arith.constant 0 : index
    %8 = vector.load %arg5[%c2, %c0_11, %c0_12] : memref<20x16x128xbf16, #tpu.memory_space<vmem>>, vector<16x16x128xbf16>
    tpu.vector_store %arg5[%c2, %c0_11, %c0_12], %7 {strides = array<i32>} : memref<20x16x128xbf16, #tpu.memory_space<vmem>>, vector<16x16x128xbf16>,
    %c0_13 = arith.constant 0 : index
    %c0_14 = arith.constant 0 : index
    %c0_15 = arith.constant 0 : index
    %9 = vector.load %arg5[%c0_13, %c0_14, %c0_15] : memref<20x16x128xbf16, #tpu.memory_space<vmem>>, vector<16x16x128xbf16>
    %c1 = arith.constant 1 : index
    %c0_16 = arith.constant 0 : index
    %c0_17 = arith.constant 0 : index
    %10 = vector.load %arg5[%c1, %c0_16, %c0_17] : memref<20x16x128xbf16, #tpu.memory_space<vmem>>, vector<16x16x128xbf16>
    %11 = arith.maximumf %9, %10 : vector<16x16x128xbf16>
    %c2_18 = arith.constant 2 : index
    %c0_19 = arith.constant 0 : index
    %c0_20 = arith.constant 0 : index
    %12 = vector.load %arg5[%c2_18, %c0_19, %c0_20] : memref<20x16x128xbf16, #tpu.memory_space<vmem>>, vector<16x16x128xbf16>
    %13 = arith.maximumf %11, %12 : vector<16x16x128xbf16>
    %c3 = arith.constant 3 : index
    %c0_21 = arith.constant 0 : index
    %c0_22 = arith.constant 0 : index
    %14 = vector.load %arg5[%c3, %c0_21, %c0_22] : memref<20x16x128xbf16, #tpu.memory_space<vmem>>, vector<16x16x128xbf16>
    %15 = arith.maximumf %13, %14 : vector<16x16x128xbf16>
    %c4 = arith.constant 4 : index
    %c0_23 = arith.constant 0 : index
    %c0_24 = arith.constant 0 : index
    %16 = vector.load %arg5[%c4, %c0_23, %c0_24] : memref<20x16x128xbf16, #tpu.memory_space<vmem>>, vector<16x16x128xbf16>
    %17 = arith.maximumf %15, %16 : vector<16x16x128xbf16>
    %18 = vector.extract_strided_slice %17 {offsets = [0, 0, 0], sizes = [16, 15, 128], strides = [1, 1, 1]} : vector<16x16x128xbf16> to vector<16x15x128xbf16>
    %19 = tpu.concatenate %4, %18 in 1 : vector<16x1x128xbf16>, vector<16x15x128xbf16> -> vector<16x16x128xbf16>
    %20 = arith.maximumf %17, %19 : vector<16x16x128xbf16>
    %21 = vector.extract_strided_slice %17 {offsets = [0, 0, 0], sizes = [16, 14, 128], strides = [1, 1, 1]} : vector<16x16x128xbf16> to vector<16x14x128xbf16>
    %22 = tpu.concatenate %5, %21 in 1 : vector<16x2x128xbf16>, vector<16x14x128xbf16> -> vector<16x16x128xbf16>
    %23 = arith.maximumf %20, %22 : vector<16x16x128xbf16>
    %24 = vector.extract_strided_slice %17 {offsets = [0, 1, 0], sizes = [16, 15, 128], strides = [1, 1, 1]} : vector<16x16x128xbf16> to vector<16x15x128xbf16>
    %25 = tpu.concatenate %24, %4 in 1 : vector<16x15x128xbf16>, vector<16x1x128xbf16> -> vector<16x16x128xbf16>
    %26 = arith.maximumf %23, %25 : vector<16x16x128xbf16>
    %27 = vector.extract_strided_slice %17 {offsets = [0, 2, 0], sizes = [16, 14, 128], strides = [1, 1, 1]} : vector<16x16x128xbf16> to vector<16x14x128xbf16>
    %28 = tpu.concatenate %27, %5 in 1 : vector<16x14x128xbf16>, vector<16x2x128xbf16> -> vector<16x16x128xbf16>
    %29 = arith.maximumf %26, %28 : vector<16x16x128xbf16>
    %c2_25 = arith.constant 2 : index
    %c0_26 = arith.constant 0 : index
    %c0_27 = arith.constant 0 : index
    %30 = vector.load %arg5[%c2_25, %c0_26, %c0_27] : memref<20x16x128xbf16, #tpu.memory_space<vmem>>, vector<16x16x128xbf16>
    tpu.vector_store %arg5[%c2_25, %c0_26, %c0_27], %29 {strides = array<i32>} : memref<20x16x128xbf16, #tpu.memory_space<vmem>>, vector<16x16x128xbf16>,
    %c0_28 = arith.constant 0 : index
    %c0_29 = arith.constant 0 : index
    %c0_30 = arith.constant 0 : index
    %31 = vector.load %arg5[%c0_28, %c0_29, %c0_30] : memref<20x16x128xbf16, #tpu.memory_space<vmem>>, vector<16x16x128xbf16>
    %c1_31 = arith.constant 1 : index
    %c0_32 = arith.constant 0 : index
    %c0_33 = arith.constant 0 : index
    %32 = vector.load %arg5[%c1_31, %c0_32, %c0_33] : memref<20x16x128xbf16, #tpu.memory_space<vmem>>, vector<16x16x128xbf16>
    %33 = arith.maximumf %31, %32 : vector<16x16x128xbf16>
    %c2_34 = arith.constant 2 : index
    %c0_35 = arith.constant 0 : index
    %c0_36 = arith.constant 0 : index
    %34 = vector.load %arg5[%c2_34, %c0_35, %c0_36] : memref<20x16x128xbf16, #tpu.memory_space<vmem>>, vector<16x16x128xbf16>
    %35 = arith.maximumf %33, %34 : vector<16x16x128xbf16>
    %c3_37 = arith.constant 3 : index
    %c0_38 = arith.constant 0 : index
    %c0_39 = arith.constant 0 : index
    %36 = vector.load %arg5[%c3_37, %c0_38, %c0_39] : memref<20x16x128xbf16, #tpu.memory_space<vmem>>, vector<16x16x128xbf16>
    %37 = arith.maximumf %35, %36 : vector<16x16x128xbf16>
    %c4_40 = arith.constant 4 : index
    %c0_41 = arith.constant 0 : index
    %c0_42 = arith.constant 0 : index
    %38 = vector.load %arg5[%c4_40, %c0_41, %c0_42] : memref<20x16x128xbf16, #tpu.memory_space<vmem>>, vector<16x16x128xbf16>
    %39 = arith.maximumf %37, %38 : vector<16x16x128xbf16>
    %40 = vector.extract_strided_slice %39 {offsets = [0, 0, 0], sizes = [16, 15, 128], strides = [1, 1, 1]} : vector<16x16x128xbf16> to vector<16x15x128xbf16>
    %41 = tpu.concatenate %4, %40 in 1 : vector<16x1x128xbf16>, vector<16x15x128xbf16> -> vector<16x16x128xbf16>
    %42 = arith.maximumf %39, %41 : vector<16x16x128xbf16>
    %43 = vector.extract_strided_slice %39 {offsets = [0, 0, 0], sizes = [16, 14, 128], strides = [1, 1, 1]} : vector<16x16x128xbf16> to vector<16x14x128xbf16>
    %44 = tpu.concatenate %5, %43 in 1 : vector<16x2x128xbf16>, vector<16x14x128xbf16> -> vector<16x16x128xbf16>
    %45 = arith.maximumf %42, %44 : vector<16x16x128xbf16>
    %46 = vector.extract_strided_slice %39 {offsets = [0, 1, 0], sizes = [16, 15, 128], strides = [1, 1, 1]} : vector<16x16x128xbf16> to vector<16x15x128xbf16>
    %47 = tpu.concatenate %46, %4 in 1 : vector<16x15x128xbf16>, vector<16x1x128xbf16> -> vector<16x16x128xbf16>
    %48 = arith.maximumf %45, %47 : vector<16x16x128xbf16>
    %49 = vector.extract_strided_slice %39 {offsets = [0, 2, 0], sizes = [16, 14, 128], strides = [1, 1, 1]} : vector<16x16x128xbf16> to vector<16x14x128xbf16>
    %50 = tpu.concatenate %49, %5 in 1 : vector<16x14x128xbf16>, vector<16x2x128xbf16> -> vector<16x16x128xbf16>
    %51 = arith.maximumf %48, %50 : vector<16x16x128xbf16>
    %c2_43 = arith.constant 2 : index
    %c0_44 = arith.constant 0 : index
    %c0_45 = arith.constant 0 : index
    %52 = vector.load %arg5[%c2_43, %c0_44, %c0_45] : memref<20x16x128xbf16, #tpu.memory_space<vmem>>, vector<16x16x128xbf16>
    tpu.vector_store %arg5[%c2_43, %c0_44, %c0_45], %51 {strides = array<i32>} : memref<20x16x128xbf16, #tpu.memory_space<vmem>>, vector<16x16x128xbf16>,
    %c0_46 = arith.constant 0 : index
    %c0_47 = arith.constant 0 : index
    %c0_48 = arith.constant 0 : index
    %53 = vector.load %arg5[%c0_46, %c0_47, %c0_48] : memref<20x16x128xbf16, #tpu.memory_space<vmem>>, vector<16x16x128xbf16>
    %c1_49 = arith.constant 1 : index
    %c0_50 = arith.constant 0 : index
    %c0_51 = arith.constant 0 : index
    %54 = vector.load %arg5[%c1_49, %c0_50, %c0_51] : memref<20x16x128xbf16, #tpu.memory_space<vmem>>, vector<16x16x128xbf16>
    %55 = arith.maximumf %53, %54 : vector<16x16x128xbf16>
    %c2_52 = arith.constant 2 : index
    %c0_53 = arith.constant 0 : index
    %c0_54 = arith.constant 0 : index
    %56 = vector.load %arg5[%c2_52, %c0_53, %c0_54] : memref<20x16x128xbf16, #tpu.memory_space<vmem>>, vector<16x16x128xbf16>
    %57 = arith.maximumf %55, %56 : vector<16x16x128xbf16>
    %c3_55 = arith.constant 3 : index
    %c0_56 = arith.constant 0 : index
    %c0_57 = arith.constant 0 : index
    %58 = vector.load %arg5[%c3_55, %c0_56, %c0_57] : memref<20x16x128xbf16, #tpu.memory_space<vmem>>, vector<16x16x128xbf16>
    %59 = arith.maximumf %57, %58 : vector<16x16x128xbf16>
    %c4_58 = arith.constant 4 : index
    %c0_59 = arith.constant 0 : index
    %c0_60 = arith.constant 0 : index
    %60 = vector.load %arg5[%c4_58, %c0_59, %c0_60] : memref<20x16x128xbf16, #tpu.memory_space<vmem>>, vector<16x16x128xbf16>
    %61 = arith.maximumf %59, %60 : vector<16x16x128xbf16>
    %62 = vector.extract_strided_slice %61 {offsets = [0, 0, 0], sizes = [16, 15, 128], strides = [1, 1, 1]} : vector<16x16x128xbf16> to vector<16x15x128xbf16>
    %63 = tpu.concatenate %4, %62 in 1 : vector<16x1x128xbf16>, vector<16x15x128xbf16> -> vector<16x16x128xbf16>
    %64 = arith.maximumf %61, %63 : vector<16x16x128xbf16>
    %65 = vector.extract_strided_slice %61 {offsets = [0, 0, 0], sizes = [16, 14, 128], strides = [1, 1, 1]} : vector<16x16x128xbf16> to vector<16x14x128xbf16>
    %66 = tpu.concatenate %5, %65 in 1 : vector<16x2x128xbf16>, vector<16x14x128xbf16> -> vector<16x16x128xbf16>
    %67 = arith.maximumf %64, %66 : vector<16x16x128xbf16>
    %68 = vector.extract_strided_slice %61 {offsets = [0, 1, 0], sizes = [16, 15, 128], strides = [1, 1, 1]} : vector<16x16x128xbf16> to vector<16x15x128xbf16>
    %69 = tpu.concatenate %68, %4 in 1 : vector<16x15x128xbf16>, vector<16x1x128xbf16> -> vector<16x16x128xbf16>
    %70 = arith.maximumf %67, %69 : vector<16x16x128xbf16>
    %71 = vector.extract_strided_slice %61 {offsets = [0, 2, 0], sizes = [16, 14, 128], strides = [1, 1, 1]} : vector<16x16x128xbf16> to vector<16x14x128xbf16>
    %72 = tpu.concatenate %71, %5 in 1 : vector<16x14x128xbf16>, vector<16x2x128xbf16> -> vector<16x16x128xbf16>
    %73 = arith.maximumf %70, %72 : vector<16x16x128xbf16>
    %74 = tpu.concatenate %7, %29, %51, %73 in 2 : vector<16x16x128xbf16>, vector<16x16x128xbf16>, vector<16x16x128xbf16>, vector<16x16x128xbf16> -> vector<16x16x512xbf16>
    %75 = vector.shape_cast %74 : vector<16x16x512xbf16> to vector<256x512xbf16>
    %c0_61 = arith.constant 0 : index
    %c0_62 = arith.constant 0 : index
    %76 = vector.load %arg2[%c0_61, %c0_62] : memref<512x128xbf16, #tpu.memory_space<vmem>>, vector<512x128xbf16>
    %cst_63 = arith.constant dense<0.000000e+00> : vector<256x128xf32>
    %77 = tpu.matmul %75, %76, %cst_63 {dimension_numbers = #tpu.dot_dimension_numbers<[1], [0], [0], [1], [0, 0, 1, 1], [], []>} : vector<256x512xbf16>, vector<512x128xbf16>, vector<256x128xf32> -> vector<256x128xf32>
    %c0_64 = arith.constant 0 : index
    %c0_65 = arith.constant 0 : index
    %78 = vector.load %arg3[%c0_64, %c0_65] : memref<1x128xf32, #tpu.memory_space<vmem>>, vector<1x128xf32>
    %79 = vector.broadcast %78 : vector<1x128xf32> to vector<256x128xf32>
    %80 = arith.addf %77, %79 : vector<256x128xf32>
    %81 = vector.shape_cast %80 : vector<256x128xf32> to vector<16x16x128xf32>
    %c0_66 = arith.constant 0 : index
    %c0_67 = arith.constant 0 : index
    %c0_68 = arith.constant 0 : index
    %c0_69 = arith.constant 0 : index
    %82 = vector.load %arg4[%c0_66, %c0_67, %c0_68, %c0_69] : memref<1x16x16x128xf32, #tpu.memory_space<vmem>>, vector<1x16x16x128xf32>
    %83 = vector.shape_cast %82 : vector<1x16x16x128xf32> to vector<16x16x128xf32>
    %84 = vector.shape_cast %81 : vector<16x16x128xf32> to vector<1x16x16x128xf32>
    tpu.vector_store %arg4[%c0_66, %c0_67, %c0_68, %c0_69], %84 {strides = array<i32>} : memref<1x16x16x128xf32, #tpu.memory_space<vmem>>, vector<1x16x16x128xf32>,
    return
  }
  func.func @transform_0(%arg0: i32) -> (i32, i32, i32, i32) {
    %c0_i32 = arith.constant 0 : i32
    %c0_i32_0 = arith.constant 0 : i32
    %c0_i32_1 = arith.constant 0 : i32
    %c0_i32_2 = arith.constant 0 : i32
    return %arg0, %c0_i32, %c0_i32_0, %c0_i32_1 : i32, i32, i32, i32
  }
  func.func @transform_1(%arg0: i32) -> (i32, i32) {
    %c0_i32 = arith.constant 0 : i32
    %c0_i32_0 = arith.constant 0 : i32
    %c0_i32_1 = arith.constant 0 : i32
    return %c0_i32, %c0_i32_0 : i32, i32
  }
  func.func @transform_2(%arg0: i32) -> (i32, i32) {
    %c0_i32 = arith.constant 0 : i32
    %c0_i32_0 = arith.constant 0 : i32
    %c0_i32_1 = arith.constant 0 : i32
    return %c0_i32, %c0_i32_0 : i32, i32
  }
  func.func @transform_3(%arg0: i32) -> (i32, i32, i32, i32) {
    %c0_i32 = arith.constant 0 : i32
    %c0_i32_0 = arith.constant 0 : i32
    %c0_i32_1 = arith.constant 0 : i32
    %c0_i32_2 = arith.constant 0 : i32
    return %arg0, %c0_i32, %c0_i32_0, %c0_i32_1 : i32, i32, i32, i32
  }
}

</mosaic_0001>

<llo_original>
// kernel: sppf_forward.1
$region0: #{sppf_forward.1}
  #allocation0 [shape = 'u32[]', space=smem, size = 0x4, offset = 0x4, fixed_abs, tag = 'smem constant byte address 0x4 - core index']
  #allocation1 [shape = 'u32[72,128]{1,0:T(1,128)}', space=vmem, size = 0x9000, scoped, tag = 'internal scratch']
  #allocation2 [shape = 'bf16[20,16,128]{2,1,0:T(8,128)(2,1)}', space=vmem, size = 0x14000, scoped, tag = 'scratch operand']
  %s0 = inlined_call_operand.vmem [shape: bf16[2,16,16,128], index: 0, kind: input, shape index: {}]
  %s1 = inlined_call_operand.vmem [shape: bf16[512,128], index: 1, kind: input, shape index: {}]
  %s2 = inlined_call_operand.vmem [shape: f32[1,128], index: 2, kind: input, shape index: {}]
  %s3 = inlined_call_operand.hbm [shape: f32[2,16,16,128], index: 3, kind: output, shape index: {}]
  %s4 = sld [smem:[#allocation0]]
  $region45: #{sppf_forward.1} parent=0
    _
  %s6 = ssub.s32 1, %s4
  %s7 = scalar_select 0, %s6, %s4
  $region1: #{sppf_forward.1} parent=0
    #allocation3 [shape = 'u8[262144]{0}', space=vmem, size = 0x40000, scoped, tag = 'output window, operand 0']
    #allocation4 [shape = 's32[2]{0}', space=sflag, size = 0x8, scoped, tag = 'scoped memory for sppf_forward.1']
    %8 = vsyncpa [#allocation4], 0
    %s9 = scalar_lea.sflag [#allocation4], 1
    %10 = vsyncpa %s9, 0
    loop: start=0, step=1, limit=4
    $region2: #{sppf_forward.1} parent=1 // loop_pre_header
      _
    $region3: #{sppf_forward.1} parent=1 // loop_header
      %s12 = sphi 0, %s16
      %p13 = scmp.ge.s32.totalorder %s12, 4
      %s22 = sphi 0, %s24
      %s25 = sphi 0, %s22
      %s26 = sphi 0, %s25
      %s42 = sphi 0, %s26
      %s46 = sphi 0, %s46
      %s48 = sphi 0, %s46
      %s49 = sphi 0, %s48
      %s63 = sphi 0, %s49
      %s67 = sphi 0, %s67
      %s69 = sphi 0, %s67
      %s70 = sphi 0, %s69
      %s84 = sphi 0, %s70
      %s90 = sphi 0, %s92
      %s93 = sphi 0, %s90
      %s94 = sphi 0, %s93
      %s110 = sphi 0, %s94
    $region4: #{sppf_forward.1} parent=1 // loop_header_branch
      %15 = sbr.rel (%p13) target = $region8
    $region5: #{sppf_forward.1} parent=1 // loop_body
      %s17 = ssub.s32 %s12, 1
      %s18 = ssub.s32 %s12, 2
      %s19 = sadd.s32 %s12, 1
      %s20 = ssub.s32 %s12, %s19
      %p21 = scmp.eq.s32.totalorder %s20, 0
      %s23 = sadd.s32 %s22, 1
      %s24 = scalar_select %p21, %s22, %s23
      %p27 = pneg %p21
      %p28 = scmp.eq.s32.totalorder %s12, 1
      %p29 = por %p27, %p28
      %p30 = scmp.ne.s32.totalorder %s22, %s25
      %p31 = scmp.eq.s32.totalorder %s12, 0
      %p32 = por %p30, %p31
      %p33 = scmp.ne.s32.totalorder %s22, %s25
      %p34 = scmp.eq.s32.totalorder %s17, 1
      %p35 = por %p33, %p34
      %p36 = scmp.ne.s32.totalorder %s25, %s26
      %p37 = scmp.eq.s32.totalorder %s17, 0
      %p38 = por %p36, %p37
      %p39 = scmp.ne.s32.totalorder %s25, %s26
      %p40 = scmp.eq.s32.totalorder %s18, 1
      %p41 = por %p39, %p40
      %p43 = scmp.ne.s32.totalorder %s26, %s42
      %p44 = scmp.eq.s32.totalorder %s18, 0
      %p45 = por %p43, %p44
      %s47 = sadd.s32 %s46, 1
      %p50 = scmp.eq.s32.totalorder %s12, 1
      %p51 = scmp.ne.s32.totalorder %s46, %s48
      %p52 = scmp.eq.s32.totalorder %s12, 0
      %p53 = por %p51, %p52
      %p54 = scmp.ne.s32.totalorder %s46, %s48
      %p55 = scmp.eq.s32.totalorder %s17, 1
      %p56 = por %p54, %p55
      %p57 = scmp.ne.s32.totalorder %s48, %s49
      %p58 = scmp.eq.s32.totalorder %s17, 0
      %p59 = por %p57, %p58
      %p60 = scmp.ne.s32.totalorder %s48, %s49
      %p61 = scmp.eq.s32.totalorder %s18, 1
      %p62 = por %p60, %p61
      %p64 = scmp.ne.s32.totalorder %s49, %s63
      %p65 = scmp.eq.s32.totalorder %s18, 0
      %p66 = por %p64, %p65
      %s68 = sadd.s32 %s67, 1
      %p71 = scmp.eq.s32.totalorder %s12, 1
      %p72 = scmp.ne.s32.totalorder %s67, %s69
      %p73 = scmp.eq.s32.totalorder %s12, 0
      %p74 = por %p72, %p73
      %p75 = scmp.ne.s32.totalorder %s67, %s69
      %p76 = scmp.eq.s32.totalorder %s17, 1
      %p77 = por %p75, %p76
      %p78 = scmp.ne.s32.totalorder %s69, %s70
      %p79 = scmp.eq.s32.totalorder %s17, 0
      %p80 = por %p78, %p79
      %p81 = scmp.ne.s32.totalorder %s69, %s70
      %p82 = scmp.eq.s32.totalorder %s18, 1
      %p83 = por %p81, %p82
      %p85 = scmp.ne.s32.totalorder %s70, %s84
      %p86 = scmp.eq.s32.totalorder %s18, 0
      %p87 = por %p85, %p86
      %s88 = ssub.s32 %s12, %s19
      %p89 = scmp.eq.s32.totalorder %s88, 0
      %s91 = sadd.s32 %s90, 1
      %s92 = scalar_select %p89, %s90, %s91
      %p95 = pneg %p89
      %p96 = scmp.eq.s32.totalorder %s12, 1
      %p97 = por %p95, %p96
      %p98 = scmp.ne.s32.totalorder %s90, %s93
      %p99 = scmp.eq.s32.totalorder %s12, 0
      %p100 = por %p98, %p99
      %p101 = scmp.ne.s32.totalorder %s90, %s93
      %p102 = scmp.eq.s32.totalorder %s17, 1
      %p103 = por %p101, %p102
      %p104 = scmp.ne.s32.totalorder %s93, %s94
      %p105 = scmp.eq.s32.totalorder %s17, 0
      %p106 = por %p104, %p105
      %p107 = scmp.ne.s32.totalorder %s93, %s94
      %p108 = scmp.eq.s32.totalorder %s18, 1
      %p109 = por %p107, %p108
      %p111 = scmp.ne.s32.totalorder %s94, %s110
      %p112 = scmp.eq.s32.totalorder %s18, 0
      %p113 = por %p111, %p112
      %p114 = scmp.le.s32.totalorder 1, %s12
      %p115 = scmp.lt.s32.totalorder %s12, 3
      %p116 = pnand %p114, %p115
      %p117 = pneg %p116
      // Predicated region
      $region9: #{sppf_forward.1} parent=5 // pred_check
        _
      $region10: #{sppf_forward.1} parent=5 // pred_check_branch
        %119 = sbr.rel (%p116) target = $region12
      $region11: #{sppf_forward.1} parent=5 // pred_region
        %s120 = ssub.s32 %s12, 1
        // Predicated region
        $region13: #{sppf_forward.1} parent=11 // pred_check
          %p121 = pneg %p59
        $region14: #{sppf_forward.1} parent=11 // pred_check_branch
          %123 = sbr.rel (%p121) target = $region16
        $region15: #{sppf_forward.1} parent=11 // pred_region
          _
        $region16: #{sppf_forward.1} parent=11 // pred_fallthru
          _
        // Predicated region
        $region17: #{sppf_forward.1} parent=11 // pred_check
          %p124 = pneg %p80
        $region18: #{sppf_forward.1} parent=11 // pred_check_branch
          %126 = sbr.rel (%p124) target = $region20
        $region19: #{sppf_forward.1} parent=11 // pred_region
          _
        $region20: #{sppf_forward.1} parent=11 // pred_fallthru
          _
      $region12: #{sppf_forward.1} parent=5 // pred_fallthru
        _
      %p127 = scmp.lt.s32.totalorder %s12, 2
      // Predicated region
      $region21: #{sppf_forward.1} parent=5 // pred_check
        %p128 = pneg %p127
      $region22: #{sppf_forward.1} parent=5 // pred_check_branch
        %130 = sbr.rel (%p128) target = $region24
      $region23: #{sppf_forward.1} parent=5 // pred_region
        // Predicated region
        $region25: #{sppf_forward.1} parent=23 // pred_check
          %p131 = pneg %p32
        $region26: #{sppf_forward.1} parent=23 // pred_check_branch
          %133 = sbr.rel (%p131) target = $region28
        $region27: #{sppf_forward.1} parent=23 // pred_region
          %p134 = scmp.lt.s32.totalorder %s12, 1
          %s135 = scalar_select %p134, %s12, 1
          %s136 = smul.addr %s135, 32
          %s137 = smul.addr %s136, 4
          %s138 = scalar_lea.vmem %s0, %s137
        $region28: #{sppf_forward.1} parent=23 // pred_fallthru
          _
      $region24: #{sppf_forward.1} parent=5 // pred_fallthru
        _
      %p139 = scmp.le.s32.totalorder 1, %s12
      %p140 = scmp.lt.s32.totalorder %s12, 3
      %p141 = pnand %p139, %p140
      %p142 = pneg %p141
      // Predicated region
      $region29: #{sppf_forward.1} parent=5 // pred_check
        _
      $region30: #{sppf_forward.1} parent=5 // pred_check_branch
        %144 = sbr.rel (%p141) target = $region32
      $region31: #{sppf_forward.1} parent=5 // pred_region
        %s145 = ssub.s32 %s12, 1
        %p146 = scmp.lt.s32.totalorder %s17, 1
        %s147 = scalar_select %p146, %s17, 1
        %s148 = smul.addr %s147, 32
        %s149 = smul.addr %s148, 4
        %s150 = scalar_lea.vmem %s0, %s149
        %p151 = pneg %p38
        %p152 = pneg %p35
        %p153 = pneg %p59
        %p154 = pneg %p56
        %p155 = pneg %p80
        %p156 = pneg %p77
        %p157 = pneg %p106
        %p158 = pneg %p103
        %s159 = sand.u32 %s93, 1
        %s160 = scalar_lea.sflag [#allocation4], %s159
        %s161 = sand.u32 %s93, 1
        %s162 = smul.addr %s161, 256
        %s163 = scalar_lea.vmem [#allocation3], %s162
        %p164 = scmp.lt.s32.totalorder %s17, 1
        %s165 = scalar_select %p164, %s17, 1
        %s166 = smul.addr %s165, 32
        %s167 = smul.addr %s166, 4
        %s168 = scalar_lea.vmem %s0, %s167
        %170 = vst [vmem:[#allocation2] sm:$0xf] 4286644096
        %171 = vst [vmem:[#allocation2 + $0x4] sm:$0xf] 4286644096
        %172 = vst [vmem:[#allocation2 + $0x8] sm:$0xf] 4286644096
        %173 = vst [vmem:[#allocation2 + $0xc] sm:$0xf] 4286644096
        %s174 = scalar_lea.vmem [#allocation2], 144
        %175 = vst [vmem:[%s174] sm:$0xf] 4286644096
        %176 = vst [vmem:[%s174 + $0x4] sm:$0xf] 4286644096
        %177 = vst [vmem:[%s174 + $0x8] sm:$0xf] 4286644096
        %178 = vst [vmem:[%s174 + $0xc] sm:$0xf] 4286644096
        %v179 = vld [vmem:[%s168] sm:$0xf]
        %v180 = vld [vmem:[%s168 + $0x4] sm:$0xf]
        %v181 = vld [vmem:[%s168 + $0x8] sm:$0xf]
        %v182 = vld [vmem:[%s168 + $0xc] sm:$0xf]
        %v183 = vld [vmem:[%s168 + $0x10] sm:$0xf]
        %v184 = vld [vmem:[%s168 + $0x14] sm:$0xf]
        %v185 = vld [vmem:[%s168 + $0x18] sm:$0xf]
        %v186 = vld [vmem:[%s168 + $0x1c] sm:$0xf]
        %v187 = vld [vmem:[%s168 + $0x20] sm:$0xf]
        %v188 = vld [vmem:[%s168 + $0x24] sm:$0xf]
        %v189 = vld [vmem:[%s168 + $0x28] sm:$0xf]
        %v190 = vld [vmem:[%s168 + $0x2c] sm:$0xf]
        %v191 = vld [vmem:[%s168 + $0x30] sm:$0xf]
        %v192 = vld [vmem:[%s168 + $0x34] sm:$0xf]
        %v193 = vld [vmem:[%s168 + $0x38] sm:$0xf]
        %v194 = vld [vmem:[%s168 + $0x3c] sm:$0xf]
        %v195 = vld [vmem:[%s168 + $0x40] sm:$0xf]
        %v196 = vld [vmem:[%s168 + $0x44] sm:$0xf]
        %v197 = vld [vmem:[%s168 + $0x48] sm:$0xf]
        %v198 = vld [vmem:[%s168 + $0x4c] sm:$0xf]
        %v199 = vld [vmem:[%s168 + $0x50] sm:$0xf]
        %v200 = vld [vmem:[%s168 + $0x54] sm:$0xf]
        %v201 = vld [vmem:[%s168 + $0x58] sm:$0xf]
        %v202 = vld [vmem:[%s168 + $0x5c] sm:$0xf]
        %v203 = vld [vmem:[%s168 + $0x60] sm:$0xf]
        %v204 = vld [vmem:[%s168 + $0x64] sm:$0xf]
        %v205 = vld [vmem:[%s168 + $0x68] sm:$0xf]
        %v206 = vld [vmem:[%s168 + $0x6c] sm:$0xf]
        %v207 = vld [vmem:[%s168 + $0x70] sm:$0xf]
        %v208 = vld [vmem:[%s168 + $0x74] sm:$0xf]
        %v209 = vld [vmem:[%s168 + $0x78] sm:$0xf]
        %v210 = vld [vmem:[%s168 + $0x7c] sm:$0xf]
        %s211 = scalar_lea.vmem [#allocation2], 16
        %212 = vst [vmem:[%s211] sm:$0xf] %v179
        %213 = vst [vmem:[%s211 + $0x4] sm:$0xf] %v180
        %214 = vst [vmem:[%s211 + $0x8] sm:$0xf] %v181
        %215 = vst [vmem:[%s211 + $0xc] sm:$0xf] %v182
        %216 = vst [vmem:[%s211 + $0x10] sm:$0xf] %v183
        %217 = vst [vmem:[%s211 + $0x14] sm:$0xf] %v184
        %218 = vst [vmem:[%s211 + $0x18] sm:$0xf] %v185
        %219 = vst [vmem:[%s211 + $0x1c] sm:$0xf] %v186
        %220 = vst [vmem:[%s211 + $0x20] sm:$0xf] %v187
        %221 = vst [vmem:[%s211 + $0x24] sm:$0xf] %v188
        %222 = vst [vmem:[%s211 + $0x28] sm:$0xf] %v189
        %223 = vst [vmem:[%s211 + $0x2c] sm:$0xf] %v190
        %224 = vst [vmem:[%s211 + $0x30] sm:$0xf] %v191
        %225 = vst [vmem:[%s211 + $0x34] sm:$0xf] %v192
        %226 = vst [vmem:[%s211 + $0x38] sm:$0xf] %v193
        %227 = vst [vmem:[%s211 + $0x3c] sm:$0xf] %v194
        %228 = vst [vmem:[%s211 + $0x40] sm:$0xf] %v195
        %229 = vst [vmem:[%s211 + $0x44] sm:$0xf] %v196
        %230 = vst [vmem:[%s211 + $0x48] sm:$0xf] %v197
        %231 = vst [vmem:[%s211 + $0x4c] sm:$0xf] %v198
        %232 = vst [vmem:[%s211 + $0x50] sm:$0xf] %v199
        %233 = vst [vmem:[%s211 + $0x54] sm:$0xf] %v200
        %234 = vst [vmem:[%s211 + $0x58] sm:$0xf] %v201
        %235 = vst [vmem:[%s211 + $0x5c] sm:$0xf] %v202
        %236 = vst [vmem:[%s211 + $0x60] sm:$0xf] %v203
        %237 = vst [vmem:[%s211 + $0x64] sm:$0xf] %v204
        %238 = vst [vmem:[%s211 + $0x68] sm:$0xf] %v205
        %239 = vst [vmem:[%s211 + $0x6c] sm:$0xf] %v206
        %240 = vst [vmem:[%s211 + $0x70] sm:$0xf] %v207
        %241 = vst [vmem:[%s211 + $0x74] sm:$0xf] %v208
        %242 = vst [vmem:[%s211 + $0x78] sm:$0xf] %v209
        %243 = vst [vmem:[%s211 + $0x7c] sm:$0xf] %v210
        %v244 = vld [vmem:[#allocation2] sm:$0xf]
        %v245 = vld [vmem:[#allocation2 + $0x4] sm:$0xf]
        %v246 = vld [vmem:[#allocation2 + $0x8] sm:$0xf]
        %v247 = vld [vmem:[#allocation2 + $0xc] sm:$0xf]
        %v248 = vld [vmem:[#allocation2 + $0x10] sm:$0xf]
        %v249 = vld [vmem:[#allocation2 + $0x14] sm:$0xf]
        %v250 = vld [vmem:[#allocation2 + $0x18] sm:$0xf]
        %v251 = vld [vmem:[#allocation2 + $0x1c] sm:$0xf]
        %v252 = vld [vmem:[#allocation2 + $0x20] sm:$0xf]
        %v253 = vld [vmem:[#allocation2 + $0x24] sm:$0xf]
        %v254 = vld [vmem:[#allocation2 + $0x28] sm:$0xf]
        %v255 = vld [vmem:[#allocation2 + $0x2c] sm:$0xf]
        %v256 = vld [vmem:[#allocation2 + $0x30] sm:$0xf]
        %v257 = vld [vmem:[#allocation2 + $0x34] sm:$0xf]
        %v258 = vld [vmem:[#allocation2 + $0x38] sm:$0xf]
        %v259 = vld [vmem:[#allocation2 + $0x3c] sm:$0xf]
        %v260 = vld [vmem:[#allocation2 + $0x40] sm:$0xf]
        %v261 = vld [vmem:[#allocation2 + $0x44] sm:$0xf]
        %v262 = vld [vmem:[#allocation2 + $0x48] sm:$0xf]
        %v263 = vld [vmem:[#allocation2 + $0x4c] sm:$0xf]
        %v264 = vld [vmem:[#allocation2 + $0x50] sm:$0xf]
        %v265 = vld [vmem:[#allocation2 + $0x54] sm:$0xf]
        %v266 = vld [vmem:[#allocation2 + $0x58] sm:$0xf]
        %v267 = vld [vmem:[#allocation2 + $0x5c] sm:$0xf]
        %v268 = vld [vmem:[#allocation2 + $0x60] sm:$0xf]
        %v269 = vld [vmem:[#allocation2 + $0x64] sm:$0xf]
        %v270 = vld [vmem:[#allocation2 + $0x68] sm:$0xf]
        %v271 = vld [vmem:[#allocation2 + $0x6c] sm:$0xf]
        %v272 = vld [vmem:[#allocation2 + $0x70] sm:$0xf]
        %v273 = vld [vmem:[#allocation2 + $0x74] sm:$0xf]
        %v274 = vld [vmem:[#allocation2 + $0x78] sm:$0xf]
        %v275 = vld [vmem:[#allocation2 + $0x7c] sm:$0xf]
        %s276 = scalar_lea.vmem [#allocation2], 8
        %v277 = vld [vmem:[%s276] sm:$0xf]
        %v278 = vld [vmem:[%s276 + $0x4] sm:$0xf]
        %v279 = vld [vmem:[%s276 + $0x8] sm:$0xf]
        %v280 = vld [vmem:[%s276 + $0xc] sm:$0xf]
        %v281 = vld [vmem:[%s276 + $0x10] sm:$0xf]
        %v282 = vld [vmem:[%s276 + $0x14] sm:$0xf]
        %v283 = vld [vmem:[%s276 + $0x18] sm:$0xf]
        %v284 = vld [vmem:[%s276 + $0x1c] sm:$0xf]
        %v285 = vld [vmem:[%s276 + $0x20] sm:$0xf]
        %v286 = vld [vmem:[%s276 + $0x24] sm:$0xf]
        %v287 = vld [vmem:[%s276 + $0x28] sm:$0xf]
        %v288 = vld [vmem:[%s276 + $0x2c] sm:$0xf]
        %v289 = vld [vmem:[%s276 + $0x30] sm:$0xf]
        %v290 = vld [vmem:[%s276 + $0x34] sm:$0xf]
        %v291 = vld [vmem:[%s276 + $0x38] sm:$0xf]
        %v292 = vld [vmem:[%s276 + $0x3c] sm:$0xf]
        %v293 = vld [vmem:[%s276 + $0x40] sm:$0xf]
        %v294 = vld [vmem:[%s276 + $0x44] sm:$0xf]
        %v295 = vld [vmem:[%s276 + $0x48] sm:$0xf]
        %v296 = vld [vmem:[%s276 + $0x4c] sm:$0xf]
        %v297 = vld [vmem:[%s276 + $0x50] sm:$0xf]
        %v298 = vld [vmem:[%s276 + $0x54] sm:$0xf]
        %v299 = vld [vmem:[%s276 + $0x58] sm:$0xf]
        %v300 = vld [vmem:[%s276 + $0x5c] sm:$0xf]
        %v301 = vld [vmem:[%s276 + $0x60] sm:$0xf]
        %v302 = vld [vmem:[%s276 + $0x64] sm:$0xf]
        %v303 = vld [vmem:[%s276 + $0x68] sm:$0xf]
        %v304 = vld [vmem:[%s276 + $0x6c] sm:$0xf]
        %v305 = vld [vmem:[%s276 + $0x70] sm:$0xf]
        %v306 = vld [vmem:[%s276 + $0x74] sm:$0xf]
        %v307 = vld [vmem:[%s276 + $0x78] sm:$0xf]
        %v308 = vld [vmem:[%s276 + $0x7c] sm:$0xf]
        %v309 = vunpack.c.l.bf16 %v244
        %v310 = vunpack.c.l.bf16 %v245
        %v311 = vunpack.c.l.bf16 %v246
        %v312 = vunpack.c.l.bf16 %v247
        %v313 = vunpack.c.l.bf16 %v248
        %v314 = vunpack.c.l.bf16 %v249
        %v315 = vunpack.c.l.bf16 %v250
        %v316 = vunpack.c.l.bf16 %v251
        %v317 = vunpack.c.l.bf16 %v252
        %v318 = vunpack.c.l.bf16 %v253
        %v319 = vunpack.c.l.bf16 %v254
        %v320 = vunpack.c.l.bf16 %v255
        %v321 = vunpack.c.l.bf16 %v256
        %v322 = vunpack.c.l.bf16 %v257
        %v323 = vunpack.c.l.bf16 %v258
        %v324 = vunpack.c.l.bf16 %v259
        %v325 = vunpack.c.l.bf16 %v260
        %v326 = vunpack.c.l.bf16 %v261
        %v327 = vunpack.c.l.bf16 %v262
        %v328 = vunpack.c.l.bf16 %v263
        %v329 = vunpack.c.l.bf16 %v264
        %v330 = vunpack.c.l.bf16 %v265
        %v331 = vunpack.c.l.bf16 %v266
        %v332 = vunpack.c.l.bf16 %v267
        %v333 = vunpack.c.l.bf16 %v268
        %v334 = vunpack.c.l.bf16 %v269
        %v335 = vunpack.c.l.bf16 %v270
        %v336 = vunpack.c.l.bf16 %v271
        %v337 = vunpack.c.l.bf16 %v272
        %v338 = vunpack.c.l.bf16 %v273
        %v339 = vunpack.c.l.bf16 %v274
        %v340 = vunpack.c.l.bf16 %v275
        %v341 = vunpack.c.l.bf16 %v277
        %v342 = vunpack.c.l.bf16 %v278
        %v343 = vunpack.c.l.bf16 %v279
        %v344 = vunpack.c.l.bf16 %v280
        %v345 = vunpack.c.l.bf16 %v281
        %v346 = vunpack.c.l.bf16 %v282
        %v347 = vunpack.c.l.bf16 %v283
        %v348 = vunpack.c.l.bf16 %v284
        %v349 = vunpack.c.l.bf16 %v285
        %v350 = vunpack.c.l.bf16 %v286
        %v351 = vunpack.c.l.bf16 %v287
        %v352 = vunpack.c.l.bf16 %v288
        %v353 = vunpack.c.l.bf16 %v289
        %v354 = vunpack.c.l.bf16 %v290
        %v355 = vunpack.c.l.bf16 %v291
        %v356 = vunpack.c.l.bf16 %v292
        %v357 = vunpack.c.l.bf16 %v293
        %v358 = vunpack.c.l.bf16 %v294
        %v359 = vunpack.c.l.bf16 %v295
        %v360 = vunpack.c.l.bf16 %v296
        %v361 = vunpack.c.l.bf16 %v297
        %v362 = vunpack.c.l.bf16 %v298
        %v363 = vunpack.c.l.bf16 %v299
        %v364 = vunpack.c.l.bf16 %v300
        %v365 = vunpack.c.l.bf16 %v301
        %v366 = vunpack.c.l.bf16 %v302
        %v367 = vunpack.c.l.bf16 %v303
        %v368 = vunpack.c.l.bf16 %v304
        %v369 = vunpack.c.l.bf16 %v305
        %v370 = vunpack.c.l.bf16 %v306
        %v371 = vunpack.c.l.bf16 %v307
        %v372 = vunpack.c.l.bf16 %v308
        %v373 = vmax.f32 %v309, %v341
        %v374 = vmax.f32 %v310, %v342
        %v375 = vmax.f32 %v311, %v343
        %v376 = vmax.f32 %v312, %v344
        %v377 = vmax.f32 %v313, %v345
        %v378 = vmax.f32 %v314, %v346
        %v379 = vmax.f32 %v315, %v347
        %v380 = vmax.f32 %v316, %v348
        %v381 = vmax.f32 %v317, %v349
        %v382 = vmax.f32 %v318, %v350
        %v383 = vmax.f32 %v319, %v351
        %v384 = vmax.f32 %v320, %v352
        %v385 = vmax.f32 %v321, %v353
        %v386 = vmax.f32 %v322, %v354
        %v387 = vmax.f32 %v323, %v355
        %v388 = vmax.f32 %v324, %v356
        %v389 = vmax.f32 %v325, %v357
        %v390 = vmax.f32 %v326, %v358
        %v391 = vmax.f32 %v327, %v359
        %v392 = vmax.f32 %v328, %v360
        %v393 = vmax.f32 %v329, %v361
        %v394 = vmax.f32 %v330, %v362
        %v395 = vmax.f32 %v331, %v363
        %v396 = vmax.f32 %v332, %v364
        %v397 = vmax.f32 %v333, %v365
        %v398 = vmax.f32 %v334, %v366
        %v399 = vmax.f32 %v335, %v367
        %v400 = vmax.f32 %v336, %v368
        %v401 = vmax.f32 %v337, %v369
        %v402 = vmax.f32 %v338, %v370
        %v403 = vmax.f32 %v339, %v371
        %v404 = vmax.f32 %v340, %v372
        %v405 = vpack.c.bf16 %v373, %v373
        %v406 = vpack.c.bf16 %v374, %v374
        %v407 = vpack.c.bf16 %v375, %v375
        %v408 = vpack.c.bf16 %v376, %v376
        %v409 = vpack.c.bf16 %v377, %v377
        %v410 = vpack.c.bf16 %v378, %v378
        %v411 = vpack.c.bf16 %v379, %v379
        %v412 = vpack.c.bf16 %v380, %v380
        %v413 = vpack.c.bf16 %v381, %v381
        %v414 = vpack.c.bf16 %v382, %v382
        %v415 = vpack.c.bf16 %v383, %v383
        %v416 = vpack.c.bf16 %v384, %v384
        %v417 = vpack.c.bf16 %v385, %v385
        %v418 = vpack.c.bf16 %v386, %v386
        %v419 = vpack.c.bf16 %v387, %v387
        %v420 = vpack.c.bf16 %v388, %v388
        %v421 = vpack.c.bf16 %v389, %v389
        %v422 = vpack.c.bf16 %v390, %v390
        %v423 = vpack.c.bf16 %v391, %v391
        %v424 = vpack.c.bf16 %v392, %v392
        %v425 = vpack.c.bf16 %v393, %v393
        %v426 = vpack.c.bf16 %v394, %v394
        %v427 = vpack.c.bf16 %v395, %v395
        %v428 = vpack.c.bf16 %v396, %v396
        %v429 = vpack.c.bf16 %v397, %v397
        %v430 = vpack.c.bf16 %v398, %v398
        %v431 = vpack.c.bf16 %v399, %v399
        %v432 = vpack.c.bf16 %v400, %v400
        %v433 = vpack.c.bf16 %v401, %v401
        %v434 = vpack.c.bf16 %v402, %v402
        %v435 = vpack.c.bf16 %v403, %v403
        %v436 = vpack.c.bf16 %v404, %v404
        %v437 = vld [vmem:[%s211] sm:$0xf]
        %v438 = vld [vmem:[%s211 + $0x4] sm:$0xf]
        %v439 = vld [vmem:[%s211 + $0x8] sm:$0xf]
        %v440 = vld [vmem:[%s211 + $0xc] sm:$0xf]
        %v441 = vld [vmem:[%s211 + $0x10] sm:$0xf]
        %v442 = vld [vmem:[%s211 + $0x14] sm:$0xf]
        %v443 = vld [vmem:[%s211 + $0x18] sm:$0xf]
        %v444 = vld [vmem:[%s211 + $0x1c] sm:$0xf]
        %v445 = vld [vmem:[%s211 + $0x20] sm:$0xf]
        %v446 = vld [vmem:[%s211 + $0x24] sm:$0xf]
        %v447 = vld [vmem:[%s211 + $0x28] sm:$0xf]
        %v448 = vld [vmem:[%s211 + $0x2c] sm:$0xf]
        %v449 = vld [vmem:[%s211 + $0x30] sm:$0xf]
        %v450 = vld [vmem:[%s211 + $0x34] sm:$0xf]
        %v451 = vld [vmem:[%s211 + $0x38] sm:$0xf]
        %v452 = vld [vmem:[%s211 + $0x3c] sm:$0xf]
        %v453 = vld [vmem:[%s211 + $0x40] sm:$0xf]
        %v454 = vld [vmem:[%s211 + $0x44] sm:$0xf]
        %v455 = vld [vmem:[%s211 + $0x48] sm:$0xf]
        %v456 = vld [vmem:[%s211 + $0x4c] sm:$0xf]
        %v457 = vld [vmem:[%s211 + $0x50] sm:$0xf]
        %v458 = vld [vmem:[%s211 + $0x54] sm:$0xf]
        %v459 = vld [vmem:[%s211 + $0x58] sm:$0xf]
        %v460 = vld [vmem:[%s211 + $0x5c] sm:$0xf]
        %v461 = vld [vmem:[%s211 + $0x60] sm:$0xf]
        %v462 = vld [vmem:[%s211 + $0x64] sm:$0xf]
        %v463 = vld [vmem:[%s211 + $0x68] sm:$0xf]
        %v464 = vld [vmem:[%s211 + $0x6c] sm:$0xf]
        %v465 = vld [vmem:[%s211 + $0x70] sm:$0xf]
        %v466 = vld [vmem:[%s211 + $0x74] sm:$0xf]
        %v467 = vld [vmem:[%s211 + $0x78] sm:$0xf]
        %v468 = vld [vmem:[%s211 + $0x7c] sm:$0xf]
        %v469 = vunpack.c.l.bf16 %v405
        %v470 = vunpack.c.l.bf16 %v406
        %v471 = vunpack.c.l.bf16 %v407
        %v472 = vunpack.c.l.bf16 %v408
        %v473 = vunpack.c.l.bf16 %v409
        %v474 = vunpack.c.l.bf16 %v410
        %v475 = vunpack.c.l.bf16 %v411
        %v476 = vunpack.c.l.bf16 %v412
        %v477 = vunpack.c.l.bf16 %v413
        %v478 = vunpack.c.l.bf16 %v414
        %v479 = vunpack.c.l.bf16 %v415
        %v480 = vunpack.c.l.bf16 %v416
        %v481 = vunpack.c.l.bf16 %v417
        %v482 = vunpack.c.l.bf16 %v418
        %v483 = vunpack.c.l.bf16 %v419
        %v484 = vunpack.c.l.bf16 %v420
        %v485 = vunpack.c.l.bf16 %v421
        %v486 = vunpack.c.l.bf16 %v422
        %v487 = vunpack.c.l.bf16 %v423
        %v488 = vunpack.c.l.bf16 %v424
        %v489 = vunpack.c.l.bf16 %v425
        %v490 = vunpack.c.l.bf16 %v426
        %v491 = vunpack.c.l.bf16 %v427
        %v492 = vunpack.c.l.bf16 %v428
        %v493 = vunpack.c.l.bf16 %v429
        %v494 = vunpack.c.l.bf16 %v430
        %v495 = vunpack.c.l.bf16 %v431
        %v496 = vunpack.c.l.bf16 %v432
        %v497 = vunpack.c.l.bf16 %v433
        %v498 = vunpack.c.l.bf16 %v434
        %v499 = vunpack.c.l.bf16 %v435
        %v500 = vunpack.c.l.bf16 %v436
        %v501 = vunpack.c.l.bf16 %v437
        %v502 = vunpack.c.l.bf16 %v438
        %v503 = vunpack.c.l.bf16 %v439
        %v504 = vunpack.c.l.bf16 %v440
        %v505 = vunpack.c.l.bf16 %v441
        %v506 = vunpack.c.l.bf16 %v442
        %v507 = vunpack.c.l.bf16 %v443
        %v508 = vunpack.c.l.bf16 %v444
        %v509 = vunpack.c.l.bf16 %v445
        %v510 = vunpack.c.l.bf16 %v446
        %v511 = vunpack.c.l.bf16 %v447
        %v512 = vunpack.c.l.bf16 %v448
        %v513 = vunpack.c.l.bf16 %v449
        %v514 = vunpack.c.l.bf16 %v450
        %v515 = vunpack.c.l.bf16 %v451
        %v516 = vunpack.c.l.bf16 %v452
        %v517 = vunpack.c.l.bf16 %v453
        %v518 = vunpack.c.l.bf16 %v454
        %v519 = vunpack.c.l.bf16 %v455
        %v520 = vunpack.c.l.bf16 %v456
        %v521 = vunpack.c.l.bf16 %v457
        %v522 = vunpack.c.l.bf16 %v458
        %v523 = vunpack.c.l.bf16 %v459
        %v524 = vunpack.c.l.bf16 %v460
        %v525 = vunpack.c.l.bf16 %v461
        %v526 = vunpack.c.l.bf16 %v462
        %v527 = vunpack.c.l.bf16 %v463
        %v528 = vunpack.c.l.bf16 %v464
        %v529 = vunpack.c.l.bf16 %v465
        %v530 = vunpack.c.l.bf16 %v466
        %v531 = vunpack.c.l.bf16 %v467
        %v532 = vunpack.c.l.bf16 %v468
        %v533 = vmax.f32 %v469, %v501
        %v534 = vmax.f32 %v470, %v502
        %v535 = vmax.f32 %v471, %v503
        %v536 = vmax.f32 %v472, %v504
        %v537 = vmax.f32 %v473, %v505
        %v538 = vmax.f32 %v474, %v506
        %v539 = vmax.f32 %v475, %v507
        %v540 = vmax.f32 %v476, %v508
        %v541 = vmax.f32 %v477, %v509
        %v542 = vmax.f32 %v478, %v510
        %v543 = vmax.f32 %v479, %v511
        %v544 = vmax.f32 %v480, %v512
        %v545 = vmax.f32 %v481, %v513
        %v546 = vmax.f32 %v482, %v514
        %v547 = vmax.f32 %v483, %v515
        %v548 = vmax.f32 %v484, %v516
        %v549 = vmax.f32 %v485, %v517
        %v550 = vmax.f32 %v486, %v518
        %v551 = vmax.f32 %v487, %v519
        %v552 = vmax.f32 %v488, %v520
        %v553 = vmax.f32 %v489, %v521
        %v554 = vmax.f32 %v490, %v522
        %v555 = vmax.f32 %v491, %v523
        %v556 = vmax.f32 %v492, %v524
        %v557 = vmax.f32 %v493, %v525
        %v558 = vmax.f32 %v494, %v526
        %v559 = vmax.f32 %v495, %v527
        %v560 = vmax.f32 %v496, %v528
        %v561 = vmax.f32 %v497, %v529
        %v562 = vmax.f32 %v498, %v530
        %v563 = vmax.f32 %v499, %v531
        %v564 = vmax.f32 %v500, %v532
        %v565 = vpack.c.bf16 %v533, %v533
        %v566 = vpack.c.bf16 %v534, %v534
        %v567 = vpack.c.bf16 %v535, %v535
        %v568 = vpack.c.bf16 %v536, %v536
        %v569 = vpack.c.bf16 %v537, %v537
        %v570 = vpack.c.bf16 %v538, %v538
        %v571 = vpack.c.bf16 %v539, %v539
        %v572 = vpack.c.bf16 %v540, %v540
        %v573 = vpack.c.bf16 %v541, %v541
        %v574 = vpack.c.bf16 %v542, %v542
        %v575 = vpack.c.bf16 %v543, %v543
        %v576 = vpack.c.bf16 %v544, %v544
        %v577 = vpack.c.bf16 %v545, %v545
        %v578 = vpack.c.bf16 %v546, %v546
        %v579 = vpack.c.bf16 %v547, %v547
        %v580 = vpack.c.bf16 %v548, %v548
        %v581 = vpack.c.bf16 %v549, %v549
        %v582 = vpack.c.bf16 %v550, %v550
        %v583 = vpack.c.bf16 %v551, %v551
        %v584 = vpack.c.bf16 %v552, %v552
        %v585 = vpack.c.bf16 %v553, %v553
        %v586 = vpack.c.bf16 %v554, %v554
        %v587 = vpack.c.bf16 %v555, %v555
        %v588 = vpack.c.bf16 %v556, %v556
        %v589 = vpack.c.bf16 %v557, %v557
        %v590 = vpack.c.bf16 %v558, %v558
        %v591 = vpack.c.bf16 %v559, %v559
        %v592 = vpack.c.bf16 %v560, %v560
        %v593 = vpack.c.bf16 %v561, %v561
        %v594 = vpack.c.bf16 %v562, %v562
        %v595 = vpack.c.bf16 %v563, %v563
        %v596 = vpack.c.bf16 %v564, %v564
        %s597 = scalar_lea.vmem [#allocation2], 24
        %v598 = vld [vmem:[%s597] sm:$0xf]
        %v599 = vld [vmem:[%s597 + $0x4] sm:$0xf]
        %v600 = vld [vmem:[%s597 + $0x8] sm:$0xf]
        %v601 = vld [vmem:[%s597 + $0xc] sm:$0xf]
        %v602 = vld [vmem:[%s597 + $0x10] sm:$0xf]
        %v603 = vld [vmem:[%s597 + $0x14] sm:$0xf]
        %v604 = vld [vmem:[%s597 + $0x18] sm:$0xf]
        %v605 = vld [vmem:[%s597 + $0x1c] sm:$0xf]
        %v606 = vld [vmem:[%s597 + $0x20] sm:$0xf]
        %v607 = vld [vmem:[%s597 + $0x24] sm:$0xf]
        %v608 = vld [vmem:[%s597 + $0x28] sm:$0xf]
        %v609 = vld [vmem:[%s597 + $0x2c] sm:$0xf]
        %v610 = vld [vmem:[%s597 + $0x30] sm:$0xf]
        %v611 = vld [vmem:[%s597 + $0x34] sm:$0xf]
        %v612 = vld [vmem:[%s597 + $0x38] sm:$0xf]
        %v613 = vld [vmem:[%s597 + $0x3c] sm:$0xf]
        %v614 = vld [vmem:[%s597 + $0x40] sm:$0xf]
        %v615 = vld [vmem:[%s597 + $0x44] sm:$0xf]
        %v616 = vld [vmem:[%s597 + $0x48] sm:$0xf]
        %v617 = vld [vmem:[%s597 + $0x4c] sm:$0xf]
        %v618 = vld [vmem:[%s597 + $0x50] sm:$0xf]
        %v619 = vld [vmem:[%s597 + $0x54] sm:$0xf]
        %v620 = vld [vmem:[%s597 + $0x58] sm:$0xf]
        %v621 = vld [vmem:[%s597 + $0x5c] sm:$0xf]
        %v622 = vld [vmem:[%s597 + $0x60] sm:$0xf]
        %v623 = vld [vmem:[%s597 + $0x64] sm:$0xf]
        %v624 = vld [vmem:[%s597 + $0x68] sm:$0xf]
        %v625 = vld [vmem:[%s597 + $0x6c] sm:$0xf]
        %v626 = vld [vmem:[%s597 + $0x70] sm:$0xf]
        %v627 = vld [vmem:[%s597 + $0x74] sm:$0xf]
        %v628 = vld [vmem:[%s597 + $0x78] sm:$0xf]
        %v629 = vld [vmem:[%s597 + $0x7c] sm:$0xf]
        %v630 = vunpack.c.l.bf16 %v565
        %v631 = vunpack.c.l.bf16 %v566
        %v632 = vunpack.c.l.bf16 %v567
        %v633 = vunpack.c.l.bf16 %v568
        %v634 = vunpack.c.l.bf16 %v569
        %v635 = vunpack.c.l.bf16 %v570
        %v636 = vunpack.c.l.bf16 %v571
        %v637 = vunpack.c.l.bf16 %v572
        %v638 = vunpack.c.l.bf16 %v573
        %v639 = vunpack.c.l.bf16 %v574
        %v640 = vunpack.c.l.bf16 %v575
        %v641 = vunpack.c.l.bf16 %v576
        %v642 = vunpack.c.l.bf16 %v577
        %v643 = vunpack.c.l.bf16 %v578
        %v644 = vunpack.c.l.bf16 %v579
        %v645 = vunpack.c.l.bf16 %v580
        %v646 = vunpack.c.l.bf16 %v581
        %v647 = vunpack.c.l.bf16 %v582
        %v648 = vunpack.c.l.bf16 %v583
        %v649 = vunpack.c.l.bf16 %v584
        %v650 = vunpack.c.l.bf16 %v585
        %v651 = vunpack.c.l.bf16 %v586
        %v652 = vunpack.c.l.bf16 %v587
        %v653 = vunpack.c.l.bf16 %v588
        %v654 = vunpack.c.l.bf16 %v589
        %v655 = vunpack.c.l.bf16 %v590
        %v656 = vunpack.c.l.bf16 %v591
        %v657 = vunpack.c.l.bf16 %v592
        %v658 = vunpack.c.l.bf16 %v593
        %v659 = vunpack.c.l.bf16 %v594
        %v660 = vunpack.c.l.bf16 %v595
        %v661 = vunpack.c.l.bf16 %v596
        %v662 = vunpack.c.l.bf16 %v598
        %v663 = vunpack.c.l.bf16 %v599
        %v664 = vunpack.c.l.bf16 %v600
        %v665 = vunpack.c.l.bf16 %v601
        %v666 = vunpack.c.l.bf16 %v602
        %v667 = vunpack.c.l.bf16 %v603
        %v668 = vunpack.c.l.bf16 %v604
        %v669 = vunpack.c.l.bf16 %v605
        %v670 = vunpack.c.l.bf16 %v606
        %v671 = vunpack.c.l.bf16 %v607
        %v672 = vunpack.c.l.bf16 %v608
        %v673 = vunpack.c.l.bf16 %v609
        %v674 = vunpack.c.l.bf16 %v610
        %v675 = vunpack.c.l.bf16 %v611
        %v676 = vunpack.c.l.bf16 %v612
        %v677 = vunpack.c.l.bf16 %v613
        %v678 = vunpack.c.l.bf16 %v614
        %v679 = vunpack.c.l.bf16 %v615
        %v680 = vunpack.c.l.bf16 %v616
        %v681 = vunpack.c.l.bf16 %v617
        %v682 = vunpack.c.l.bf16 %v618
        %v683 = vunpack.c.l.bf16 %v619
        %v684 = vunpack.c.l.bf16 %v620
        %v685 = vunpack.c.l.bf16 %v621
        %v686 = vunpack.c.l.bf16 %v622
        %v687 = vunpack.c.l.bf16 %v623
        %v688 = vunpack.c.l.bf16 %v624
        %v689 = vunpack.c.l.bf16 %v625
        %v690 = vunpack.c.l.bf16 %v626
        %v691 = vunpack.c.l.bf16 %v627
        %v692 = vunpack.c.l.bf16 %v628
        %v693 = vunpack.c.l.bf16 %v629
        %v694 = vmax.f32 %v630, %v662
        %v695 = vmax.f32 %v631, %v663
        %v696 = vmax.f32 %v632, %v664
        %v697 = vmax.f32 %v633, %v665
        %v698 = vmax.f32 %v634, %v666
        %v699 = vmax.f32 %v635, %v667
        %v700 = vmax.f32 %v636, %v668
        %v701 = vmax.f32 %v637, %v669
        %v702 = vmax.f32 %v638, %v670
        %v703 = vmax.f32 %v639, %v671
        %v704 = vmax.f32 %v640, %v672
        %v705 = vmax.f32 %v641, %v673
        %v706 = vmax.f32 %v642, %v674
        %v707 = vmax.f32 %v643, %v675
        %v708 = vmax.f32 %v644, %v676
        %v709 = vmax.f32 %v645, %v677
        %v710 = vmax.f32 %v646, %v678
        %v711 = vmax.f32 %v647, %v679
        %v712 = vmax.f32 %v648, %v680
        %v713 = vmax.f32 %v649, %v681
        %v714 = vmax.f32 %v650, %v682
        %v715 = vmax.f32 %v651, %v683
        %v716 = vmax.f32 %v652, %v684
        %v717 = vmax.f32 %v653, %v685
        %v718 = vmax.f32 %v654, %v686
        %v719 = vmax.f32 %v655, %v687
        %v720 = vmax.f32 %v656, %v688
        %v721 = vmax.f32 %v657, %v689
        %v722 = vmax.f32 %v658, %v690
        %v723 = vmax.f32 %v659, %v691
        %v724 = vmax.f32 %v660, %v692
        %v725 = vmax.f32 %v661, %v693
        %v726 = vpack.c.bf16 %v694, %v694
        %v727 = vpack.c.bf16 %v695, %v695
        %v728 = vpack.c.bf16 %v696, %v696
        %v729 = vpack.c.bf16 %v697, %v697
        %v730 = vpack.c.bf16 %v698, %v698
        %v731 = vpack.c.bf16 %v699, %v699
        %v732 = vpack.c.bf16 %v700, %v700
        %v733 = vpack.c.bf16 %v701, %v701
        %v734 = vpack.c.bf16 %v702, %v702
        %v735 = vpack.c.bf16 %v703, %v703
        %v736 = vpack.c.bf16 %v704, %v704
        %v737 = vpack.c.bf16 %v705, %v705
        %v738 = vpack.c.bf16 %v706, %v706
        %v739 = vpack.c.bf16 %v707, %v707
        %v740 = vpack.c.bf16 %v708, %v708
        %v741 = vpack.c.bf16 %v709, %v709
        %v742 = vpack.c.bf16 %v710, %v710
        %v743 = vpack.c.bf16 %v711, %v711
        %v744 = vpack.c.bf16 %v712, %v712
        %v745 = vpack.c.bf16 %v713, %v713
        %v746 = vpack.c.bf16 %v714, %v714
        %v747 = vpack.c.bf16 %v715, %v715
        %v748 = vpack.c.bf16 %v716, %v716
        %v749 = vpack.c.bf16 %v717, %v717
        %v750 = vpack.c.bf16 %v718, %v718
        %v751 = vpack.c.bf16 %v719, %v719
        %v752 = vpack.c.bf16 %v720, %v720
        %v753 = vpack.c.bf16 %v721, %v721
        %v754 = vpack.c.bf16 %v722, %v722
        %v755 = vpack.c.bf16 %v723, %v723
        %v756 = vpack.c.bf16 %v724, %v724
        %v757 = vpack.c.bf16 %v725, %v725
        %s758 = scalar_lea.vmem [#allocation2], 32
        %v759 = vld [vmem:[%s758] sm:$0xf]
        %v760 = vld [vmem:[%s758 + $0x4] sm:$0xf]
        %v761 = vld [vmem:[%s758 + $0x8] sm:$0xf]
        %v762 = vld [vmem:[%s758 + $0xc] sm:$0xf]
        %v763 = vld [vmem:[%s758 + $0x10] sm:$0xf]
        %v764 = vld [vmem:[%s758 + $0x14] sm:$0xf]
        %v765 = vld [vmem:[%s758 + $0x18] sm:$0xf]
        %v766 = vld [vmem:[%s758 + $0x1c] sm:$0xf]
        %v767 = vld [vmem:[%s758 + $0x20] sm:$0xf]
        %v768 = vld [vmem:[%s758 + $0x24] sm:$0xf]
        %v769 = vld [vmem:[%s758 + $0x28] sm:$0xf]
        %v770 = vld [vmem:[%s758 + $0x2c] sm:$0xf]
        %v771 = vld [vmem:[%s758 + $0x30] sm:$0xf]
        %v772 = vld [vmem:[%s758 + $0x34] sm:$0xf]
        %v773 = vld [vmem:[%s758 + $0x38] sm:$0xf]
        %v774 = vld [vmem:[%s758 + $0x3c] sm:$0xf]
        %v775 = vld [vmem:[%s758 + $0x40] sm:$0xf]
        %v776 = vld [vmem:[%s758 + $0x44] sm:$0xf]
        %v777 = vld [vmem:[%s758 + $0x48] sm:$0xf]
        %v778 = vld [vmem:[%s758 + $0x4c] sm:$0xf]
        %v779 = vld [vmem:[%s758 + $0x50] sm:$0xf]
        %v780 = vld [vmem:[%s758 + $0x54] sm:$0xf]
        %v781 = vld [vmem:[%s758 + $0x58] sm:$0xf]
        %v782 = vld [vmem:[%s758 + $0x5c] sm:$0xf]
        %v783 = vld [vmem:[%s758 + $0x60] sm:$0xf]
        %v784 = vld [vmem:[%s758 + $0x64] sm:$0xf]
        %v785 = vld [vmem:[%s758 + $0x68] sm:$0xf]
        %v786 = vld [vmem:[%s758 + $0x6c] sm:$0xf]
        %v787 = vld [vmem:[%s758 + $0x70] sm:$0xf]
        %v788 = vld [vmem:[%s758 + $0x74] sm:$0xf]
        %v789 = vld [vmem:[%s758 + $0x78] sm:$0xf]
        %v790 = vld [vmem:[%s758 + $0x7c] sm:$0xf]
        %v791 = vunpack.c.l.bf16 %v726
        %v792 = vunpack.c.l.bf16 %v727
        %v793 = vunpack.c.l.bf16 %v728
        %v794 = vunpack.c.l.bf16 %v729
        %v795 = vunpack.c.l.bf16 %v730
        %v796 = vunpack.c.l.bf16 %v731
        %v797 = vunpack.c.l.bf16 %v732
        %v798 = vunpack.c.l.bf16 %v733
        %v799 = vunpack.c.l.bf16 %v734
        %v800 = vunpack.c.l.bf16 %v735
        %v801 = vunpack.c.l.bf16 %v736
        %v802 = vunpack.c.l.bf16 %v737
        %v803 = vunpack.c.l.bf16 %v738
        %v804 = vunpack.c.l.bf16 %v739
        %v805 = vunpack.c.l.bf16 %v740
        %v806 = vunpack.c.l.bf16 %v741
        %v807 = vunpack.c.l.bf16 %v742
        %v808 = vunpack.c.l.bf16 %v743
        %v809 = vunpack.c.l.bf16 %v744
        %v810 = vunpack.c.l.bf16 %v745
        %v811 = vunpack.c.l.bf16 %v746
        %v812 = vunpack.c.l.bf16 %v747
        %v813 = vunpack.c.l.bf16 %v748
        %v814 = vunpack.c.l.bf16 %v749
        %v815 = vunpack.c.l.bf16 %v750
        %v816 = vunpack.c.l.bf16 %v751
        %v817 = vunpack.c.l.bf16 %v752
        %v818 = vunpack.c.l.bf16 %v753
        %v819 = vunpack.c.l.bf16 %v754
        %v820 = vunpack.c.l.bf16 %v755
        %v821 = vunpack.c.l.bf16 %v756
        %v822 = vunpack.c.l.bf16 %v757
        %v823 = vunpack.c.l.bf16 %v759
        %v824 = vunpack.c.l.bf16 %v760
        %v825 = vunpack.c.l.bf16 %v761
        %v826 = vunpack.c.l.bf16 %v762
        %v827 = vunpack.c.l.bf16 %v763
        %v828 = vunpack.c.l.bf16 %v764
        %v829 = vunpack.c.l.bf16 %v765
        %v830 = vunpack.c.l.bf16 %v766
        %v831 = vunpack.c.l.bf16 %v767
        %v832 = vunpack.c.l.bf16 %v768
        %v833 = vunpack.c.l.bf16 %v769
        %v834 = vunpack.c.l.bf16 %v770
        %v835 = vunpack.c.l.bf16 %v771
        %v836 = vunpack.c.l.bf16 %v772
        %v837 = vunpack.c.l.bf16 %v773
        %v838 = vunpack.c.l.bf16 %v774
        %v839 = vunpack.c.l.bf16 %v775
        %v840 = vunpack.c.l.bf16 %v776
        %v841 = vunpack.c.l.bf16 %v777
        %v842 = vunpack.c.l.bf16 %v778
        %v843 = vunpack.c.l.bf16 %v779
        %v844 = vunpack.c.l.bf16 %v780
        %v845 = vunpack.c.l.bf16 %v781
        %v846 = vunpack.c.l.bf16 %v782
        %v847 = vunpack.c.l.bf16 %v783
        %v848 = vunpack.c.l.bf16 %v784
        %v849 = vunpack.c.l.bf16 %v785
        %v850 = vunpack.c.l.bf16 %v786
        %v851 = vunpack.c.l.bf16 %v787
        %v852 = vunpack.c.l.bf16 %v788
        %v853 = vunpack.c.l.bf16 %v789
        %v854 = vunpack.c.l.bf16 %v790
        %v855 = vmax.f32 %v791, %v823
        %v856 = vmax.f32 %v792, %v824
        %v857 = vmax.f32 %v793, %v825
        %v858 = vmax.f32 %v794, %v826
        %v859 = vmax.f32 %v795, %v827
        %v860 = vmax.f32 %v796, %v828
        %v861 = vmax.f32 %v797, %v829
        %v862 = vmax.f32 %v798, %v830
        %v863 = vmax.f32 %v799, %v831
        %v864 = vmax.f32 %v800, %v832
        %v865 = vmax.f32 %v801, %v833
        %v866 = vmax.f32 %v802, %v834
        %v867 = vmax.f32 %v803, %v835
        %v868 = vmax.f32 %v804, %v836
        %v869 = vmax.f32 %v805, %v837
        %v870 = vmax.f32 %v806, %v838
        %v871 = vmax.f32 %v807, %v839
        %v872 = vmax.f32 %v808, %v840
        %v873 = vmax.f32 %v809, %v841
        %v874 = vmax.f32 %v810, %v842
        %v875 = vmax.f32 %v811, %v843
        %v876 = vmax.f32 %v812, %v844
        %v877 = vmax.f32 %v813, %v845
        %v878 = vmax.f32 %v814, %v846
        %v879 = vmax.f32 %v815, %v847
        %v880 = vmax.f32 %v816, %v848
        %v881 = vmax.f32 %v817, %v849
        %v882 = vmax.f32 %v818, %v850
        %v883 = vmax.f32 %v819, %v851
        %v884 = vmax.f32 %v820, %v852
        %v885 = vmax.f32 %v821, %v853
        %v886 = vmax.f32 %v822, %v854
        %v887 = vpack.c.bf16 %v855, %v855
        %v888 = vpack.c.bf16 %v856, %v856
        %v889 = vpack.c.bf16 %v857, %v857
        %v890 = vpack.c.bf16 %v858, %v858
        %v891 = vpack.c.bf16 %v859, %v859
        %v892 = vpack.c.bf16 %v860, %v860
        %v893 = vpack.c.bf16 %v861, %v861
        %v894 = vpack.c.bf16 %v862, %v862
        %v895 = vpack.c.bf16 %v863, %v863
        %v896 = vpack.c.bf16 %v864, %v864
        %v897 = vpack.c.bf16 %v865, %v865
        %v898 = vpack.c.bf16 %v866, %v866
        %v899 = vpack.c.bf16 %v867, %v867
        %v900 = vpack.c.bf16 %v868, %v868
        %v901 = vpack.c.bf16 %v869, %v869
        %v902 = vpack.c.bf16 %v870, %v870
        %v903 = vpack.c.bf16 %v871, %v871
        %v904 = vpack.c.bf16 %v872, %v872
        %v905 = vpack.c.bf16 %v873, %v873
        %v906 = vpack.c.bf16 %v874, %v874
        %v907 = vpack.c.bf16 %v875, %v875
        %v908 = vpack.c.bf16 %v876, %v876
        %v909 = vpack.c.bf16 %v877, %v877
        %v910 = vpack.c.bf16 %v878, %v878
        %v911 = vpack.c.bf16 %v879, %v879
        %v912 = vpack.c.bf16 %v880, %v880
        %v913 = vpack.c.bf16 %v881, %v881
        %v914 = vpack.c.bf16 %v882, %v882
        %v915 = vpack.c.bf16 %v883, %v883
        %v916 = vpack.c.bf16 %v884, %v884
        %v917 = vpack.c.bf16 %v885, %v885
        %v918 = vpack.c.bf16 %v886, %v886
        %v951 = vunpack.c.l.b16 %v887
        %v952 = vunpack.c.l.b16 %v888
        %v953 = vunpack.c.l.b16 %v889
        %v954 = vunpack.c.l.b16 %v890
        %v955 = vunpack.c.l.b16 %v891
        %v956 = vunpack.c.l.b16 %v892
        %v957 = vunpack.c.l.b16 %v893
        %v958 = vunpack.c.l.b16 %v894
        %v959 = vunpack.c.l.b16 %v895
        %v960 = vunpack.c.l.b16 %v896
        %v961 = vunpack.c.l.b16 %v897
        %v962 = vunpack.c.l.b16 %v898
        %v963 = vunpack.c.l.b16 %v899
        %v964 = vunpack.c.l.b16 %v900
        %v965 = vunpack.c.l.b16 %v901
        %v966 = vunpack.c.l.b16 %v902
        %v967 = vunpack.c.l.b16 %v903
        %v968 = vunpack.c.l.b16 %v904
        %v969 = vunpack.c.l.b16 %v905
        %v970 = vunpack.c.l.b16 %v906
        %v971 = vunpack.c.l.b16 %v907
        %v972 = vunpack.c.l.b16 %v908
        %v973 = vunpack.c.l.b16 %v909
        %v974 = vunpack.c.l.b16 %v910
        %v975 = vunpack.c.l.b16 %v911
        %v976 = vunpack.c.l.b16 %v912
        %v977 = vunpack.c.l.b16 %v913
        %v978 = vunpack.c.l.b16 %v914
        %v979 = vunpack.c.l.b16 %v915
        %v980 = vunpack.c.l.b16 %v916
        %v981 = vunpack.c.l.b16 %v917
        %v982 = vunpack.c.l.b16 %v918
        %v983 = vpack.c.b16 %v952, %v951
        %v984 = vpack.c.b16 %v954, %v953
        %v985 = vpack.c.b16 %v956, %v955
        %v986 = vpack.c.b16 %v958, %v957
        %v987 = vpack.c.b16 %v960, %v959
        %v988 = vpack.c.b16 %v962, %v961
        %v989 = vpack.c.b16 %v964, %v963
        %v990 = vpack.c.b16 %v966, %v965
        %v991 = vpack.c.b16 %v968, %v967
        %v992 = vpack.c.b16 %v970, %v969
        %v993 = vpack.c.b16 %v972, %v971
        %v994 = vpack.c.b16 %v974, %v973
        %v995 = vpack.c.b16 %v976, %v975
        %v996 = vpack.c.b16 %v978, %v977
        %v997 = vpack.c.b16 %v980, %v979
        %v998 = vpack.c.b16 %v982, %v981
        %v1000 = vshrl.u32 %v983, 16
        %v1002 = vrot.slane %v1000, 7
        %v1003 = vshll.u32 %v983, 16
        %v1005 = vor.u32 %v1002, %v1003
        %v1007 = vshrl.u32 %v984, 16
        %v1009 = vrot.slane %v1007, 7
        %v1010 = vshll.u32 %v984, 16
        %v1012 = vor.u32 %v1009, %v1010
        %v1014 = vshrl.u32 %v985, 16
        %v1016 = vrot.slane %v1014, 7
        %v1017 = vshll.u32 %v985, 16
        %v1019 = vor.u32 %v1016, %v1017
        %v1021 = vshrl.u32 %v986, 16
        %v1023 = vrot.slane %v1021, 7
        %v1024 = vshll.u32 %v986, 16
        %v1026 = vor.u32 %v1023, %v1024
        %v1028 = vshrl.u32 %v987, 16
        %v1030 = vrot.slane %v1028, 7
        %v1031 = vshll.u32 %v987, 16
        %v1033 = vor.u32 %v1030, %v1031
        %v1035 = vshrl.u32 %v988, 16
        %v1037 = vrot.slane %v1035, 7
        %v1038 = vshll.u32 %v988, 16
        %v1040 = vor.u32 %v1037, %v1038
        %v1042 = vshrl.u32 %v989, 16
        %v1044 = vrot.slane %v1042, 7
        %v1045 = vshll.u32 %v989, 16
        %v1047 = vor.u32 %v1044, %v1045
        %v1049 = vshrl.u32 %v990, 16
        %v1051 = vrot.slane %v1049, 7
        %v1052 = vshll.u32 %v990, 16
        %v1054 = vor.u32 %v1051, %v1052
        %v1056 = vshrl.u32 %v991, 16
        %v1058 = vrot.slane %v1056, 7
        %v1059 = vshll.u32 %v991, 16
        %v1061 = vor.u32 %v1058, %v1059
        %v1063 = vshrl.u32 %v992, 16
        %v1065 = vrot.slane %v1063, 7
        %v1066 = vshll.u32 %v992, 16
        %v1068 = vor.u32 %v1065, %v1066
        %v1070 = vshrl.u32 %v993, 16
        %v1072 = vrot.slane %v1070, 7
        %v1073 = vshll.u32 %v993, 16
        %v1075 = vor.u32 %v1072, %v1073
        %v1077 = vshrl.u32 %v994, 16
        %v1079 = vrot.slane %v1077, 7
        %v1080 = vshll.u32 %v994, 16
        %v1082 = vor.u32 %v1079, %v1080
        %v1084 = vshrl.u32 %v995, 16
        %v1086 = vrot.slane %v1084, 7
        %v1087 = vshll.u32 %v995, 16
        %v1089 = vor.u32 %v1086, %v1087
        %v1091 = vshrl.u32 %v996, 16
        %v1093 = vrot.slane %v1091, 7
        %v1094 = vshll.u32 %v996, 16
        %v1096 = vor.u32 %v1093, %v1094
        %v1098 = vshrl.u32 %v997, 16
        %v1100 = vrot.slane %v1098, 7
        %v1101 = vshll.u32 %v997, 16
        %v1103 = vor.u32 %v1100, %v1101
        %v1105 = vshrl.u32 %v998, 16
        %v1107 = vrot.slane %v1105, 7
        %v1108 = vshll.u32 %v998, 16
        %v1110 = vor.u32 %v1107, %v1108
        %vm1127 = vcmask 1040384
        %vm1128 = vsmask.f32 256
        %vm1129 = vmand %vm1127, %vm1128
        %v1130 = vsel %vm1129, 4286644096, %v1005
        %v1131 = vsel %vm1129, 4286644096, %v1012
        %v1132 = vsel %vm1129, 4286644096, %v1019
        %v1133 = vsel %vm1129, 4286644096, %v1026
        %v1134 = vsel %vm1129, 4286644096, %v1033
        %v1135 = vsel %vm1129, 4286644096, %v1040
        %v1136 = vsel %vm1129, 4286644096, %v1047
        %v1137 = vsel %vm1129, 4286644096, %v1054
        %v1138 = vsel %vm1129, 4286644096, %v1061
        %v1139 = vsel %vm1129, 4286644096, %v1068
        %v1140 = vsel %vm1129, 4286644096, %v1075
        %v1141 = vsel %vm1129, 4286644096, %v1082
        %v1142 = vsel %vm1129, 4286644096, %v1089
        %v1143 = vsel %vm1129, 4286644096, %v1096
        %v1144 = vsel %vm1129, 4286644096, %v1103
        %v1145 = vsel %vm1129, 4286644096, %v1110
        %v1146 = vunpack.c.l.bf16 %v887
        %v1147 = vunpack.c.l.bf16 %v888
        %v1148 = vunpack.c.l.bf16 %v889
        %v1149 = vunpack.c.l.bf16 %v890
        %v1150 = vunpack.c.l.bf16 %v891
        %v1151 = vunpack.c.l.bf16 %v892
        %v1152 = vunpack.c.l.bf16 %v893
        %v1153 = vunpack.c.l.bf16 %v894
        %v1154 = vunpack.c.l.bf16 %v895
        %v1155 = vunpack.c.l.bf16 %v896
        %v1156 = vunpack.c.l.bf16 %v897
        %v1157 = vunpack.c.l.bf16 %v898
        %v1158 = vunpack.c.l.bf16 %v899
        %v1159 = vunpack.c.l.bf16 %v900
        %v1160 = vunpack.c.l.bf16 %v901
        %v1161 = vunpack.c.l.bf16 %v902
        %v1162 = vunpack.c.l.bf16 %v903
        %v1163 = vunpack.c.l.bf16 %v904
        %v1164 = vunpack.c.l.bf16 %v905
        %v1165 = vunpack.c.l.bf16 %v906
        %v1166 = vunpack.c.l.bf16 %v907
        %v1167 = vunpack.c.l.bf16 %v908
        %v1168 = vunpack.c.l.bf16 %v909
        %v1169 = vunpack.c.l.bf16 %v910
        %v1170 = vunpack.c.l.bf16 %v911
        %v1171 = vunpack.c.l.bf16 %v912
        %v1172 = vunpack.c.l.bf16 %v913
        %v1173 = vunpack.c.l.bf16 %v914
        %v1174 = vunpack.c.l.bf16 %v915
        %v1175 = vunpack.c.l.bf16 %v916
        %v1176 = vunpack.c.l.bf16 %v917
        %v1177 = vunpack.c.l.bf16 %v918
        %v1178 = vunpack.c.l.bf16 %v1130
        %v1179 = vunpack.c.h.bf16 %v1130
        %v1180 = vunpack.c.l.bf16 %v1131
        %v1181 = vunpack.c.h.bf16 %v1131
        %v1182 = vunpack.c.l.bf16 %v1132
        %v1183 = vunpack.c.h.bf16 %v1132
        %v1184 = vunpack.c.l.bf16 %v1133
        %v1185 = vunpack.c.h.bf16 %v1133
        %v1186 = vunpack.c.l.bf16 %v1134
        %v1187 = vunpack.c.h.bf16 %v1134
        %v1188 = vunpack.c.l.bf16 %v1135
        %v1189 = vunpack.c.h.bf16 %v1135
        %v1190 = vunpack.c.l.bf16 %v1136
        %v1191 = vunpack.c.h.bf16 %v1136
        %v1192 = vunpack.c.l.bf16 %v1137
        %v1193 = vunpack.c.h.bf16 %v1137
        %v1194 = vunpack.c.l.bf16 %v1138
        %v1195 = vunpack.c.h.bf16 %v1138
        %v1196 = vunpack.c.l.bf16 %v1139
        %v1197 = vunpack.c.h.bf16 %v1139
        %v1198 = vunpack.c.l.bf16 %v1140
        %v1199 = vunpack.c.h.bf16 %v1140
        %v1200 = vunpack.c.l.bf16 %v1141
        %v1201 = vunpack.c.h.bf16 %v1141
        %v1202 = vunpack.c.l.bf16 %v1142
        %v1203 = vunpack.c.h.bf16 %v1142
        %v1204 = vunpack.c.l.bf16 %v1143
        %v1205 = vunpack.c.h.bf16 %v1143
        %v1206 = vunpack.c.l.bf16 %v1144
        %v1207 = vunpack.c.h.bf16 %v1144
        %v1208 = vunpack.c.l.bf16 %v1145
        %v1209 = vunpack.c.h.bf16 %v1145
        %v1210 = vmax.f32 %v1146, %v1178
        %v1211 = vmax.f32 %v1147, %v1179
        %v1212 = vmax.f32 %v1148, %v1180
        %v1213 = vmax.f32 %v1149, %v1181
        %v1214 = vmax.f32 %v1150, %v1182
        %v1215 = vmax.f32 %v1151, %v1183
        %v1216 = vmax.f32 %v1152, %v1184
        %v1217 = vmax.f32 %v1153, %v1185
        %v1218 = vmax.f32 %v1154, %v1186
        %v1219 = vmax.f32 %v1155, %v1187
        %v1220 = vmax.f32 %v1156, %v1188
        %v1221 = vmax.f32 %v1157, %v1189
        %v1222 = vmax.f32 %v1158, %v1190
        %v1223 = vmax.f32 %v1159, %v1191
        %v1224 = vmax.f32 %v1160, %v1192
        %v1225 = vmax.f32 %v1161, %v1193
        %v1226 = vmax.f32 %v1162, %v1194
        %v1227 = vmax.f32 %v1163, %v1195
        %v1228 = vmax.f32 %v1164, %v1196
        %v1229 = vmax.f32 %v1165, %v1197
        %v1230 = vmax.f32 %v1166, %v1198
        %v1231 = vmax.f32 %v1167, %v1199
        %v1232 = vmax.f32 %v1168, %v1200
        %v1233 = vmax.f32 %v1169, %v1201
        %v1234 = vmax.f32 %v1170, %v1202
        %v1235 = vmax.f32 %v1171, %v1203
        %v1236 = vmax.f32 %v1172, %v1204
        %v1237 = vmax.f32 %v1173, %v1205
        %v1238 = vmax.f32 %v1174, %v1206
        %v1239 = vmax.f32 %v1175, %v1207
        %v1240 = vmax.f32 %v1176, %v1208
        %v1241 = vmax.f32 %v1177, %v1209
        %v1242 = vpack.c.bf16 %v1210, %v1210
        %v1243 = vpack.c.bf16 %v1211, %v1211
        %v1244 = vpack.c.bf16 %v1212, %v1212
        %v1245 = vpack.c.bf16 %v1213, %v1213
        %v1246 = vpack.c.bf16 %v1214, %v1214
        %v1247 = vpack.c.bf16 %v1215, %v1215
        %v1248 = vpack.c.bf16 %v1216, %v1216
        %v1249 = vpack.c.bf16 %v1217, %v1217
        %v1250 = vpack.c.bf16 %v1218, %v1218
        %v1251 = vpack.c.bf16 %v1219, %v1219
        %v1252 = vpack.c.bf16 %v1220, %v1220
        %v1253 = vpack.c.bf16 %v1221, %v1221
        %v1254 = vpack.c.bf16 %v1222, %v1222
        %v1255 = vpack.c.bf16 %v1223, %v1223
        %v1256 = vpack.c.bf16 %v1224, %v1224
        %v1257 = vpack.c.bf16 %v1225, %v1225
        %v1258 = vpack.c.bf16 %v1226, %v1226
        %v1259 = vpack.c.bf16 %v1227, %v1227
        %v1260 = vpack.c.bf16 %v1228, %v1228
        %v1261 = vpack.c.bf16 %v1229, %v1229
        %v1262 = vpack.c.bf16 %v1230, %v1230
        %v1263 = vpack.c.bf16 %v1231, %v1231
        %v1264 = vpack.c.bf16 %v1232, %v1232
        %v1265 = vpack.c.bf16 %v1233, %v1233
        %v1266 = vpack.c.bf16 %v1234, %v1234
        %v1267 = vpack.c.bf16 %v1235, %v1235
        %v1268 = vpack.c.bf16 %v1236, %v1236
        %v1269 = vpack.c.bf16 %v1237, %v1237
        %v1270 = vpack.c.bf16 %v1238, %v1238
        %v1271 = vpack.c.bf16 %v1239, %v1239
        %v1272 = vpack.c.bf16 %v1240, %v1240
        %v1273 = vpack.c.bf16 %v1241, %v1241
        %v1274 = vrot.slane %v983, 7
        %v1275 = vrot.slane %v984, 7
        %v1276 = vrot.slane %v985, 7
        %v1277 = vrot.slane %v986, 7
        %v1278 = vrot.slane %v987, 7
        %v1279 = vrot.slane %v988, 7
        %v1280 = vrot.slane %v989, 7
        %v1281 = vrot.slane %v990, 7
        %v1282 = vrot.slane %v991, 7
        %v1283 = vrot.slane %v992, 7
        %v1284 = vrot.slane %v993, 7
        %v1285 = vrot.slane %v994, 7
        %v1286 = vrot.slane %v995, 7
        %v1287 = vrot.slane %v996, 7
        %v1288 = vrot.slane %v997, 7
        %v1289 = vrot.slane %v998, 7
        %vm1290 = vcmask 1040384
        %v1293 = vsel %vm1290, 4286644096, %v1274
        %v1296 = vsel %vm1290, 4286644096, %v1275
        %v1299 = vsel %vm1290, 4286644096, %v1276
        %v1302 = vsel %vm1290, 4286644096, %v1277
        %v1305 = vsel %vm1290, 4286644096, %v1278
        %v1308 = vsel %vm1290, 4286644096, %v1279
        %v1311 = vsel %vm1290, 4286644096, %v1280
        %v1314 = vsel %vm1290, 4286644096, %v1281
        %v1317 = vsel %vm1290, 4286644096, %v1282
        %v1320 = vsel %vm1290, 4286644096, %v1283
        %v1323 = vsel %vm1290, 4286644096, %v1284
        %v1326 = vsel %vm1290, 4286644096, %v1285
        %v1329 = vsel %vm1290, 4286644096, %v1286
        %v1332 = vsel %vm1290, 4286644096, %v1287
        %v1335 = vsel %vm1290, 4286644096, %v1288
        %v1338 = vsel %vm1290, 4286644096, %v1289
        %v1340 = vunpack.c.l.bf16 %v1242
        %v1341 = vunpack.c.l.bf16 %v1243
        %v1342 = vunpack.c.l.bf16 %v1244
        %v1343 = vunpack.c.l.bf16 %v1245
        %v1344 = vunpack.c.l.bf16 %v1246
        %v1345 = vunpack.c.l.bf16 %v1247
        %v1346 = vunpack.c.l.bf16 %v1248
        %v1347 = vunpack.c.l.bf16 %v1249
        %v1348 = vunpack.c.l.bf16 %v1250
        %v1349 = vunpack.c.l.bf16 %v1251
        %v1350 = vunpack.c.l.bf16 %v1252
        %v1351 = vunpack.c.l.bf16 %v1253
        %v1352 = vunpack.c.l.bf16 %v1254
        %v1353 = vunpack.c.l.bf16 %v1255
        %v1354 = vunpack.c.l.bf16 %v1256
        %v1355 = vunpack.c.l.bf16 %v1257
        %v1356 = vunpack.c.l.bf16 %v1258
        %v1357 = vunpack.c.l.bf16 %v1259
        %v1358 = vunpack.c.l.bf16 %v1260
        %v1359 = vunpack.c.l.bf16 %v1261
        %v1360 = vunpack.c.l.bf16 %v1262
        %v1361 = vunpack.c.l.bf16 %v1263
        %v1362 = vunpack.c.l.bf16 %v1264
        %v1363 = vunpack.c.l.bf16 %v1265
        %v1364 = vunpack.c.l.bf16 %v1266
        %v1365 = vunpack.c.l.bf16 %v1267
        %v1366 = vunpack.c.l.bf16 %v1268
        %v1367 = vunpack.c.l.bf16 %v1269
        %v1368 = vunpack.c.l.bf16 %v1270
        %v1369 = vunpack.c.l.bf16 %v1271
        %v1370 = vunpack.c.l.bf16 %v1272
        %v1371 = vunpack.c.l.bf16 %v1273
        %v1372 = vunpack.c.l.bf16 %v1293
        %v1373 = vunpack.c.h.bf16 %v1293
        %v1374 = vunpack.c.l.bf16 %v1296
        %v1375 = vunpack.c.h.bf16 %v1296
        %v1376 = vunpack.c.l.bf16 %v1299
        %v1377 = vunpack.c.h.bf16 %v1299
        %v1378 = vunpack.c.l.bf16 %v1302
        %v1379 = vunpack.c.h.bf16 %v1302
        %v1380 = vunpack.c.l.bf16 %v1305
        %v1381 = vunpack.c.h.bf16 %v1305
        %v1382 = vunpack.c.l.bf16 %v1308
        %v1383 = vunpack.c.h.bf16 %v1308
        %v1384 = vunpack.c.l.bf16 %v1311
        %v1385 = vunpack.c.h.bf16 %v1311
        %v1386 = vunpack.c.l.bf16 %v1314
        %v1387 = vunpack.c.h.bf16 %v1314
        %v1388 = vunpack.c.l.bf16 %v1317
        %v1389 = vunpack.c.h.bf16 %v1317
        %v1390 = vunpack.c.l.bf16 %v1320
        %v1391 = vunpack.c.h.bf16 %v1320
        %v1392 = vunpack.c.l.bf16 %v1323
        %v1393 = vunpack.c.h.bf16 %v1323
        %v1394 = vunpack.c.l.bf16 %v1326
        %v1395 = vunpack.c.h.bf16 %v1326
        %v1396 = vunpack.c.l.bf16 %v1329
        %v1397 = vunpack.c.h.bf16 %v1329
        %v1398 = vunpack.c.l.bf16 %v1332
        %v1399 = vunpack.c.h.bf16 %v1332
        %v1400 = vunpack.c.l.bf16 %v1335
        %v1401 = vunpack.c.h.bf16 %v1335
        %v1402 = vunpack.c.l.bf16 %v1338
        %v1403 = vunpack.c.h.bf16 %v1338
        %v1404 = vmax.f32 %v1340, %v1372
        %v1405 = vmax.f32 %v1341, %v1373
        %v1406 = vmax.f32 %v1342, %v1374
        %v1407 = vmax.f32 %v1343, %v1375
        %v1408 = vmax.f32 %v1344, %v1376
        %v1409 = vmax.f32 %v1345, %v1377
        %v1410 = vmax.f32 %v1346, %v1378
        %v1411 = vmax.f32 %v1347, %v1379
        %v1412 = vmax.f32 %v1348, %v1380
        %v1413 = vmax.f32 %v1349, %v1381
        %v1414 = vmax.f32 %v1350, %v1382
        %v1415 = vmax.f32 %v1351, %v1383
        %v1416 = vmax.f32 %v1352, %v1384
        %v1417 = vmax.f32 %v1353, %v1385
        %v1418 = vmax.f32 %v1354, %v1386
        %v1419 = vmax.f32 %v1355, %v1387
        %v1420 = vmax.f32 %v1356, %v1388
        %v1421 = vmax.f32 %v1357, %v1389
        %v1422 = vmax.f32 %v1358, %v1390
        %v1423 = vmax.f32 %v1359, %v1391
        %v1424 = vmax.f32 %v1360, %v1392
        %v1425 = vmax.f32 %v1361, %v1393
        %v1426 = vmax.f32 %v1362, %v1394
        %v1427 = vmax.f32 %v1363, %v1395
        %v1428 = vmax.f32 %v1364, %v1396
        %v1429 = vmax.f32 %v1365, %v1397
        %v1430 = vmax.f32 %v1366, %v1398
        %v1431 = vmax.f32 %v1367, %v1399
        %v1432 = vmax.f32 %v1368, %v1400
        %v1433 = vmax.f32 %v1369, %v1401
        %v1434 = vmax.f32 %v1370, %v1402
        %v1435 = vmax.f32 %v1371, %v1403
        %v1436 = vpack.c.bf16 %v1404, %v1404
        %v1437 = vpack.c.bf16 %v1405, %v1405
        %v1438 = vpack.c.bf16 %v1406, %v1406
        %v1439 = vpack.c.bf16 %v1407, %v1407
        %v1440 = vpack.c.bf16 %v1408, %v1408
        %v1441 = vpack.c.bf16 %v1409, %v1409
        %v1442 = vpack.c.bf16 %v1410, %v1410
        %v1443 = vpack.c.bf16 %v1411, %v1411
        %v1444 = vpack.c.bf16 %v1412, %v1412
        %v1445 = vpack.c.bf16 %v1413, %v1413
        %v1446 = vpack.c.bf16 %v1414, %v1414
        %v1447 = vpack.c.bf16 %v1415, %v1415
        %v1448 = vpack.c.bf16 %v1416, %v1416
        %v1449 = vpack.c.bf16 %v1417, %v1417
        %v1450 = vpack.c.bf16 %v1418, %v1418
        %v1451 = vpack.c.bf16 %v1419, %v1419
        %v1452 = vpack.c.bf16 %v1420, %v1420
        %v1453 = vpack.c.bf16 %v1421, %v1421
        %v1454 = vpack.c.bf16 %v1422, %v1422
        %v1455 = vpack.c.bf16 %v1423, %v1423
        %v1456 = vpack.c.bf16 %v1424, %v1424
        %v1457 = vpack.c.bf16 %v1425, %v1425
        %v1458 = vpack.c.bf16 %v1426, %v1426
        %v1459 = vpack.c.bf16 %v1427, %v1427
        %v1460 = vpack.c.bf16 %v1428, %v1428
        %v1461 = vpack.c.bf16 %v1429, %v1429
        %v1462 = vpack.c.bf16 %v1430, %v1430
        %v1463 = vpack.c.bf16 %v1431, %v1431
        %v1464 = vpack.c.bf16 %v1432, %v1432
        %v1465 = vpack.c.bf16 %v1433, %v1433
        %v1466 = vpack.c.bf16 %v1434, %v1434
        %v1467 = vpack.c.bf16 %v1435, %v1435
        %v1468 = vrot.slane %v1003, 1
        %v1469 = vor.u32 %v1000, %v1468
        %v1470 = vrot.slane %v1010, 1
        %v1471 = vor.u32 %v1007, %v1470
        %v1472 = vrot.slane %v1017, 1
        %v1473 = vor.u32 %v1014, %v1472
        %v1474 = vrot.slane %v1024, 1
        %v1475 = vor.u32 %v1021, %v1474
        %v1476 = vrot.slane %v1031, 1
        %v1477 = vor.u32 %v1028, %v1476
        %v1478 = vrot.slane %v1038, 1
        %v1479 = vor.u32 %v1035, %v1478
        %v1480 = vrot.slane %v1045, 1
        %v1481 = vor.u32 %v1042, %v1480
        %v1482 = vrot.slane %v1052, 1
        %v1483 = vor.u32 %v1049, %v1482
        %v1484 = vrot.slane %v1059, 1
        %v1485 = vor.u32 %v1056, %v1484
        %v1486 = vrot.slane %v1066, 1
        %v1487 = vor.u32 %v1063, %v1486
        %v1488 = vrot.slane %v1073, 1
        %v1489 = vor.u32 %v1070, %v1488
        %v1490 = vrot.slane %v1080, 1
        %v1491 = vor.u32 %v1077, %v1490
        %v1492 = vrot.slane %v1087, 1
        %v1493 = vor.u32 %v1084, %v1492
        %v1494 = vrot.slane %v1094, 1
        %v1495 = vor.u32 %v1091, %v1494
        %v1496 = vrot.slane %v1101, 1
        %v1497 = vor.u32 %v1098, %v1496
        %v1498 = vrot.slane %v1108, 1
        %v1499 = vor.u32 %v1105, %v1498
        %vm1516 = vcmask 1047552
        %vm1517 = vsmask.f32 7424
        %vm1518 = vmand %vm1516, %vm1517
        %v1519 = vsel %vm1518, %v1469, 4286644096
        %v1520 = vsel %vm1518, %v1471, 4286644096
        %v1521 = vsel %vm1518, %v1473, 4286644096
        %v1522 = vsel %vm1518, %v1475, 4286644096
        %v1523 = vsel %vm1518, %v1477, 4286644096
        %v1524 = vsel %vm1518, %v1479, 4286644096
        %v1525 = vsel %vm1518, %v1481, 4286644096
        %v1526 = vsel %vm1518, %v1483, 4286644096
        %v1527 = vsel %vm1518, %v1485, 4286644096
        %v1528 = vsel %vm1518, %v1487, 4286644096
        %v1529 = vsel %vm1518, %v1489, 4286644096
        %v1530 = vsel %vm1518, %v1491, 4286644096
        %v1531 = vsel %vm1518, %v1493, 4286644096
        %v1532 = vsel %vm1518, %v1495, 4286644096
        %v1533 = vsel %vm1518, %v1497, 4286644096
        %v1534 = vsel %vm1518, %v1499, 4286644096
        %v1535 = vunpack.c.l.bf16 %v1436
        %v1536 = vunpack.c.l.bf16 %v1437
        %v1537 = vunpack.c.l.bf16 %v1438
        %v1538 = vunpack.c.l.bf16 %v1439
        %v1539 = vunpack.c.l.bf16 %v1440
        %v1540 = vunpack.c.l.bf16 %v1441
        %v1541 = vunpack.c.l.bf16 %v1442
        %v1542 = vunpack.c.l.bf16 %v1443
        %v1543 = vunpack.c.l.bf16 %v1444
        %v1544 = vunpack.c.l.bf16 %v1445
        %v1545 = vunpack.c.l.bf16 %v1446
        %v1546 = vunpack.c.l.bf16 %v1447
        %v1547 = vunpack.c.l.bf16 %v1448
        %v1548 = vunpack.c.l.bf16 %v1449
        %v1549 = vunpack.c.l.bf16 %v1450
        %v1550 = vunpack.c.l.bf16 %v1451
        %v1551 = vunpack.c.l.bf16 %v1452
        %v1552 = vunpack.c.l.bf16 %v1453
        %v1553 = vunpack.c.l.bf16 %v1454
        %v1554 = vunpack.c.l.bf16 %v1455
        %v1555 = vunpack.c.l.bf16 %v1456
        %v1556 = vunpack.c.l.bf16 %v1457
        %v1557 = vunpack.c.l.bf16 %v1458
        %v1558 = vunpack.c.l.bf16 %v1459
        %v1559 = vunpack.c.l.bf16 %v1460
        %v1560 = vunpack.c.l.bf16 %v1461
        %v1561 = vunpack.c.l.bf16 %v1462
        %v1562 = vunpack.c.l.bf16 %v1463
        %v1563 = vunpack.c.l.bf16 %v1464
        %v1564 = vunpack.c.l.bf16 %v1465
        %v1565 = vunpack.c.l.bf16 %v1466
        %v1566 = vunpack.c.l.bf16 %v1467
        %v1567 = vunpack.c.l.bf16 %v1519
        %v1568 = vunpack.c.h.bf16 %v1519
        %v1569 = vunpack.c.l.bf16 %v1520
        %v1570 = vunpack.c.h.bf16 %v1520
        %v1571 = vunpack.c.l.bf16 %v1521
        %v1572 = vunpack.c.h.bf16 %v1521
        %v1573 = vunpack.c.l.bf16 %v1522
        %v1574 = vunpack.c.h.bf16 %v1522
        %v1575 = vunpack.c.l.bf16 %v1523
        %v1576 = vunpack.c.h.bf16 %v1523
        %v1577 = vunpack.c.l.bf16 %v1524
        %v1578 = vunpack.c.h.bf16 %v1524
        %v1579 = vunpack.c.l.bf16 %v1525
        %v1580 = vunpack.c.h.bf16 %v1525
        %v1581 = vunpack.c.l.bf16 %v1526
        %v1582 = vunpack.c.h.bf16 %v1526
        %v1583 = vunpack.c.l.bf16 %v1527
        %v1584 = vunpack.c.h.bf16 %v1527
        %v1585 = vunpack.c.l.bf16 %v1528
        %v1586 = vunpack.c.h.bf16 %v1528
        %v1587 = vunpack.c.l.bf16 %v1529
        %v1588 = vunpack.c.h.bf16 %v1529
        %v1589 = vunpack.c.l.bf16 %v1530
        %v1590 = vunpack.c.h.bf16 %v1530
        %v1591 = vunpack.c.l.bf16 %v1531
        %v1592 = vunpack.c.h.bf16 %v1531
        %v1593 = vunpack.c.l.bf16 %v1532
        %v1594 = vunpack.c.h.bf16 %v1532
        %v1595 = vunpack.c.l.bf16 %v1533
        %v1596 = vunpack.c.h.bf16 %v1533
        %v1597 = vunpack.c.l.bf16 %v1534
        %v1598 = vunpack.c.h.bf16 %v1534
        %v1599 = vmax.f32 %v1535, %v1567
        %v1600 = vmax.f32 %v1536, %v1568
        %v1601 = vmax.f32 %v1537, %v1569
        %v1602 = vmax.f32 %v1538, %v1570
        %v1603 = vmax.f32 %v1539, %v1571
        %v1604 = vmax.f32 %v1540, %v1572
        %v1605 = vmax.f32 %v1541, %v1573
        %v1606 = vmax.f32 %v1542, %v1574
        %v1607 = vmax.f32 %v1543, %v1575
        %v1608 = vmax.f32 %v1544, %v1576
        %v1609 = vmax.f32 %v1545, %v1577
        %v1610 = vmax.f32 %v1546, %v1578
        %v1611 = vmax.f32 %v1547, %v1579
        %v1612 = vmax.f32 %v1548, %v1580
        %v1613 = vmax.f32 %v1549, %v1581
        %v1614 = vmax.f32 %v1550, %v1582
        %v1615 = vmax.f32 %v1551, %v1583
        %v1616 = vmax.f32 %v1552, %v1584
        %v1617 = vmax.f32 %v1553, %v1585
        %v1618 = vmax.f32 %v1554, %v1586
        %v1619 = vmax.f32 %v1555, %v1587
        %v1620 = vmax.f32 %v1556, %v1588
        %v1621 = vmax.f32 %v1557, %v1589
        %v1622 = vmax.f32 %v1558, %v1590
        %v1623 = vmax.f32 %v1559, %v1591
        %v1624 = vmax.f32 %v1560, %v1592
        %v1625 = vmax.f32 %v1561, %v1593
        %v1626 = vmax.f32 %v1562, %v1594
        %v1627 = vmax.f32 %v1563, %v1595
        %v1628 = vmax.f32 %v1564, %v1596
        %v1629 = vmax.f32 %v1565, %v1597
        %v1630 = vmax.f32 %v1566, %v1598
        %v1631 = vpack.c.bf16 %v1599, %v1599
        %v1632 = vpack.c.bf16 %v1600, %v1600
        %v1633 = vpack.c.bf16 %v1601, %v1601
        %v1634 = vpack.c.bf16 %v1602, %v1602
        %v1635 = vpack.c.bf16 %v1603, %v1603
        %v1636 = vpack.c.bf16 %v1604, %v1604
        %v1637 = vpack.c.bf16 %v1605, %v1605
        %v1638 = vpack.c.bf16 %v1606, %v1606
        %v1639 = vpack.c.bf16 %v1607, %v1607
        %v1640 = vpack.c.bf16 %v1608, %v1608
        %v1641 = vpack.c.bf16 %v1609, %v1609
        %v1642 = vpack.c.bf16 %v1610, %v1610
        %v1643 = vpack.c.bf16 %v1611, %v1611
        %v1644 = vpack.c.bf16 %v1612, %v1612
        %v1645 = vpack.c.bf16 %v1613, %v1613
        %v1646 = vpack.c.bf16 %v1614, %v1614
        %v1647 = vpack.c.bf16 %v1615, %v1615
        %v1648 = vpack.c.bf16 %v1616, %v1616
        %v1649 = vpack.c.bf16 %v1617, %v1617
        %v1650 = vpack.c.bf16 %v1618, %v1618
        %v1651 = vpack.c.bf16 %v1619, %v1619
        %v1652 = vpack.c.bf16 %v1620, %v1620
        %v1653 = vpack.c.bf16 %v1621, %v1621
        %v1654 = vpack.c.bf16 %v1622, %v1622
        %v1655 = vpack.c.bf16 %v1623, %v1623
        %v1656 = vpack.c.bf16 %v1624, %v1624
        %v1657 = vpack.c.bf16 %v1625, %v1625
        %v1658 = vpack.c.bf16 %v1626, %v1626
        %v1659 = vpack.c.bf16 %v1627, %v1627
        %v1660 = vpack.c.bf16 %v1628, %v1628
        %v1661 = vpack.c.bf16 %v1629, %v1629
        %v1662 = vpack.c.bf16 %v1630, %v1630
        %v1663 = vrot.slane %v983, 1
        %v1664 = vrot.slane %v984, 1
        %v1665 = vrot.slane %v985, 1
        %v1666 = vrot.slane %v986, 1
        %v1667 = vrot.slane %v987, 1
        %v1668 = vrot.slane %v988, 1
        %v1669 = vrot.slane %v989, 1
        %v1670 = vrot.slane %v990, 1
        %v1671 = vrot.slane %v991, 1
        %v1672 = vrot.slane %v992, 1
        %v1673 = vrot.slane %v993, 1
        %v1674 = vrot.slane %v994, 1
        %v1675 = vrot.slane %v995, 1
        %v1676 = vrot.slane %v996, 1
        %v1677 = vrot.slane %v997, 1
        %v1678 = vrot.slane %v998, 1
        %vm1679 = vcmask 1046528
        %v1681 = vsel %vm1679, %v1663, 4286644096
        %v1684 = vsel %vm1679, %v1664, 4286644096
        %v1687 = vsel %vm1679, %v1665, 4286644096
        %v1690 = vsel %vm1679, %v1666, 4286644096
        %v1693 = vsel %vm1679, %v1667, 4286644096
        %v1696 = vsel %vm1679, %v1668, 4286644096
        %v1699 = vsel %vm1679, %v1669, 4286644096
        %v1702 = vsel %vm1679, %v1670, 4286644096
        %v1705 = vsel %vm1679, %v1671, 4286644096
        %v1708 = vsel %vm1679, %v1672, 4286644096
        %v1711 = vsel %vm1679, %v1673, 4286644096
        %v1714 = vsel %vm1679, %v1674, 4286644096
        %v1717 = vsel %vm1679, %v1675, 4286644096
        %v1720 = vsel %vm1679, %v1676, 4286644096
        %v1723 = vsel %vm1679, %v1677, 4286644096
        %v1726 = vsel %vm1679, %v1678, 4286644096
        %v1728 = vunpack.c.l.bf16 %v1631
        %v1729 = vunpack.c.l.bf16 %v1632
        %v1730 = vunpack.c.l.bf16 %v1633
        %v1731 = vunpack.c.l.bf16 %v1634
        %v1732 = vunpack.c.l.bf16 %v1635
        %v1733 = vunpack.c.l.bf16 %v1636
        %v1734 = vunpack.c.l.bf16 %v1637
        %v1735 = vunpack.c.l.bf16 %v1638
        %v1736 = vunpack.c.l.bf16 %v1639
        %v1737 = vunpack.c.l.bf16 %v1640
        %v1738 = vunpack.c.l.bf16 %v1641
        %v1739 = vunpack.c.l.bf16 %v1642
        %v1740 = vunpack.c.l.bf16 %v1643
        %v1741 = vunpack.c.l.bf16 %v1644
        %v1742 = vunpack.c.l.bf16 %v1645
        %v1743 = vunpack.c.l.bf16 %v1646
        %v1744 = vunpack.c.l.bf16 %v1647
        %v1745 = vunpack.c.l.bf16 %v1648
        %v1746 = vunpack.c.l.bf16 %v1649
        %v1747 = vunpack.c.l.bf16 %v1650
        %v1748 = vunpack.c.l.bf16 %v1651
        %v1749 = vunpack.c.l.bf16 %v1652
        %v1750 = vunpack.c.l.bf16 %v1653
        %v1751 = vunpack.c.l.bf16 %v1654
        %v1752 = vunpack.c.l.bf16 %v1655
        %v1753 = vunpack.c.l.bf16 %v1656
        %v1754 = vunpack.c.l.bf16 %v1657
        %v1755 = vunpack.c.l.bf16 %v1658
        %v1756 = vunpack.c.l.bf16 %v1659
        %v1757 = vunpack.c.l.bf16 %v1660
        %v1758 = vunpack.c.l.bf16 %v1661
        %v1759 = vunpack.c.l.bf16 %v1662
        %v1760 = vunpack.c.l.bf16 %v1681
        %v1761 = vunpack.c.h.bf16 %v1681
        %v1762 = vunpack.c.l.bf16 %v1684
        %v1763 = vunpack.c.h.bf16 %v1684
        %v1764 = vunpack.c.l.bf16 %v1687
        %v1765 = vunpack.c.h.bf16 %v1687
        %v1766 = vunpack.c.l.bf16 %v1690
        %v1767 = vunpack.c.h.bf16 %v1690
        %v1768 = vunpack.c.l.bf16 %v1693
        %v1769 = vunpack.c.h.bf16 %v1693
        %v1770 = vunpack.c.l.bf16 %v1696
        %v1771 = vunpack.c.h.bf16 %v1696
        %v1772 = vunpack.c.l.bf16 %v1699
        %v1773 = vunpack.c.h.bf16 %v1699
        %v1774 = vunpack.c.l.bf16 %v1702
        %v1775 = vunpack.c.h.bf16 %v1702
        %v1776 = vunpack.c.l.bf16 %v1705
        %v1777 = vunpack.c.h.bf16 %v1705
        %v1778 = vunpack.c.l.bf16 %v1708
        %v1779 = vunpack.c.h.bf16 %v1708
        %v1780 = vunpack.c.l.bf16 %v1711
        %v1781 = vunpack.c.h.bf16 %v1711
        %v1782 = vunpack.c.l.bf16 %v1714
        %v1783 = vunpack.c.h.bf16 %v1714
        %v1784 = vunpack.c.l.bf16 %v1717
        %v1785 = vunpack.c.h.bf16 %v1717
        %v1786 = vunpack.c.l.bf16 %v1720
        %v1787 = vunpack.c.h.bf16 %v1720
        %v1788 = vunpack.c.l.bf16 %v1723
        %v1789 = vunpack.c.h.bf16 %v1723
        %v1790 = vunpack.c.l.bf16 %v1726
        %v1791 = vunpack.c.h.bf16 %v1726
        %v1792 = vmax.f32 %v1728, %v1760
        %v1793 = vmax.f32 %v1729, %v1761
        %v1794 = vmax.f32 %v1730, %v1762
        %v1795 = vmax.f32 %v1731, %v1763
        %v1796 = vmax.f32 %v1732, %v1764
        %v1797 = vmax.f32 %v1733, %v1765
        %v1798 = vmax.f32 %v1734, %v1766
        %v1799 = vmax.f32 %v1735, %v1767
        %v1800 = vmax.f32 %v1736, %v1768
        %v1801 = vmax.f32 %v1737, %v1769
        %v1802 = vmax.f32 %v1738, %v1770
        %v1803 = vmax.f32 %v1739, %v1771
        %v1804 = vmax.f32 %v1740, %v1772
        %v1805 = vmax.f32 %v1741, %v1773
        %v1806 = vmax.f32 %v1742, %v1774
        %v1807 = vmax.f32 %v1743, %v1775
        %v1808 = vmax.f32 %v1744, %v1776
        %v1809 = vmax.f32 %v1745, %v1777
        %v1810 = vmax.f32 %v1746, %v1778
        %v1811 = vmax.f32 %v1747, %v1779
        %v1812 = vmax.f32 %v1748, %v1780
        %v1813 = vmax.f32 %v1749, %v1781
        %v1814 = vmax.f32 %v1750, %v1782
        %v1815 = vmax.f32 %v1751, %v1783
        %v1816 = vmax.f32 %v1752, %v1784
        %v1817 = vmax.f32 %v1753, %v1785
        %v1818 = vmax.f32 %v1754, %v1786
        %v1819 = vmax.f32 %v1755, %v1787
        %v1820 = vmax.f32 %v1756, %v1788
        %v1821 = vmax.f32 %v1757, %v1789
        %v1822 = vmax.f32 %v1758, %v1790
        %v1823 = vmax.f32 %v1759, %v1791
        %v1824 = vpack.c.bf16 %v1792, %v1792
        %v1825 = vpack.c.bf16 %v1793, %v1793
        %v1826 = vpack.c.bf16 %v1794, %v1794
        %v1827 = vpack.c.bf16 %v1795, %v1795
        %v1828 = vpack.c.bf16 %v1796, %v1796
        %v1829 = vpack.c.bf16 %v1797, %v1797
        %v1830 = vpack.c.bf16 %v1798, %v1798
        %v1831 = vpack.c.bf16 %v1799, %v1799
        %v1832 = vpack.c.bf16 %v1800, %v1800
        %v1833 = vpack.c.bf16 %v1801, %v1801
        %v1834 = vpack.c.bf16 %v1802, %v1802
        %v1835 = vpack.c.bf16 %v1803, %v1803
        %v1836 = vpack.c.bf16 %v1804, %v1804
        %v1837 = vpack.c.bf16 %v1805, %v1805
        %v1838 = vpack.c.bf16 %v1806, %v1806
        %v1839 = vpack.c.bf16 %v1807, %v1807
        %v1840 = vpack.c.bf16 %v1808, %v1808
        %v1841 = vpack.c.bf16 %v1809, %v1809
        %v1842 = vpack.c.bf16 %v1810, %v1810
        %v1843 = vpack.c.bf16 %v1811, %v1811
        %v1844 = vpack.c.bf16 %v1812, %v1812
        %v1845 = vpack.c.bf16 %v1813, %v1813
        %v1846 = vpack.c.bf16 %v1814, %v1814
        %v1847 = vpack.c.bf16 %v1815, %v1815
        %v1848 = vpack.c.bf16 %v1816, %v1816
        %v1849 = vpack.c.bf16 %v1817, %v1817
        %v1850 = vpack.c.bf16 %v1818, %v1818
        %v1851 = vpack.c.bf16 %v1819, %v1819
        %v1852 = vpack.c.bf16 %v1820, %v1820
        %v1853 = vpack.c.bf16 %v1821, %v1821
        %v1854 = vpack.c.bf16 %v1822, %v1822
        %v1855 = vpack.c.bf16 %v1823, %v1823
        %1856 = vst [vmem:[%s211] sm:$0xf] %v1824
        %1857 = vst [vmem:[%s211 + $0x4] sm:$0xf] %v1825
        %1858 = vst [vmem:[%s211 + $0x8] sm:$0xf] %v1826
        %1859 = vst [vmem:[%s211 + $0xc] sm:$0xf] %v1827
        %1860 = vst [vmem:[%s211 + $0x10] sm:$0xf] %v1828
        %1861 = vst [vmem:[%s211 + $0x14] sm:$0xf] %v1829
        %1862 = vst [vmem:[%s211 + $0x18] sm:$0xf] %v1830
        %1863 = vst [vmem:[%s211 + $0x1c] sm:$0xf] %v1831
        %1864 = vst [vmem:[%s211 + $0x20] sm:$0xf] %v1832
        %1865 = vst [vmem:[%s211 + $0x24] sm:$0xf] %v1833
        %1866 = vst [vmem:[%s211 + $0x28] sm:$0xf] %v1834
        %1867 = vst [vmem:[%s211 + $0x2c] sm:$0xf] %v1835
        %1868 = vst [vmem:[%s211 + $0x30] sm:$0xf] %v1836
        %1869 = vst [vmem:[%s211 + $0x34] sm:$0xf] %v1837
        %1870 = vst [vmem:[%s211 + $0x38] sm:$0xf] %v1838
        %1871 = vst [vmem:[%s211 + $0x3c] sm:$0xf] %v1839
        %1872 = vst [vmem:[%s211 + $0x40] sm:$0xf] %v1840
        %1873 = vst [vmem:[%s211 + $0x44] sm:$0xf] %v1841
        %1874 = vst [vmem:[%s211 + $0x48] sm:$0xf] %v1842
        %1875 = vst [vmem:[%s211 + $0x4c] sm:$0xf] %v1843
        %1876 = vst [vmem:[%s211 + $0x50] sm:$0xf] %v1844
        %1877 = vst [vmem:[%s211 + $0x54] sm:$0xf] %v1845
        %1878 = vst [vmem:[%s211 + $0x58] sm:$0xf] %v1846
        %1879 = vst [vmem:[%s211 + $0x5c] sm:$0xf] %v1847
        %1880 = vst [vmem:[%s211 + $0x60] sm:$0xf] %v1848
        %1881 = vst [vmem:[%s211 + $0x64] sm:$0xf] %v1849
        %1882 = vst [vmem:[%s211 + $0x68] sm:$0xf] %v1850
        %1883 = vst [vmem:[%s211 + $0x6c] sm:$0xf] %v1851
        %1884 = vst [vmem:[%s211 + $0x70] sm:$0xf] %v1852
        %1885 = vst [vmem:[%s211 + $0x74] sm:$0xf] %v1853
        %1886 = vst [vmem:[%s211 + $0x78] sm:$0xf] %v1854
        %1887 = vst [vmem:[%s211 + $0x7c] sm:$0xf] %v1855
        %v1888 = vld [vmem:[#allocation2] sm:$0xf]
        %v1889 = vld [vmem:[#allocation2 + $0x4] sm:$0xf]
        %v1890 = vld [vmem:[#allocation2 + $0x8] sm:$0xf]
        %v1891 = vld [vmem:[#allocation2 + $0xc] sm:$0xf]
        %v1892 = vld [vmem:[#allocation2 + $0x10] sm:$0xf]
        %v1893 = vld [vmem:[#allocation2 + $0x14] sm:$0xf]
        %v1894 = vld [vmem:[#allocation2 + $0x18] sm:$0xf]
        %v1895 = vld [vmem:[#allocation2 + $0x1c] sm:$0xf]
        %v1896 = vld [vmem:[#allocation2 + $0x20] sm:$0xf]
        %v1897 = vld [vmem:[#allocation2 + $0x24] sm:$0xf]
        %v1898 = vld [vmem:[#allocation2 + $0x28] sm:$0xf]
        %v1899 = vld [vmem:[#allocation2 + $0x2c] sm:$0xf]
        %v1900 = vld [vmem:[#allocation2 + $0x30] sm:$0xf]
        %v1901 = vld [vmem:[#allocation2 + $0x34] sm:$0xf]
        %v1902 = vld [vmem:[#allocation2 + $0x38] sm:$0xf]
        %v1903 = vld [vmem:[#allocation2 + $0x3c] sm:$0xf]
        %v1904 = vld [vmem:[#allocation2 + $0x40] sm:$0xf]
        %v1905 = vld [vmem:[#allocation2 + $0x44] sm:$0xf]
        %v1906 = vld [vmem:[#allocation2 + $0x48] sm:$0xf]
        %v1907 = vld [vmem:[#allocation2 + $0x4c] sm:$0xf]
        %v1908 = vld [vmem:[#allocation2 + $0x50] sm:$0xf]
        %v1909 = vld [vmem:[#allocation2 + $0x54] sm:$0xf]
        %v1910 = vld [vmem:[#allocation2 + $0x58] sm:$0xf]
        %v1911 = vld [vmem:[#allocation2 + $0x5c] sm:$0xf]
        %v1912 = vld [vmem:[#allocation2 + $0x60] sm:$0xf]
        %v1913 = vld [vmem:[#allocation2 + $0x64] sm:$0xf]
        %v1914 = vld [vmem:[#allocation2 + $0x68] sm:$0xf]
        %v1915 = vld [vmem:[#allocation2 + $0x6c] sm:$0xf]
        %v1916 = vld [vmem:[#allocation2 + $0x70] sm:$0xf]
        %v1917 = vld [vmem:[#allocation2 + $0x74] sm:$0xf]
        %v1918 = vld [vmem:[#allocation2 + $0x78] sm:$0xf]
        %v1919 = vld [vmem:[#allocation2 + $0x7c] sm:$0xf]
        %v1920 = vld [vmem:[%s276] sm:$0xf]
        %v1921 = vld [vmem:[%s276 + $0x4] sm:$0xf]
        %v1922 = vld [vmem:[%s276 + $0x8] sm:$0xf]
        %v1923 = vld [vmem:[%s276 + $0xc] sm:$0xf]
        %v1924 = vld [vmem:[%s276 + $0x10] sm:$0xf]
        %v1925 = vld [vmem:[%s276 + $0x14] sm:$0xf]
        %v1926 = vld [vmem:[%s276 + $0x18] sm:$0xf]
        %v1927 = vld [vmem:[%s276 + $0x1c] sm:$0xf]
        %v1928 = vld [vmem:[%s276 + $0x20] sm:$0xf]
        %v1929 = vld [vmem:[%s276 + $0x24] sm:$0xf]
        %v1930 = vld [vmem:[%s276 + $0x28] sm:$0xf]
        %v1931 = vld [vmem:[%s276 + $0x2c] sm:$0xf]
        %v1932 = vld [vmem:[%s276 + $0x30] sm:$0xf]
        %v1933 = vld [vmem:[%s276 + $0x34] sm:$0xf]
        %v1934 = vld [vmem:[%s276 + $0x38] sm:$0xf]
        %v1935 = vld [vmem:[%s276 + $0x3c] sm:$0xf]
        %v1936 = vld [vmem:[%s276 + $0x40] sm:$0xf]
        %v1937 = vld [vmem:[%s276 + $0x44] sm:$0xf]
        %v1938 = vld [vmem:[%s276 + $0x48] sm:$0xf]
        %v1939 = vld [vmem:[%s276 + $0x4c] sm:$0xf]
        %v1940 = vld [vmem:[%s276 + $0x50] sm:$0xf]
        %v1941 = vld [vmem:[%s276 + $0x54] sm:$0xf]
        %v1942 = vld [vmem:[%s276 + $0x58] sm:$0xf]
        %v1943 = vld [vmem:[%s276 + $0x5c] sm:$0xf]
        %v1944 = vld [vmem:[%s276 + $0x60] sm:$0xf]
        %v1945 = vld [vmem:[%s276 + $0x64] sm:$0xf]
        %v1946 = vld [vmem:[%s276 + $0x68] sm:$0xf]
        %v1947 = vld [vmem:[%s276 + $0x6c] sm:$0xf]
        %v1948 = vld [vmem:[%s276 + $0x70] sm:$0xf]
        %v1949 = vld [vmem:[%s276 + $0x74] sm:$0xf]
        %v1950 = vld [vmem:[%s276 + $0x78] sm:$0xf]
        %v1951 = vld [vmem:[%s276 + $0x7c] sm:$0xf]
        %v1952 = vunpack.c.l.bf16 %v1888
        %v1953 = vunpack.c.l.bf16 %v1889
        %v1954 = vunpack.c.l.bf16 %v1890
        %v1955 = vunpack.c.l.bf16 %v1891
        %v1956 = vunpack.c.l.bf16 %v1892
        %v1957 = vunpack.c.l.bf16 %v1893
        %v1958 = vunpack.c.l.bf16 %v1894
        %v1959 = vunpack.c.l.bf16 %v1895
        %v1960 = vunpack.c.l.bf16 %v1896
        %v1961 = vunpack.c.l.bf16 %v1897
        %v1962 = vunpack.c.l.bf16 %v1898
        %v1963 = vunpack.c.l.bf16 %v1899
        %v1964 = vunpack.c.l.bf16 %v1900
        %v1965 = vunpack.c.l.bf16 %v1901
        %v1966 = vunpack.c.l.bf16 %v1902
        %v1967 = vunpack.c.l.bf16 %v1903
        %v1968 = vunpack.c.l.bf16 %v1904
        %v1969 = vunpack.c.l.bf16 %v1905
        %v1970 = vunpack.c.l.bf16 %v1906
        %v1971 = vunpack.c.l.bf16 %v1907
        %v1972 = vunpack.c.l.bf16 %v1908
        %v1973 = vunpack.c.l.bf16 %v1909
        %v1974 = vunpack.c.l.bf16 %v1910
        %v1975 = vunpack.c.l.bf16 %v1911
        %v1976 = vunpack.c.l.bf16 %v1912
        %v1977 = vunpack.c.l.bf16 %v1913
        %v1978 = vunpack.c.l.bf16 %v1914
        %v1979 = vunpack.c.l.bf16 %v1915
        %v1980 = vunpack.c.l.bf16 %v1916
        %v1981 = vunpack.c.l.bf16 %v1917
        %v1982 = vunpack.c.l.bf16 %v1918
        %v1983 = vunpack.c.l.bf16 %v1919
        %v1984 = vunpack.c.l.bf16 %v1920
        %v1985 = vunpack.c.l.bf16 %v1921
        %v1986 = vunpack.c.l.bf16 %v1922
        %v1987 = vunpack.c.l.bf16 %v1923
        %v1988 = vunpack.c.l.bf16 %v1924
        %v1989 = vunpack.c.l.bf16 %v1925
        %v1990 = vunpack.c.l.bf16 %v1926
        %v1991 = vunpack.c.l.bf16 %v1927
        %v1992 = vunpack.c.l.bf16 %v1928
        %v1993 = vunpack.c.l.bf16 %v1929
        %v1994 = vunpack.c.l.bf16 %v1930
        %v1995 = vunpack.c.l.bf16 %v1931
        %v1996 = vunpack.c.l.bf16 %v1932
        %v1997 = vunpack.c.l.bf16 %v1933
        %v1998 = vunpack.c.l.bf16 %v1934
        %v1999 = vunpack.c.l.bf16 %v1935
        %v2000 = vunpack.c.l.bf16 %v1936
        %v2001 = vunpack.c.l.bf16 %v1937
        %v2002 = vunpack.c.l.bf16 %v1938
        %v2003 = vunpack.c.l.bf16 %v1939
        %v2004 = vunpack.c.l.bf16 %v1940
        %v2005 = vunpack.c.l.bf16 %v1941
        %v2006 = vunpack.c.l.bf16 %v1942
        %v2007 = vunpack.c.l.bf16 %v1943
        %v2008 = vunpack.c.l.bf16 %v1944
        %v2009 = vunpack.c.l.bf16 %v1945
        %v2010 = vunpack.c.l.bf16 %v1946
        %v2011 = vunpack.c.l.bf16 %v1947
        %v2012 = vunpack.c.l.bf16 %v1948
        %v2013 = vunpack.c.l.bf16 %v1949
        %v2014 = vunpack.c.l.bf16 %v1950
        %v2015 = vunpack.c.l.bf16 %v1951
        %v2016 = vmax.f32 %v1952, %v1984
        %v2017 = vmax.f32 %v1953, %v1985
        %v2018 = vmax.f32 %v1954, %v1986
        %v2019 = vmax.f32 %v1955, %v1987
        %v2020 = vmax.f32 %v1956, %v1988
        %v2021 = vmax.f32 %v1957, %v1989
        %v2022 = vmax.f32 %v1958, %v1990
        %v2023 = vmax.f32 %v1959, %v1991
        %v2024 = vmax.f32 %v1960, %v1992
        %v2025 = vmax.f32 %v1961, %v1993
        %v2026 = vmax.f32 %v1962, %v1994
        %v2027 = vmax.f32 %v1963, %v1995
        %v2028 = vmax.f32 %v1964, %v1996
        %v2029 = vmax.f32 %v1965, %v1997
        %v2030 = vmax.f32 %v1966, %v1998
        %v2031 = vmax.f32 %v1967, %v1999
        %v2032 = vmax.f32 %v1968, %v2000
        %v2033 = vmax.f32 %v1969, %v2001
        %v2034 = vmax.f32 %v1970, %v2002
        %v2035 = vmax.f32 %v1971, %v2003
        %v2036 = vmax.f32 %v1972, %v2004
        %v2037 = vmax.f32 %v1973, %v2005
        %v2038 = vmax.f32 %v1974, %v2006
        %v2039 = vmax.f32 %v1975, %v2007
        %v2040 = vmax.f32 %v1976, %v2008
        %v2041 = vmax.f32 %v1977, %v2009
        %v2042 = vmax.f32 %v1978, %v2010
        %v2043 = vmax.f32 %v1979, %v2011
        %v2044 = vmax.f32 %v1980, %v2012
        %v2045 = vmax.f32 %v1981, %v2013
        %v2046 = vmax.f32 %v1982, %v2014
        %v2047 = vmax.f32 %v1983, %v2015
        %v2048 = vpack.c.bf16 %v2016, %v2016
        %v2049 = vpack.c.bf16 %v2017, %v2017
        %v2050 = vpack.c.bf16 %v2018, %v2018
        %v2051 = vpack.c.bf16 %v2019, %v2019
        %v2052 = vpack.c.bf16 %v2020, %v2020
        %v2053 = vpack.c.bf16 %v2021, %v2021
        %v2054 = vpack.c.bf16 %v2022, %v2022
        %v2055 = vpack.c.bf16 %v2023, %v2023
        %v2056 = vpack.c.bf16 %v2024, %v2024
        %v2057 = vpack.c.bf16 %v2025, %v2025
        %v2058 = vpack.c.bf16 %v2026, %v2026
        %v2059 = vpack.c.bf16 %v2027, %v2027
        %v2060 = vpack.c.bf16 %v2028, %v2028
        %v2061 = vpack.c.bf16 %v2029, %v2029
        %v2062 = vpack.c.bf16 %v2030, %v2030
        %v2063 = vpack.c.bf16 %v2031, %v2031
        %v2064 = vpack.c.bf16 %v2032, %v2032
        %v2065 = vpack.c.bf16 %v2033, %v2033
        %v2066 = vpack.c.bf16 %v2034, %v2034
        %v2067 = vpack.c.bf16 %v2035, %v2035
        %v2068 = vpack.c.bf16 %v2036, %v2036
        %v2069 = vpack.c.bf16 %v2037, %v2037
        %v2070 = vpack.c.bf16 %v2038, %v2038
        %v2071 = vpack.c.bf16 %v2039, %v2039
        %v2072 = vpack.c.bf16 %v2040, %v2040
        %v2073 = vpack.c.bf16 %v2041, %v2041
        %v2074 = vpack.c.bf16 %v2042, %v2042
        %v2075 = vpack.c.bf16 %v2043, %v2043
        %v2076 = vpack.c.bf16 %v2044, %v2044
        %v2077 = vpack.c.bf16 %v2045, %v2045
        %v2078 = vpack.c.bf16 %v2046, %v2046
        %v2079 = vpack.c.bf16 %v2047, %v2047
        %v2080 = vld [vmem:[%s211] sm:$0xf]
        %v2081 = vld [vmem:[%s211 + $0x4] sm:$0xf]
        %v2082 = vld [vmem:[%s211 + $0x8] sm:$0xf]
        %v2083 = vld [vmem:[%s211 + $0xc] sm:$0xf]
        %v2084 = vld [vmem:[%s211 + $0x10] sm:$0xf]
        %v2085 = vld [vmem:[%s211 + $0x14] sm:$0xf]
        %v2086 = vld [vmem:[%s211 + $0x18] sm:$0xf]
        %v2087 = vld [vmem:[%s211 + $0x1c] sm:$0xf]
        %v2088 = vld [vmem:[%s211 + $0x20] sm:$0xf]
        %v2089 = vld [vmem:[%s211 + $0x24] sm:$0xf]
        %v2090 = vld [vmem:[%s211 + $0x28] sm:$0xf]
        %v2091 = vld [vmem:[%s211 + $0x2c] sm:$0xf]
        %v2092 = vld [vmem:[%s211 + $0x30] sm:$0xf]
        %v2093 = vld [vmem:[%s211 + $0x34] sm:$0xf]
        %v2094 = vld [vmem:[%s211 + $0x38] sm:$0xf]
        %v2095 = vld [vmem:[%s211 + $0x3c] sm:$0xf]
        %v2096 = vld [vmem:[%s211 + $0x40] sm:$0xf]
        %v2097 = vld [vmem:[%s211 + $0x44] sm:$0xf]
        %v2098 = vld [vmem:[%s211 + $0x48] sm:$0xf]
        %v2099 = vld [vmem:[%s211 + $0x4c] sm:$0xf]
        %v2100 = vld [vmem:[%s211 + $0x50] sm:$0xf]
        %v2101 = vld [vmem:[%s211 + $0x54] sm:$0xf]
        %v2102 = vld [vmem:[%s211 + $0x58] sm:$0xf]
        %v2103 = vld [vmem:[%s211 + $0x5c] sm:$0xf]
        %v2104 = vld [vmem:[%s211 + $0x60] sm:$0xf]
        %v2105 = vld [vmem:[%s211 + $0x64] sm:$0xf]
        %v2106 = vld [vmem:[%s211 + $0x68] sm:$0xf]
        %v2107 = vld [vmem:[%s211 + $0x6c] sm:$0xf]
        %v2108 = vld [vmem:[%s211 + $0x70] sm:$0xf]
        %v2109 = vld [vmem:[%s211 + $0x74] sm:$0xf]
        %v2110 = vld [vmem:[%s211 + $0x78] sm:$0xf]
        %v2111 = vld [vmem:[%s211 + $0x7c] sm:$0xf]
        %v2112 = vunpack.c.l.bf16 %v2048
        %v2113 = vunpack.c.l.bf16 %v2049
        %v2114 = vunpack.c.l.bf16 %v2050
        %v2115 = vunpack.c.l.bf16 %v2051
        %v2116 = vunpack.c.l.bf16 %v2052
        %v2117 = vunpack.c.l.bf16 %v2053
        %v2118 = vunpack.c.l.bf16 %v2054
        %v2119 = vunpack.c.l.bf16 %v2055
        %v2120 = vunpack.c.l.bf16 %v2056
        %v2121 = vunpack.c.l.bf16 %v2057
        %v2122 = vunpack.c.l.bf16 %v2058
        %v2123 = vunpack.c.l.bf16 %v2059
        %v2124 = vunpack.c.l.bf16 %v2060
        %v2125 = vunpack.c.l.bf16 %v2061
        %v2126 = vunpack.c.l.bf16 %v2062
        %v2127 = vunpack.c.l.bf16 %v2063
        %v2128 = vunpack.c.l.bf16 %v2064
        %v2129 = vunpack.c.l.bf16 %v2065
        %v2130 = vunpack.c.l.bf16 %v2066
        %v2131 = vunpack.c.l.bf16 %v2067
        %v2132 = vunpack.c.l.bf16 %v2068
        %v2133 = vunpack.c.l.bf16 %v2069
        %v2134 = vunpack.c.l.bf16 %v2070
        %v2135 = vunpack.c.l.bf16 %v2071
        %v2136 = vunpack.c.l.bf16 %v2072
        %v2137 = vunpack.c.l.bf16 %v2073
        %v2138 = vunpack.c.l.bf16 %v2074
        %v2139 = vunpack.c.l.bf16 %v2075
        %v2140 = vunpack.c.l.bf16 %v2076
        %v2141 = vunpack.c.l.bf16 %v2077
        %v2142 = vunpack.c.l.bf16 %v2078
        %v2143 = vunpack.c.l.bf16 %v2079
        %v2144 = vunpack.c.l.bf16 %v2080
        %v2145 = vunpack.c.l.bf16 %v2081
        %v2146 = vunpack.c.l.bf16 %v2082
        %v2147 = vunpack.c.l.bf16 %v2083
        %v2148 = vunpack.c.l.bf16 %v2084
        %v2149 = vunpack.c.l.bf16 %v2085
        %v2150 = vunpack.c.l.bf16 %v2086
        %v2151 = vunpack.c.l.bf16 %v2087
        %v2152 = vunpack.c.l.bf16 %v2088
        %v2153 = vunpack.c.l.bf16 %v2089
        %v2154 = vunpack.c.l.bf16 %v2090
        %v2155 = vunpack.c.l.bf16 %v2091
        %v2156 = vunpack.c.l.bf16 %v2092
        %v2157 = vunpack.c.l.bf16 %v2093
        %v2158 = vunpack.c.l.bf16 %v2094
        %v2159 = vunpack.c.l.bf16 %v2095
        %v2160 = vunpack.c.l.bf16 %v2096
        %v2161 = vunpack.c.l.bf16 %v2097
        %v2162 = vunpack.c.l.bf16 %v2098
        %v2163 = vunpack.c.l.bf16 %v2099
        %v2164 = vunpack.c.l.bf16 %v2100
        %v2165 = vunpack.c.l.bf16 %v2101
        %v2166 = vunpack.c.l.bf16 %v2102
        %v2167 = vunpack.c.l.bf16 %v2103
        %v2168 = vunpack.c.l.bf16 %v2104
        %v2169 = vunpack.c.l.bf16 %v2105
        %v2170 = vunpack.c.l.bf16 %v2106
        %v2171 = vunpack.c.l.bf16 %v2107
        %v2172 = vunpack.c.l.bf16 %v2108
        %v2173 = vunpack.c.l.bf16 %v2109
        %v2174 = vunpack.c.l.bf16 %v2110
        %v2175 = vunpack.c.l.bf16 %v2111
        %v2176 = vmax.f32 %v2112, %v2144
        %v2177 = vmax.f32 %v2113, %v2145
        %v2178 = vmax.f32 %v2114, %v2146
        %v2179 = vmax.f32 %v2115, %v2147
        %v2180 = vmax.f32 %v2116, %v2148
        %v2181 = vmax.f32 %v2117, %v2149
        %v2182 = vmax.f32 %v2118, %v2150
        %v2183 = vmax.f32 %v2119, %v2151
        %v2184 = vmax.f32 %v2120, %v2152
        %v2185 = vmax.f32 %v2121, %v2153
        %v2186 = vmax.f32 %v2122, %v2154
        %v2187 = vmax.f32 %v2123, %v2155
        %v2188 = vmax.f32 %v2124, %v2156
        %v2189 = vmax.f32 %v2125, %v2157
        %v2190 = vmax.f32 %v2126, %v2158
        %v2191 = vmax.f32 %v2127, %v2159
        %v2192 = vmax.f32 %v2128, %v2160
        %v2193 = vmax.f32 %v2129, %v2161
        %v2194 = vmax.f32 %v2130, %v2162
        %v2195 = vmax.f32 %v2131, %v2163
        %v2196 = vmax.f32 %v2132, %v2164
        %v2197 = vmax.f32 %v2133, %v2165
        %v2198 = vmax.f32 %v2134, %v2166
        %v2199 = vmax.f32 %v2135, %v2167
        %v2200 = vmax.f32 %v2136, %v2168
        %v2201 = vmax.f32 %v2137, %v2169
        %v2202 = vmax.f32 %v2138, %v2170
        %v2203 = vmax.f32 %v2139, %v2171
        %v2204 = vmax.f32 %v2140, %v2172
        %v2205 = vmax.f32 %v2141, %v2173
        %v2206 = vmax.f32 %v2142, %v2174
        %v2207 = vmax.f32 %v2143, %v2175
        %v2208 = vpack.c.bf16 %v2176, %v2176
        %v2209 = vpack.c.bf16 %v2177, %v2177
        %v2210 = vpack.c.bf16 %v2178, %v2178
        %v2211 = vpack.c.bf16 %v2179, %v2179
        %v2212 = vpack.c.bf16 %v2180, %v2180
        %v2213 = vpack.c.bf16 %v2181, %v2181
        %v2214 = vpack.c.bf16 %v2182, %v2182
        %v2215 = vpack.c.bf16 %v2183, %v2183
        %v2216 = vpack.c.bf16 %v2184, %v2184
        %v2217 = vpack.c.bf16 %v2185, %v2185
        %v2218 = vpack.c.bf16 %v2186, %v2186
        %v2219 = vpack.c.bf16 %v2187, %v2187
        %v2220 = vpack.c.bf16 %v2188, %v2188
        %v2221 = vpack.c.bf16 %v2189, %v2189
        %v2222 = vpack.c.bf16 %v2190, %v2190
        %v2223 = vpack.c.bf16 %v2191, %v2191
        %v2224 = vpack.c.bf16 %v2192, %v2192
        %v2225 = vpack.c.bf16 %v2193, %v2193
        %v2226 = vpack.c.bf16 %v2194, %v2194
        %v2227 = vpack.c.bf16 %v2195, %v2195
        %v2228 = vpack.c.bf16 %v2196, %v2196
        %v2229 = vpack.c.bf16 %v2197, %v2197
        %v2230 = vpack.c.bf16 %v2198, %v2198
        %v2231 = vpack.c.bf16 %v2199, %v2199
        %v2232 = vpack.c.bf16 %v2200, %v2200
        %v2233 = vpack.c.bf16 %v2201, %v2201
        %v2234 = vpack.c.bf16 %v2202, %v2202
        %v2235 = vpack.c.bf16 %v2203, %v2203
        %v2236 = vpack.c.bf16 %v2204, %v2204
        %v2237 = vpack.c.bf16 %v2205, %v2205
        %v2238 = vpack.c.bf16 %v2206, %v2206
        %v2239 = vpack.c.bf16 %v2207, %v2207
        %v2240 = vld [vmem:[%s597] sm:$0xf]
        %v2241 = vld [vmem:[%s597 + $0x4] sm:$0xf]
        %v2242 = vld [vmem:[%s597 + $0x8] sm:$0xf]
        %v2243 = vld [vmem:[%s597 + $0xc] sm:$0xf]
        %v2244 = vld [vmem:[%s597 + $0x10] sm:$0xf]
        %v2245 = vld [vmem:[%s597 + $0x14] sm:$0xf]
        %v2246 = vld [vmem:[%s597 + $0x18] sm:$0xf]
        %v2247 = vld [vmem:[%s597 + $0x1c] sm:$0xf]
        %v2248 = vld [vmem:[%s597 + $0x20] sm:$0xf]
        %v2249 = vld [vmem:[%s597 + $0x24] sm:$0xf]
        %v2250 = vld [vmem:[%s597 + $0x28] sm:$0xf]
        %v2251 = vld [vmem:[%s597 + $0x2c] sm:$0xf]
        %v2252 = vld [vmem:[%s597 + $0x30] sm:$0xf]
        %v2253 = vld [vmem:[%s597 + $0x34] sm:$0xf]
        %v2254 = vld [vmem:[%s597 + $0x38] sm:$0xf]
        %v2255 = vld [vmem:[%s597 + $0x3c] sm:$0xf]
        %v2256 = vld [vmem:[%s597 + $0x40] sm:$0xf]
        %v2257 = vld [vmem:[%s597 + $0x44] sm:$0xf]
        %v2258 = vld [vmem:[%s597 + $0x48] sm:$0xf]
        %v2259 = vld [vmem:[%s597 + $0x4c] sm:$0xf]
        %v2260 = vld [vmem:[%s597 + $0x50] sm:$0xf]
        %v2261 = vld [vmem:[%s597 + $0x54] sm:$0xf]
        %v2262 = vld [vmem:[%s597 + $0x58] sm:$0xf]
        %v2263 = vld [vmem:[%s597 + $0x5c] sm:$0xf]
        %v2264 = vld [vmem:[%s597 + $0x60] sm:$0xf]
        %v2265 = vld [vmem:[%s597 + $0x64] sm:$0xf]
        %v2266 = vld [vmem:[%s597 + $0x68] sm:$0xf]
        %v2267 = vld [vmem:[%s597 + $0x6c] sm:$0xf]
        %v2268 = vld [vmem:[%s597 + $0x70] sm:$0xf]
        %v2269 = vld [vmem:[%s597 + $0x74] sm:$0xf]
        %v2270 = vld [vmem:[%s597 + $0x78] sm:$0xf]
        %v2271 = vld [vmem:[%s597 + $0x7c] sm:$0xf]
        %v2272 = vunpack.c.l.bf16 %v2208
        %v2273 = vunpack.c.l.bf16 %v2209
        %v2274 = vunpack.c.l.bf16 %v2210
        %v2275 = vunpack.c.l.bf16 %v2211
        %v2276 = vunpack.c.l.bf16 %v2212
        %v2277 = vunpack.c.l.bf16 %v2213
        %v2278 = vunpack.c.l.bf16 %v2214
        %v2279 = vunpack.c.l.bf16 %v2215
        %v2280 = vunpack.c.l.bf16 %v2216
        %v2281 = vunpack.c.l.bf16 %v2217
        %v2282 = vunpack.c.l.bf16 %v2218
        %v2283 = vunpack.c.l.bf16 %v2219
        %v2284 = vunpack.c.l.bf16 %v2220
        %v2285 = vunpack.c.l.bf16 %v2221
        %v2286 = vunpack.c.l.bf16 %v2222
        %v2287 = vunpack.c.l.bf16 %v2223
        %v2288 = vunpack.c.l.bf16 %v2224
        %v2289 = vunpack.c.l.bf16 %v2225
        %v2290 = vunpack.c.l.bf16 %v2226
        %v2291 = vunpack.c.l.bf16 %v2227
        %v2292 = vunpack.c.l.bf16 %v2228
        %v2293 = vunpack.c.l.bf16 %v2229
        %v2294 = vunpack.c.l.bf16 %v2230
        %v2295 = vunpack.c.l.bf16 %v2231
        %v2296 = vunpack.c.l.bf16 %v2232
        %v2297 = vunpack.c.l.bf16 %v2233
        %v2298 = vunpack.c.l.bf16 %v2234
        %v2299 = vunpack.c.l.bf16 %v2235
        %v2300 = vunpack.c.l.bf16 %v2236
        %v2301 = vunpack.c.l.bf16 %v2237
        %v2302 = vunpack.c.l.bf16 %v2238
        %v2303 = vunpack.c.l.bf16 %v2239
        %v2304 = vunpack.c.l.bf16 %v2240
        %v2305 = vunpack.c.l.bf16 %v2241
        %v2306 = vunpack.c.l.bf16 %v2242
        %v2307 = vunpack.c.l.bf16 %v2243
        %v2308 = vunpack.c.l.bf16 %v2244
        %v2309 = vunpack.c.l.bf16 %v2245
        %v2310 = vunpack.c.l.bf16 %v2246
        %v2311 = vunpack.c.l.bf16 %v2247
        %v2312 = vunpack.c.l.bf16 %v2248
        %v2313 = vunpack.c.l.bf16 %v2249
        %v2314 = vunpack.c.l.bf16 %v2250
        %v2315 = vunpack.c.l.bf16 %v2251
        %v2316 = vunpack.c.l.bf16 %v2252
        %v2317 = vunpack.c.l.bf16 %v2253
        %v2318 = vunpack.c.l.bf16 %v2254
        %v2319 = vunpack.c.l.bf16 %v2255
        %v2320 = vunpack.c.l.bf16 %v2256
        %v2321 = vunpack.c.l.bf16 %v2257
        %v2322 = vunpack.c.l.bf16 %v2258
        %v2323 = vunpack.c.l.bf16 %v2259
        %v2324 = vunpack.c.l.bf16 %v2260
        %v2325 = vunpack.c.l.bf16 %v2261
        %v2326 = vunpack.c.l.bf16 %v2262
        %v2327 = vunpack.c.l.bf16 %v2263
        %v2328 = vunpack.c.l.bf16 %v2264
        %v2329 = vunpack.c.l.bf16 %v2265
        %v2330 = vunpack.c.l.bf16 %v2266
        %v2331 = vunpack.c.l.bf16 %v2267
        %v2332 = vunpack.c.l.bf16 %v2268
        %v2333 = vunpack.c.l.bf16 %v2269
        %v2334 = vunpack.c.l.bf16 %v2270
        %v2335 = vunpack.c.l.bf16 %v2271
        %v2336 = vmax.f32 %v2272, %v2304
        %v2337 = vmax.f32 %v2273, %v2305
        %v2338 = vmax.f32 %v2274, %v2306
        %v2339 = vmax.f32 %v2275, %v2307
        %v2340 = vmax.f32 %v2276, %v2308
        %v2341 = vmax.f32 %v2277, %v2309
        %v2342 = vmax.f32 %v2278, %v2310
        %v2343 = vmax.f32 %v2279, %v2311
        %v2344 = vmax.f32 %v2280, %v2312
        %v2345 = vmax.f32 %v2281, %v2313
        %v2346 = vmax.f32 %v2282, %v2314
        %v2347 = vmax.f32 %v2283, %v2315
        %v2348 = vmax.f32 %v2284, %v2316
        %v2349 = vmax.f32 %v2285, %v2317
        %v2350 = vmax.f32 %v2286, %v2318
        %v2351 = vmax.f32 %v2287, %v2319
        %v2352 = vmax.f32 %v2288, %v2320
        %v2353 = vmax.f32 %v2289, %v2321
        %v2354 = vmax.f32 %v2290, %v2322
        %v2355 = vmax.f32 %v2291, %v2323
        %v2356 = vmax.f32 %v2292, %v2324
        %v2357 = vmax.f32 %v2293, %v2325
        %v2358 = vmax.f32 %v2294, %v2326
        %v2359 = vmax.f32 %v2295, %v2327
        %v2360 = vmax.f32 %v2296, %v2328
        %v2361 = vmax.f32 %v2297, %v2329
        %v2362 = vmax.f32 %v2298, %v2330
        %v2363 = vmax.f32 %v2299, %v2331
        %v2364 = vmax.f32 %v2300, %v2332
        %v2365 = vmax.f32 %v2301, %v2333
        %v2366 = vmax.f32 %v2302, %v2334
        %v2367 = vmax.f32 %v2303, %v2335
        %v2368 = vpack.c.bf16 %v2336, %v2336
        %v2369 = vpack.c.bf16 %v2337, %v2337
        %v2370 = vpack.c.bf16 %v2338, %v2338
        %v2371 = vpack.c.bf16 %v2339, %v2339
        %v2372 = vpack.c.bf16 %v2340, %v2340
        %v2373 = vpack.c.bf16 %v2341, %v2341
        %v2374 = vpack.c.bf16 %v2342, %v2342
        %v2375 = vpack.c.bf16 %v2343, %v2343
        %v2376 = vpack.c.bf16 %v2344, %v2344
        %v2377 = vpack.c.bf16 %v2345, %v2345
        %v2378 = vpack.c.bf16 %v2346, %v2346
        %v2379 = vpack.c.bf16 %v2347, %v2347
        %v2380 = vpack.c.bf16 %v2348, %v2348
        %v2381 = vpack.c.bf16 %v2349, %v2349
        %v2382 = vpack.c.bf16 %v2350, %v2350
        %v2383 = vpack.c.bf16 %v2351, %v2351
        %v2384 = vpack.c.bf16 %v2352, %v2352
        %v2385 = vpack.c.bf16 %v2353, %v2353
        %v2386 = vpack.c.bf16 %v2354, %v2354
        %v2387 = vpack.c.bf16 %v2355, %v2355
        %v2388 = vpack.c.bf16 %v2356, %v2356
        %v2389 = vpack.c.bf16 %v2357, %v2357
        %v2390 = vpack.c.bf16 %v2358, %v2358
        %v2391 = vpack.c.bf16 %v2359, %v2359
        %v2392 = vpack.c.bf16 %v2360, %v2360
        %v2393 = vpack.c.bf16 %v2361, %v2361
        %v2394 = vpack.c.bf16 %v2362, %v2362
        %v2395 = vpack.c.bf16 %v2363, %v2363
        %v2396 = vpack.c.bf16 %v2364, %v2364
        %v2397 = vpack.c.bf16 %v2365, %v2365
        %v2398 = vpack.c.bf16 %v2366, %v2366
        %v2399 = vpack.c.bf16 %v2367, %v2367
        %v2400 = vld [vmem:[%s758] sm:$0xf]
        %v2401 = vld [vmem:[%s758 + $0x4] sm:$0xf]
        %v2402 = vld [vmem:[%s758 + $0x8] sm:$0xf]
        %v2403 = vld [vmem:[%s758 + $0xc] sm:$0xf]
        %v2404 = vld [vmem:[%s758 + $0x10] sm:$0xf]
        %v2405 = vld [vmem:[%s758 + $0x14] sm:$0xf]
        %v2406 = vld [vmem:[%s758 + $0x18] sm:$0xf]
        %v2407 = vld [vmem:[%s758 + $0x1c] sm:$0xf]
        %v2408 = vld [vmem:[%s758 + $0x20] sm:$0xf]
        %v2409 = vld [vmem:[%s758 + $0x24] sm:$0xf]
        %v2410 = vld [vmem:[%s758 + $0x28] sm:$0xf]
        %v2411 = vld [vmem:[%s758 + $0x2c] sm:$0xf]
        %v2412 = vld [vmem:[%s758 + $0x30] sm:$0xf]
        %v2413 = vld [vmem:[%s758 + $0x34] sm:$0xf]
        %v2414 = vld [vmem:[%s758 + $0x38] sm:$0xf]
        %v2415 = vld [vmem:[%s758 + $0x3c] sm:$0xf]
        %v2416 = vld [vmem:[%s758 + $0x40] sm:$0xf]
        %v2417 = vld [vmem:[%s758 + $0x44] sm:$0xf]
        %v2418 = vld [vmem:[%s758 + $0x48] sm:$0xf]
        %v2419 = vld [vmem:[%s758 + $0x4c] sm:$0xf]
        %v2420 = vld [vmem:[%s758 + $0x50] sm:$0xf]
        %v2421 = vld [vmem:[%s758 + $0x54] sm:$0xf]
        %v2422 = vld [vmem:[%s758 + $0x58] sm:$0xf]
        %v2423 = vld [vmem:[%s758 + $0x5c] sm:$0xf]
        %v2424 = vld [vmem:[%s758 + $0x60] sm:$0xf]
        %v2425 = vld [vmem:[%s758 + $0x64] sm:$0xf]
        %v2426 = vld [vmem:[%s758 + $0x68] sm:$0xf]
        %v2427 = vld [vmem:[%s758 + $0x6c] sm:$0xf]
        %v2428 = vld [vmem:[%s758 + $0x70] sm:$0xf]
        %v2429 = vld [vmem:[%s758 + $0x74] sm:$0xf]
        %v2430 = vld [vmem:[%s758 + $0x78] sm:$0xf]
        %v2431 = vld [vmem:[%s758 + $0x7c] sm:$0xf]
        %v2432 = vunpack.c.l.bf16 %v2368
        %v2433 = vunpack.c.l.bf16 %v2369
        %v2434 = vunpack.c.l.bf16 %v2370
        %v2435 = vunpack.c.l.bf16 %v2371
        %v2436 = vunpack.c.l.bf16 %v2372
        %v2437 = vunpack.c.l.bf16 %v2373
        %v2438 = vunpack.c.l.bf16 %v2374
        %v2439 = vunpack.c.l.bf16 %v2375
        %v2440 = vunpack.c.l.bf16 %v2376
        %v2441 = vunpack.c.l.bf16 %v2377
        %v2442 = vunpack.c.l.bf16 %v2378
        %v2443 = vunpack.c.l.bf16 %v2379
        %v2444 = vunpack.c.l.bf16 %v2380
        %v2445 = vunpack.c.l.bf16 %v2381
        %v2446 = vunpack.c.l.bf16 %v2382
        %v2447 = vunpack.c.l.bf16 %v2383
        %v2448 = vunpack.c.l.bf16 %v2384
        %v2449 = vunpack.c.l.bf16 %v2385
        %v2450 = vunpack.c.l.bf16 %v2386
        %v2451 = vunpack.c.l.bf16 %v2387
        %v2452 = vunpack.c.l.bf16 %v2388
        %v2453 = vunpack.c.l.bf16 %v2389
        %v2454 = vunpack.c.l.bf16 %v2390
        %v2455 = vunpack.c.l.bf16 %v2391
        %v2456 = vunpack.c.l.bf16 %v2392
        %v2457 = vunpack.c.l.bf16 %v2393
        %v2458 = vunpack.c.l.bf16 %v2394
        %v2459 = vunpack.c.l.bf16 %v2395
        %v2460 = vunpack.c.l.bf16 %v2396
        %v2461 = vunpack.c.l.bf16 %v2397
        %v2462 = vunpack.c.l.bf16 %v2398
        %v2463 = vunpack.c.l.bf16 %v2399
        %v2464 = vunpack.c.l.bf16 %v2400
        %v2465 = vunpack.c.l.bf16 %v2401
        %v2466 = vunpack.c.l.bf16 %v2402
        %v2467 = vunpack.c.l.bf16 %v2403
        %v2468 = vunpack.c.l.bf16 %v2404
        %v2469 = vunpack.c.l.bf16 %v2405
        %v2470 = vunpack.c.l.bf16 %v2406
        %v2471 = vunpack.c.l.bf16 %v2407
        %v2472 = vunpack.c.l.bf16 %v2408
        %v2473 = vunpack.c.l.bf16 %v2409
        %v2474 = vunpack.c.l.bf16 %v2410
        %v2475 = vunpack.c.l.bf16 %v2411
        %v2476 = vunpack.c.l.bf16 %v2412
        %v2477 = vunpack.c.l.bf16 %v2413
        %v2478 = vunpack.c.l.bf16 %v2414
        %v2479 = vunpack.c.l.bf16 %v2415
        %v2480 = vunpack.c.l.bf16 %v2416
        %v2481 = vunpack.c.l.bf16 %v2417
        %v2482 = vunpack.c.l.bf16 %v2418
        %v2483 = vunpack.c.l.bf16 %v2419
        %v2484 = vunpack.c.l.bf16 %v2420
        %v2485 = vunpack.c.l.bf16 %v2421
        %v2486 = vunpack.c.l.bf16 %v2422
        %v2487 = vunpack.c.l.bf16 %v2423
        %v2488 = vunpack.c.l.bf16 %v2424
        %v2489 = vunpack.c.l.bf16 %v2425
        %v2490 = vunpack.c.l.bf16 %v2426
        %v2491 = vunpack.c.l.bf16 %v2427
        %v2492 = vunpack.c.l.bf16 %v2428
        %v2493 = vunpack.c.l.bf16 %v2429
        %v2494 = vunpack.c.l.bf16 %v2430
        %v2495 = vunpack.c.l.bf16 %v2431
        %v2496 = vmax.f32 %v2432, %v2464
        %v2497 = vmax.f32 %v2433, %v2465
        %v2498 = vmax.f32 %v2434, %v2466
        %v2499 = vmax.f32 %v2435, %v2467
        %v2500 = vmax.f32 %v2436, %v2468
        %v2501 = vmax.f32 %v2437, %v2469
        %v2502 = vmax.f32 %v2438, %v2470
        %v2503 = vmax.f32 %v2439, %v2471
        %v2504 = vmax.f32 %v2440, %v2472
        %v2505 = vmax.f32 %v2441, %v2473
        %v2506 = vmax.f32 %v2442, %v2474
        %v2507 = vmax.f32 %v2443, %v2475
        %v2508 = vmax.f32 %v2444, %v2476
        %v2509 = vmax.f32 %v2445, %v2477
        %v2510 = vmax.f32 %v2446, %v2478
        %v2511 = vmax.f32 %v2447, %v2479
        %v2512 = vmax.f32 %v2448, %v2480
        %v2513 = vmax.f32 %v2449, %v2481
        %v2514 = vmax.f32 %v2450, %v2482
        %v2515 = vmax.f32 %v2451, %v2483
        %v2516 = vmax.f32 %v2452, %v2484
        %v2517 = vmax.f32 %v2453, %v2485
        %v2518 = vmax.f32 %v2454, %v2486
        %v2519 = vmax.f32 %v2455, %v2487
        %v2520 = vmax.f32 %v2456, %v2488
        %v2521 = vmax.f32 %v2457, %v2489
        %v2522 = vmax.f32 %v2458, %v2490
        %v2523 = vmax.f32 %v2459, %v2491
        %v2524 = vmax.f32 %v2460, %v2492
        %v2525 = vmax.f32 %v2461, %v2493
        %v2526 = vmax.f32 %v2462, %v2494
        %v2527 = vmax.f32 %v2463, %v2495
        %v2528 = vpack.c.bf16 %v2496, %v2496
        %v2529 = vpack.c.bf16 %v2497, %v2497
        %v2530 = vpack.c.bf16 %v2498, %v2498
        %v2531 = vpack.c.bf16 %v2499, %v2499
        %v2532 = vpack.c.bf16 %v2500, %v2500
        %v2533 = vpack.c.bf16 %v2501, %v2501
        %v2534 = vpack.c.bf16 %v2502, %v2502
        %v2535 = vpack.c.bf16 %v2503, %v2503
        %v2536 = vpack.c.bf16 %v2504, %v2504
        %v2537 = vpack.c.bf16 %v2505, %v2505
        %v2538 = vpack.c.bf16 %v2506, %v2506
        %v2539 = vpack.c.bf16 %v2507, %v2507
        %v2540 = vpack.c.bf16 %v2508, %v2508
        %v2541 = vpack.c.bf16 %v2509, %v2509
        %v2542 = vpack.c.bf16 %v2510, %v2510
        %v2543 = vpack.c.bf16 %v2511, %v2511
        %v2544 = vpack.c.bf16 %v2512, %v2512
        %v2545 = vpack.c.bf16 %v2513, %v2513
        %v2546 = vpack.c.bf16 %v2514, %v2514
        %v2547 = vpack.c.bf16 %v2515, %v2515
        %v2548 = vpack.c.bf16 %v2516, %v2516
        %v2549 = vpack.c.bf16 %v2517, %v2517
        %v2550 = vpack.c.bf16 %v2518, %v2518
        %v2551 = vpack.c.bf16 %v2519, %v2519
        %v2552 = vpack.c.bf16 %v2520, %v2520
        %v2553 = vpack.c.bf16 %v2521, %v2521
        %v2554 = vpack.c.bf16 %v2522, %v2522
        %v2555 = vpack.c.bf16 %v2523, %v2523
        %v2556 = vpack.c.bf16 %v2524, %v2524
        %v2557 = vpack.c.bf16 %v2525, %v2525
        %v2558 = vpack.c.bf16 %v2526, %v2526
        %v2559 = vpack.c.bf16 %v2527, %v2527
        %v2592 = vunpack.c.l.b16 %v2528
        %v2593 = vunpack.c.l.b16 %v2529
        %v2594 = vunpack.c.l.b16 %v2530
        %v2595 = vunpack.c.l.b16 %v2531
        %v2596 = vunpack.c.l.b16 %v2532
        %v2597 = vunpack.c.l.b16 %v2533
        %v2598 = vunpack.c.l.b16 %v2534
        %v2599 = vunpack.c.l.b16 %v2535
        %v2600 = vunpack.c.l.b16 %v2536
        %v2601 = vunpack.c.l.b16 %v2537
        %v2602 = vunpack.c.l.b16 %v2538
        %v2603 = vunpack.c.l.b16 %v2539
        %v2604 = vunpack.c.l.b16 %v2540
        %v2605 = vunpack.c.l.b16 %v2541
        %v2606 = vunpack.c.l.b16 %v2542
        %v2607 = vunpack.c.l.b16 %v2543
        %v2608 = vunpack.c.l.b16 %v2544
        %v2609 = vunpack.c.l.b16 %v2545
        %v2610 = vunpack.c.l.b16 %v2546
        %v2611 = vunpack.c.l.b16 %v2547
        %v2612 = vunpack.c.l.b16 %v2548
        %v2613 = vunpack.c.l.b16 %v2549
        %v2614 = vunpack.c.l.b16 %v2550
        %v2615 = vunpack.c.l.b16 %v2551
        %v2616 = vunpack.c.l.b16 %v2552
        %v2617 = vunpack.c.l.b16 %v2553
        %v2618 = vunpack.c.l.b16 %v2554
        %v2619 = vunpack.c.l.b16 %v2555
        %v2620 = vunpack.c.l.b16 %v2556
        %v2621 = vunpack.c.l.b16 %v2557
        %v2622 = vunpack.c.l.b16 %v2558
        %v2623 = vunpack.c.l.b16 %v2559
        %v2624 = vpack.c.b16 %v2593, %v2592
        %v2625 = vpack.c.b16 %v2595, %v2594
        %v2626 = vpack.c.b16 %v2597, %v2596
        %v2627 = vpack.c.b16 %v2599, %v2598
        %v2628 = vpack.c.b16 %v2601, %v2600
        %v2629 = vpack.c.b16 %v2603, %v2602
        %v2630 = vpack.c.b16 %v2605, %v2604
        %v2631 = vpack.c.b16 %v2607, %v2606
        %v2632 = vpack.c.b16 %v2609, %v2608
        %v2633 = vpack.c.b16 %v2611, %v2610
        %v2634 = vpack.c.b16 %v2613, %v2612
        %v2635 = vpack.c.b16 %v2615, %v2614
        %v2636 = vpack.c.b16 %v2617, %v2616
        %v2637 = vpack.c.b16 %v2619, %v2618
        %v2638 = vpack.c.b16 %v2621, %v2620
        %v2639 = vpack.c.b16 %v2623, %v2622
        %v2641 = vshrl.u32 %v2624, 16
        %v2643 = vrot.slane %v2641, 7
        %v2644 = vshll.u32 %v2624, 16
        %v2646 = vor.u32 %v2643, %v2644
        %v2648 = vshrl.u32 %v2625, 16
        %v2650 = vrot.slane %v2648, 7
        %v2651 = vshll.u32 %v2625, 16
        %v2653 = vor.u32 %v2650, %v2651
        %v2655 = vshrl.u32 %v2626, 16
        %v2657 = vrot.slane %v2655, 7
        %v2658 = vshll.u32 %v2626, 16
        %v2660 = vor.u32 %v2657, %v2658
        %v2662 = vshrl.u32 %v2627, 16
        %v2664 = vrot.slane %v2662, 7
        %v2665 = vshll.u32 %v2627, 16
        %v2667 = vor.u32 %v2664, %v2665
        %v2669 = vshrl.u32 %v2628, 16
        %v2671 = vrot.slane %v2669, 7
        %v2672 = vshll.u32 %v2628, 16
        %v2674 = vor.u32 %v2671, %v2672
        %v2676 = vshrl.u32 %v2629, 16
        %v2678 = vrot.slane %v2676, 7
        %v2679 = vshll.u32 %v2629, 16
        %v2681 = vor.u32 %v2678, %v2679
        %v2683 = vshrl.u32 %v2630, 16
        %v2685 = vrot.slane %v2683, 7
        %v2686 = vshll.u32 %v2630, 16
        %v2688 = vor.u32 %v2685, %v2686
        %v2690 = vshrl.u32 %v2631, 16
        %v2692 = vrot.slane %v2690, 7
        %v2693 = vshll.u32 %v2631, 16
        %v2695 = vor.u32 %v2692, %v2693
        %v2697 = vshrl.u32 %v2632, 16
        %v2699 = vrot.slane %v2697, 7
        %v2700 = vshll.u32 %v2632, 16
        %v2702 = vor.u32 %v2699, %v2700
        %v2704 = vshrl.u32 %v2633, 16
        %v2706 = vrot.slane %v2704, 7
        %v2707 = vshll.u32 %v2633, 16
        %v2709 = vor.u32 %v2706, %v2707
        %v2711 = vshrl.u32 %v2634, 16
        %v2713 = vrot.slane %v2711, 7
        %v2714 = vshll.u32 %v2634, 16
        %v2716 = vor.u32 %v2713, %v2714
        %v2718 = vshrl.u32 %v2635, 16
        %v2720 = vrot.slane %v2718, 7
        %v2721 = vshll.u32 %v2635, 16
        %v2723 = vor.u32 %v2720, %v2721
        %v2725 = vshrl.u32 %v2636, 16
        %v2727 = vrot.slane %v2725, 7
        %v2728 = vshll.u32 %v2636, 16
        %v2730 = vor.u32 %v2727, %v2728
        %v2732 = vshrl.u32 %v2637, 16
        %v2734 = vrot.slane %v2732, 7
        %v2735 = vshll.u32 %v2637, 16
        %v2737 = vor.u32 %v2734, %v2735
        %v2739 = vshrl.u32 %v2638, 16
        %v2741 = vrot.slane %v2739, 7
        %v2742 = vshll.u32 %v2638, 16
        %v2744 = vor.u32 %v2741, %v2742
        %v2746 = vshrl.u32 %v2639, 16
        %v2748 = vrot.slane %v2746, 7
        %v2749 = vshll.u32 %v2639, 16
        %v2751 = vor.u32 %v2748, %v2749
        %v2768 = vsel %vm1129, 4286644096, %v2646
        %v2769 = vsel %vm1129, 4286644096, %v2653
        %v2770 = vsel %vm1129, 4286644096, %v2660
        %v2771 = vsel %vm1129, 4286644096, %v2667
        %v2772 = vsel %vm1129, 4286644096, %v2674
        %v2773 = vsel %vm1129, 4286644096, %v2681
        %v2774 = vsel %vm1129, 4286644096, %v2688
        %v2775 = vsel %vm1129, 4286644096, %v2695
        %v2776 = vsel %vm1129, 4286644096, %v2702
        %v2777 = vsel %vm1129, 4286644096, %v2709
        %v2778 = vsel %vm1129, 4286644096, %v2716
        %v2779 = vsel %vm1129, 4286644096, %v2723
        %v2780 = vsel %vm1129, 4286644096, %v2730
        %v2781 = vsel %vm1129, 4286644096, %v2737
        %v2782 = vsel %vm1129, 4286644096, %v2744
        %v2783 = vsel %vm1129, 4286644096, %v2751
        %v2784 = vunpack.c.l.bf16 %v2528
        %v2785 = vunpack.c.l.bf16 %v2529
        %v2786 = vunpack.c.l.bf16 %v2530
        %v2787 = vunpack.c.l.bf16 %v2531
        %v2788 = vunpack.c.l.bf16 %v2532
        %v2789 = vunpack.c.l.bf16 %v2533
        %v2790 = vunpack.c.l.bf16 %v2534
        %v2791 = vunpack.c.l.bf16 %v2535
        %v2792 = vunpack.c.l.bf16 %v2536
        %v2793 = vunpack.c.l.bf16 %v2537
        %v2794 = vunpack.c.l.bf16 %v2538
        %v2795 = vunpack.c.l.bf16 %v2539
        %v2796 = vunpack.c.l.bf16 %v2540
        %v2797 = vunpack.c.l.bf16 %v2541
        %v2798 = vunpack.c.l.bf16 %v2542
        %v2799 = vunpack.c.l.bf16 %v2543
        %v2800 = vunpack.c.l.bf16 %v2544
        %v2801 = vunpack.c.l.bf16 %v2545
        %v2802 = vunpack.c.l.bf16 %v2546
        %v2803 = vunpack.c.l.bf16 %v2547
        %v2804 = vunpack.c.l.bf16 %v2548
        %v2805 = vunpack.c.l.bf16 %v2549
        %v2806 = vunpack.c.l.bf16 %v2550
        %v2807 = vunpack.c.l.bf16 %v2551
        %v2808 = vunpack.c.l.bf16 %v2552
        %v2809 = vunpack.c.l.bf16 %v2553
        %v2810 = vunpack.c.l.bf16 %v2554
        %v2811 = vunpack.c.l.bf16 %v2555
        %v2812 = vunpack.c.l.bf16 %v2556
        %v2813 = vunpack.c.l.bf16 %v2557
        %v2814 = vunpack.c.l.bf16 %v2558
        %v2815 = vunpack.c.l.bf16 %v2559
        %v2816 = vunpack.c.l.bf16 %v2768
        %v2817 = vunpack.c.h.bf16 %v2768
        %v2818 = vunpack.c.l.bf16 %v2769
        %v2819 = vunpack.c.h.bf16 %v2769
        %v2820 = vunpack.c.l.bf16 %v2770
        %v2821 = vunpack.c.h.bf16 %v2770
        %v2822 = vunpack.c.l.bf16 %v2771
        %v2823 = vunpack.c.h.bf16 %v2771
        %v2824 = vunpack.c.l.bf16 %v2772
        %v2825 = vunpack.c.h.bf16 %v2772
        %v2826 = vunpack.c.l.bf16 %v2773
        %v2827 = vunpack.c.h.bf16 %v2773
        %v2828 = vunpack.c.l.bf16 %v2774
        %v2829 = vunpack.c.h.bf16 %v2774
        %v2830 = vunpack.c.l.bf16 %v2775
        %v2831 = vunpack.c.h.bf16 %v2775
        %v2832 = vunpack.c.l.bf16 %v2776
        %v2833 = vunpack.c.h.bf16 %v2776
        %v2834 = vunpack.c.l.bf16 %v2777
        %v2835 = vunpack.c.h.bf16 %v2777
        %v2836 = vunpack.c.l.bf16 %v2778
        %v2837 = vunpack.c.h.bf16 %v2778
        %v2838 = vunpack.c.l.bf16 %v2779
        %v2839 = vunpack.c.h.bf16 %v2779
        %v2840 = vunpack.c.l.bf16 %v2780
        %v2841 = vunpack.c.h.bf16 %v2780
        %v2842 = vunpack.c.l.bf16 %v2781
        %v2843 = vunpack.c.h.bf16 %v2781
        %v2844 = vunpack.c.l.bf16 %v2782
        %v2845 = vunpack.c.h.bf16 %v2782
        %v2846 = vunpack.c.l.bf16 %v2783
        %v2847 = vunpack.c.h.bf16 %v2783
        %v2848 = vmax.f32 %v2784, %v2816
        %v2849 = vmax.f32 %v2785, %v2817
        %v2850 = vmax.f32 %v2786, %v2818
        %v2851 = vmax.f32 %v2787, %v2819
        %v2852 = vmax.f32 %v2788, %v2820
        %v2853 = vmax.f32 %v2789, %v2821
        %v2854 = vmax.f32 %v2790, %v2822
        %v2855 = vmax.f32 %v2791, %v2823
        %v2856 = vmax.f32 %v2792, %v2824
        %v2857 = vmax.f32 %v2793, %v2825
        %v2858 = vmax.f32 %v2794, %v2826
        %v2859 = vmax.f32 %v2795, %v2827
        %v2860 = vmax.f32 %v2796, %v2828
        %v2861 = vmax.f32 %v2797, %v2829
        %v2862 = vmax.f32 %v2798, %v2830
        %v2863 = vmax.f32 %v2799, %v2831
        %v2864 = vmax.f32 %v2800, %v2832
        %v2865 = vmax.f32 %v2801, %v2833
        %v2866 = vmax.f32 %v2802, %v2834
        %v2867 = vmax.f32 %v2803, %v2835
        %v2868 = vmax.f32 %v2804, %v2836
        %v2869 = vmax.f32 %v2805, %v2837
        %v2870 = vmax.f32 %v2806, %v2838
        %v2871 = vmax.f32 %v2807, %v2839
        %v2872 = vmax.f32 %v2808, %v2840
        %v2873 = vmax.f32 %v2809, %v2841
        %v2874 = vmax.f32 %v2810, %v2842
        %v2875 = vmax.f32 %v2811, %v2843
        %v2876 = vmax.f32 %v2812, %v2844
        %v2877 = vmax.f32 %v2813, %v2845
        %v2878 = vmax.f32 %v2814, %v2846
        %v2879 = vmax.f32 %v2815, %v2847
        %v2880 = vpack.c.bf16 %v2848, %v2848
        %v2881 = vpack.c.bf16 %v2849, %v2849
        %v2882 = vpack.c.bf16 %v2850, %v2850
        %v2883 = vpack.c.bf16 %v2851, %v2851
        %v2884 = vpack.c.bf16 %v2852, %v2852
        %v2885 = vpack.c.bf16 %v2853, %v2853
        %v2886 = vpack.c.bf16 %v2854, %v2854
        %v2887 = vpack.c.bf16 %v2855, %v2855
        %v2888 = vpack.c.bf16 %v2856, %v2856
        %v2889 = vpack.c.bf16 %v2857, %v2857
        %v2890 = vpack.c.bf16 %v2858, %v2858
        %v2891 = vpack.c.bf16 %v2859, %v2859
        %v2892 = vpack.c.bf16 %v2860, %v2860
        %v2893 = vpack.c.bf16 %v2861, %v2861
        %v2894 = vpack.c.bf16 %v2862, %v2862
        %v2895 = vpack.c.bf16 %v2863, %v2863
        %v2896 = vpack.c.bf16 %v2864, %v2864
        %v2897 = vpack.c.bf16 %v2865, %v2865
        %v2898 = vpack.c.bf16 %v2866, %v2866
        %v2899 = vpack.c.bf16 %v2867, %v2867
        %v2900 = vpack.c.bf16 %v2868, %v2868
        %v2901 = vpack.c.bf16 %v2869, %v2869
        %v2902 = vpack.c.bf16 %v2870, %v2870
        %v2903 = vpack.c.bf16 %v2871, %v2871
        %v2904 = vpack.c.bf16 %v2872, %v2872
        %v2905 = vpack.c.bf16 %v2873, %v2873
        %v2906 = vpack.c.bf16 %v2874, %v2874
        %v2907 = vpack.c.bf16 %v2875, %v2875
        %v2908 = vpack.c.bf16 %v2876, %v2876
        %v2909 = vpack.c.bf16 %v2877, %v2877
        %v2910 = vpack.c.bf16 %v2878, %v2878
        %v2911 = vpack.c.bf16 %v2879, %v2879
        %v2912 = vrot.slane %v2624, 7
        %v2913 = vrot.slane %v2625, 7
        %v2914 = vrot.slane %v2626, 7
        %v2915 = vrot.slane %v2627, 7
        %v2916 = vrot.slane %v2628, 7
        %v2917 = vrot.slane %v2629, 7
        %v2918 = vrot.slane %v2630, 7
        %v2919 = vrot.slane %v2631, 7
        %v2920 = vrot.slane %v2632, 7
        %v2921 = vrot.slane %v2633, 7
        %v2922 = vrot.slane %v2634, 7
        %v2923 = vrot.slane %v2635, 7
        %v2924 = vrot.slane %v2636, 7
        %v2925 = vrot.slane %v2637, 7
        %v2926 = vrot.slane %v2638, 7
        %v2927 = vrot.slane %v2639, 7
        %v2929 = vsel %vm1290, 4286644096, %v2912
        %v2932 = vsel %vm1290, 4286644096, %v2913
        %v2935 = vsel %vm1290, 4286644096, %v2914
        %v2938 = vsel %vm1290, 4286644096, %v2915
        %v2941 = vsel %vm1290, 4286644096, %v2916
        %v2944 = vsel %vm1290, 4286644096, %v2917
        %v2947 = vsel %vm1290, 4286644096, %v2918
        %v2950 = vsel %vm1290, 4286644096, %v2919
        %v2953 = vsel %vm1290, 4286644096, %v2920
        %v2956 = vsel %vm1290, 4286644096, %v2921
        %v2959 = vsel %vm1290, 4286644096, %v2922
        %v2962 = vsel %vm1290, 4286644096, %v2923
        %v2965 = vsel %vm1290, 4286644096, %v2924
        %v2968 = vsel %vm1290, 4286644096, %v2925
        %v2971 = vsel %vm1290, 4286644096, %v2926
        %v2974 = vsel %vm1290, 4286644096, %v2927
        %v2976 = vunpack.c.l.bf16 %v2880
        %v2977 = vunpack.c.l.bf16 %v2881
        %v2978 = vunpack.c.l.bf16 %v2882
        %v2979 = vunpack.c.l.bf16 %v2883
        %v2980 = vunpack.c.l.bf16 %v2884
        %v2981 = vunpack.c.l.bf16 %v2885
        %v2982 = vunpack.c.l.bf16 %v2886
        %v2983 = vunpack.c.l.bf16 %v2887
        %v2984 = vunpack.c.l.bf16 %v2888
        %v2985 = vunpack.c.l.bf16 %v2889
        %v2986 = vunpack.c.l.bf16 %v2890
        %v2987 = vunpack.c.l.bf16 %v2891
        %v2988 = vunpack.c.l.bf16 %v2892
        %v2989 = vunpack.c.l.bf16 %v2893
        %v2990 = vunpack.c.l.bf16 %v2894
        %v2991 = vunpack.c.l.bf16 %v2895
        %v2992 = vunpack.c.l.bf16 %v2896
        %v2993 = vunpack.c.l.bf16 %v2897
        %v2994 = vunpack.c.l.bf16 %v2898
        %v2995 = vunpack.c.l.bf16 %v2899
        %v2996 = vunpack.c.l.bf16 %v2900
        %v2997 = vunpack.c.l.bf16 %v2901
        %v2998 = vunpack.c.l.bf16 %v2902
        %v2999 = vunpack.c.l.bf16 %v2903
        %v3000 = vunpack.c.l.bf16 %v2904
        %v3001 = vunpack.c.l.bf16 %v2905
        %v3002 = vunpack.c.l.bf16 %v2906
        %v3003 = vunpack.c.l.bf16 %v2907
        %v3004 = vunpack.c.l.bf16 %v2908
        %v3005 = vunpack.c.l.bf16 %v2909
        %v3006 = vunpack.c.l.bf16 %v2910
        %v3007 = vunpack.c.l.bf16 %v2911
        %v3008 = vunpack.c.l.bf16 %v2929
        %v3009 = vunpack.c.h.bf16 %v2929
        %v3010 = vunpack.c.l.bf16 %v2932
        %v3011 = vunpack.c.h.bf16 %v2932
        %v3012 = vunpack.c.l.bf16 %v2935
        %v3013 = vunpack.c.h.bf16 %v2935
        %v3014 = vunpack.c.l.bf16 %v2938
        %v3015 = vunpack.c.h.bf16 %v2938
        %v3016 = vunpack.c.l.bf16 %v2941
        %v3017 = vunpack.c.h.bf16 %v2941
        %v3018 = vunpack.c.l.bf16 %v2944
        %v3019 = vunpack.c.h.bf16 %v2944
        %v3020 = vunpack.c.l.bf16 %v2947
        %v3021 = vunpack.c.h.bf16 %v2947
        %v3022 = vunpack.c.l.bf16 %v2950
        %v3023 = vunpack.c.h.bf16 %v2950
        %v3024 = vunpack.c.l.bf16 %v2953
        %v3025 = vunpack.c.h.bf16 %v2953
        %v3026 = vunpack.c.l.bf16 %v2956
        %v3027 = vunpack.c.h.bf16 %v2956
        %v3028 = vunpack.c.l.bf16 %v2959
        %v3029 = vunpack.c.h.bf16 %v2959
        %v3030 = vunpack.c.l.bf16 %v2962
        %v3031 = vunpack.c.h.bf16 %v2962
        %v3032 = vunpack.c.l.bf16 %v2965
        %v3033 = vunpack.c.h.bf16 %v2965
        %v3034 = vunpack.c.l.bf16 %v2968
        %v3035 = vunpack.c.h.bf16 %v2968
        %v3036 = vunpack.c.l.bf16 %v2971
        %v3037 = vunpack.c.h.bf16 %v2971
        %v3038 = vunpack.c.l.bf16 %v2974
        %v3039 = vunpack.c.h.bf16 %v2974
        %v3040 = vmax.f32 %v2976, %v3008
        %v3041 = vmax.f32 %v2977, %v3009
        %v3042 = vmax.f32 %v2978, %v3010
        %v3043 = vmax.f32 %v2979, %v3011
        %v3044 = vmax.f32 %v2980, %v3012
        %v3045 = vmax.f32 %v2981, %v3013
        %v3046 = vmax.f32 %v2982, %v3014
        %v3047 = vmax.f32 %v2983, %v3015
        %v3048 = vmax.f32 %v2984, %v3016
        %v3049 = vmax.f32 %v2985, %v3017
        %v3050 = vmax.f32 %v2986, %v3018
        %v3051 = vmax.f32 %v2987, %v3019
        %v3052 = vmax.f32 %v2988, %v3020
        %v3053 = vmax.f32 %v2989, %v3021
        %v3054 = vmax.f32 %v2990, %v3022
        %v3055 = vmax.f32 %v2991, %v3023
        %v3056 = vmax.f32 %v2992, %v3024
        %v3057 = vmax.f32 %v2993, %v3025
        %v3058 = vmax.f32 %v2994, %v3026
        %v3059 = vmax.f32 %v2995, %v3027
        %v3060 = vmax.f32 %v2996, %v3028
        %v3061 = vmax.f32 %v2997, %v3029
        %v3062 = vmax.f32 %v2998, %v3030
        %v3063 = vmax.f32 %v2999, %v3031
        %v3064 = vmax.f32 %v3000, %v3032
        %v3065 = vmax.f32 %v3001, %v3033
        %v3066 = vmax.f32 %v3002, %v3034
        %v3067 = vmax.f32 %v3003, %v3035
        %v3068 = vmax.f32 %v3004, %v3036
        %v3069 = vmax.f32 %v3005, %v3037
        %v3070 = vmax.f32 %v3006, %v3038
        %v3071 = vmax.f32 %v3007, %v3039
        %v3072 = vpack.c.bf16 %v3040, %v3040
        %v3073 = vpack.c.bf16 %v3041, %v3041
        %v3074 = vpack.c.bf16 %v3042, %v3042
        %v3075 = vpack.c.bf16 %v3043, %v3043
        %v3076 = vpack.c.bf16 %v3044, %v3044
        %v3077 = vpack.c.bf16 %v3045, %v3045
        %v3078 = vpack.c.bf16 %v3046, %v3046
        %v3079 = vpack.c.bf16 %v3047, %v3047
        %v3080 = vpack.c.bf16 %v3048, %v3048
        %v3081 = vpack.c.bf16 %v3049, %v3049
        %v3082 = vpack.c.bf16 %v3050, %v3050
        %v3083 = vpack.c.bf16 %v3051, %v3051
        %v3084 = vpack.c.bf16 %v3052, %v3052
        %v3085 = vpack.c.bf16 %v3053, %v3053
        %v3086 = vpack.c.bf16 %v3054, %v3054
        %v3087 = vpack.c.bf16 %v3055, %v3055
        %v3088 = vpack.c.bf16 %v3056, %v3056
        %v3089 = vpack.c.bf16 %v3057, %v3057
        %v3090 = vpack.c.bf16 %v3058, %v3058
        %v3091 = vpack.c.bf16 %v3059, %v3059
        %v3092 = vpack.c.bf16 %v3060, %v3060
        %v3093 = vpack.c.bf16 %v3061, %v3061
        %v3094 = vpack.c.bf16 %v3062, %v3062
        %v3095 = vpack.c.bf16 %v3063, %v3063
        %v3096 = vpack.c.bf16 %v3064, %v3064
        %v3097 = vpack.c.bf16 %v3065, %v3065
        %v3098 = vpack.c.bf16 %v3066, %v3066
        %v3099 = vpack.c.bf16 %v3067, %v3067
        %v3100 = vpack.c.bf16 %v3068, %v3068
        %v3101 = vpack.c.bf16 %v3069, %v3069
        %v3102 = vpack.c.bf16 %v3070, %v3070
        %v3103 = vpack.c.bf16 %v3071, %v3071
        %v3104 = vrot.slane %v2644, 1
        %v3105 = vor.u32 %v2641, %v3104
        %v3106 = vrot.slane %v2651, 1
        %v3107 = vor.u32 %v2648, %v3106
        %v3108 = vrot.slane %v2658, 1
        %v3109 = vor.u32 %v2655, %v3108
        %v3110 = vrot.slane %v2665, 1
        %v3111 = vor.u32 %v2662, %v3110
        %v3112 = vrot.slane %v2672, 1
        %v3113 = vor.u32 %v2669, %v3112
        %v3114 = vrot.slane %v2679, 1
        %v3115 = vor.u32 %v2676, %v3114
        %v3116 = vrot.slane %v2686, 1
        %v3117 = vor.u32 %v2683, %v3116
        %v3118 = vrot.slane %v2693, 1
        %v3119 = vor.u32 %v2690, %v3118
        %v3120 = vrot.slane %v2700, 1
        %v3121 = vor.u32 %v2697, %v3120
        %v3122 = vrot.slane %v2707, 1
        %v3123 = vor.u32 %v2704, %v3122
        %v3124 = vrot.slane %v2714, 1
        %v3125 = vor.u32 %v2711, %v3124
        %v3126 = vrot.slane %v2721, 1
        %v3127 = vor.u32 %v2718, %v3126
        %v3128 = vrot.slane %v2728, 1
        %v3129 = vor.u32 %v2725, %v3128
        %v3130 = vrot.slane %v2735, 1
        %v3131 = vor.u32 %v2732, %v3130
        %v3132 = vrot.slane %v2742, 1
        %v3133 = vor.u32 %v2739, %v3132
        %v3134 = vrot.slane %v2749, 1
        %v3135 = vor.u32 %v2746, %v3134
        %v3152 = vsel %vm1518, %v3105, 4286644096
        %v3153 = vsel %vm1518, %v3107, 4286644096
        %v3154 = vsel %vm1518, %v3109, 4286644096
        %v3155 = vsel %vm1518, %v3111, 4286644096
        %v3156 = vsel %vm1518, %v3113, 4286644096
        %v3157 = vsel %vm1518, %v3115, 4286644096
        %v3158 = vsel %vm1518, %v3117, 4286644096
        %v3159 = vsel %vm1518, %v3119, 4286644096
        %v3160 = vsel %vm1518, %v3121, 4286644096
        %v3161 = vsel %vm1518, %v3123, 4286644096
        %v3162 = vsel %vm1518, %v3125, 4286644096
        %v3163 = vsel %vm1518, %v3127, 4286644096
        %v3164 = vsel %vm1518, %v3129, 4286644096
        %v3165 = vsel %vm1518, %v3131, 4286644096
        %v3166 = vsel %vm1518, %v3133, 4286644096
        %v3167 = vsel %vm1518, %v3135, 4286644096
        %v3168 = vunpack.c.l.bf16 %v3072
        %v3169 = vunpack.c.l.bf16 %v3073
        %v3170 = vunpack.c.l.bf16 %v3074
        %v3171 = vunpack.c.l.bf16 %v3075
        %v3172 = vunpack.c.l.bf16 %v3076
        %v3173 = vunpack.c.l.bf16 %v3077
        %v3174 = vunpack.c.l.bf16 %v3078
        %v3175 = vunpack.c.l.bf16 %v3079
        %v3176 = vunpack.c.l.bf16 %v3080
        %v3177 = vunpack.c.l.bf16 %v3081
        %v3178 = vunpack.c.l.bf16 %v3082
        %v3179 = vunpack.c.l.bf16 %v3083
        %v3180 = vunpack.c.l.bf16 %v3084
        %v3181 = vunpack.c.l.bf16 %v3085
        %v3182 = vunpack.c.l.bf16 %v3086
        %v3183 = vunpack.c.l.bf16 %v3087
        %v3184 = vunpack.c.l.bf16 %v3088
        %v3185 = vunpack.c.l.bf16 %v3089
        %v3186 = vunpack.c.l.bf16 %v3090
        %v3187 = vunpack.c.l.bf16 %v3091
        %v3188 = vunpack.c.l.bf16 %v3092
        %v3189 = vunpack.c.l.bf16 %v3093
        %v3190 = vunpack.c.l.bf16 %v3094
        %v3191 = vunpack.c.l.bf16 %v3095
        %v3192 = vunpack.c.l.bf16 %v3096
        %v3193 = vunpack.c.l.bf16 %v3097
        %v3194 = vunpack.c.l.bf16 %v3098
        %v3195 = vunpack.c.l.bf16 %v3099
        %v3196 = vunpack.c.l.bf16 %v3100
        %v3197 = vunpack.c.l.bf16 %v3101
        %v3198 = vunpack.c.l.bf16 %v3102
        %v3199 = vunpack.c.l.bf16 %v3103
        %v3200 = vunpack.c.l.bf16 %v3152
        %v3201 = vunpack.c.h.bf16 %v3152
        %v3202 = vunpack.c.l.bf16 %v3153
        %v3203 = vunpack.c.h.bf16 %v3153
        %v3204 = vunpack.c.l.bf16 %v3154
        %v3205 = vunpack.c.h.bf16 %v3154
        %v3206 = vunpack.c.l.bf16 %v3155
        %v3207 = vunpack.c.h.bf16 %v3155
        %v3208 = vunpack.c.l.bf16 %v3156
        %v3209 = vunpack.c.h.bf16 %v3156
        %v3210 = vunpack.c.l.bf16 %v3157
        %v3211 = vunpack.c.h.bf16 %v3157
        %v3212 = vunpack.c.l.bf16 %v3158
        %v3213 = vunpack.c.h.bf16 %v3158
        %v3214 = vunpack.c.l.bf16 %v3159
        %v3215 = vunpack.c.h.bf16 %v3159
        %v3216 = vunpack.c.l.bf16 %v3160
        %v3217 = vunpack.c.h.bf16 %v3160
        %v3218 = vunpack.c.l.bf16 %v3161
        %v3219 = vunpack.c.h.bf16 %v3161
        %v3220 = vunpack.c.l.bf16 %v3162
        %v3221 = vunpack.c.h.bf16 %v3162
        %v3222 = vunpack.c.l.bf16 %v3163
        %v3223 = vunpack.c.h.bf16 %v3163
        %v3224 = vunpack.c.l.bf16 %v3164
        %v3225 = vunpack.c.h.bf16 %v3164
        %v3226 = vunpack.c.l.bf16 %v3165
        %v3227 = vunpack.c.h.bf16 %v3165
        %v3228 = vunpack.c.l.bf16 %v3166
        %v3229 = vunpack.c.h.bf16 %v3166
        %v3230 = vunpack.c.l.bf16 %v3167
        %v3231 = vunpack.c.h.bf16 %v3167
        %v3232 = vmax.f32 %v3168, %v3200
        %v3233 = vmax.f32 %v3169, %v3201
        %v3234 = vmax.f32 %v3170, %v3202
        %v3235 = vmax.f32 %v3171, %v3203
        %v3236 = vmax.f32 %v3172, %v3204
        %v3237 = vmax.f32 %v3173, %v3205
        %v3238 = vmax.f32 %v3174, %v3206
        %v3239 = vmax.f32 %v3175, %v3207
        %v3240 = vmax.f32 %v3176, %v3208
        %v3241 = vmax.f32 %v3177, %v3209
        %v3242 = vmax.f32 %v3178, %v3210
        %v3243 = vmax.f32 %v3179, %v3211
        %v3244 = vmax.f32 %v3180, %v3212
        %v3245 = vmax.f32 %v3181, %v3213
        %v3246 = vmax.f32 %v3182, %v3214
        %v3247 = vmax.f32 %v3183, %v3215
        %v3248 = vmax.f32 %v3184, %v3216
        %v3249 = vmax.f32 %v3185, %v3217
        %v3250 = vmax.f32 %v3186, %v3218
        %v3251 = vmax.f32 %v3187, %v3219
        %v3252 = vmax.f32 %v3188, %v3220
        %v3253 = vmax.f32 %v3189, %v3221
        %v3254 = vmax.f32 %v3190, %v3222
        %v3255 = vmax.f32 %v3191, %v3223
        %v3256 = vmax.f32 %v3192, %v3224
        %v3257 = vmax.f32 %v3193, %v3225
        %v3258 = vmax.f32 %v3194, %v3226
        %v3259 = vmax.f32 %v3195, %v3227
        %v3260 = vmax.f32 %v3196, %v3228
        %v3261 = vmax.f32 %v3197, %v3229
        %v3262 = vmax.f32 %v3198, %v3230
        %v3263 = vmax.f32 %v3199, %v3231
        %v3264 = vpack.c.bf16 %v3232, %v3232
        %v3265 = vpack.c.bf16 %v3233, %v3233
        %v3266 = vpack.c.bf16 %v3234, %v3234
        %v3267 = vpack.c.bf16 %v3235, %v3235
        %v3268 = vpack.c.bf16 %v3236, %v3236
        %v3269 = vpack.c.bf16 %v3237, %v3237
        %v3270 = vpack.c.bf16 %v3238, %v3238
        %v3271 = vpack.c.bf16 %v3239, %v3239
        %v3272 = vpack.c.bf16 %v3240, %v3240
        %v3273 = vpack.c.bf16 %v3241, %v3241
        %v3274 = vpack.c.bf16 %v3242, %v3242
        %v3275 = vpack.c.bf16 %v3243, %v3243
        %v3276 = vpack.c.bf16 %v3244, %v3244
        %v3277 = vpack.c.bf16 %v3245, %v3245
        %v3278 = vpack.c.bf16 %v3246, %v3246
        %v3279 = vpack.c.bf16 %v3247, %v3247
        %v3280 = vpack.c.bf16 %v3248, %v3248
        %v3281 = vpack.c.bf16 %v3249, %v3249
        %v3282 = vpack.c.bf16 %v3250, %v3250
        %v3283 = vpack.c.bf16 %v3251, %v3251
        %v3284 = vpack.c.bf16 %v3252, %v3252
        %v3285 = vpack.c.bf16 %v3253, %v3253
        %v3286 = vpack.c.bf16 %v3254, %v3254
        %v3287 = vpack.c.bf16 %v3255, %v3255
        %v3288 = vpack.c.bf16 %v3256, %v3256
        %v3289 = vpack.c.bf16 %v3257, %v3257
        %v3290 = vpack.c.bf16 %v3258, %v3258
        %v3291 = vpack.c.bf16 %v3259, %v3259
        %v3292 = vpack.c.bf16 %v3260, %v3260
        %v3293 = vpack.c.bf16 %v3261, %v3261
        %v3294 = vpack.c.bf16 %v3262, %v3262
        %v3295 = vpack.c.bf16 %v3263, %v3263
        %v3296 = vrot.slane %v2624, 1
        %v3297 = vrot.slane %v2625, 1
        %v3298 = vrot.slane %v2626, 1
        %v3299 = vrot.slane %v2627, 1
        %v3300 = vrot.slane %v2628, 1
        %v3301 = vrot.slane %v2629, 1
        %v3302 = vrot.slane %v2630, 1
        %v3303 = vrot.slane %v2631, 1
        %v3304 = vrot.slane %v2632, 1
        %v3305 = vrot.slane %v2633, 1
        %v3306 = vrot.slane %v2634, 1
        %v3307 = vrot.slane %v2635, 1
        %v3308 = vrot.slane %v2636, 1
        %v3309 = vrot.slane %v2637, 1
        %v3310 = vrot.slane %v2638, 1
        %v3311 = vrot.slane %v2639, 1
        %v3313 = vsel %vm1679, %v3296, 4286644096
        %v3316 = vsel %vm1679, %v3297, 4286644096
        %v3319 = vsel %vm1679, %v3298, 4286644096
        %v3322 = vsel %vm1679, %v3299, 4286644096
        %v3325 = vsel %vm1679, %v3300, 4286644096
        %v3328 = vsel %vm1679, %v3301, 4286644096
        %v3331 = vsel %vm1679, %v3302, 4286644096
        %v3334 = vsel %vm1679, %v3303, 4286644096
        %v3337 = vsel %vm1679, %v3304, 4286644096
        %v3340 = vsel %vm1679, %v3305, 4286644096
        %v3343 = vsel %vm1679, %v3306, 4286644096
        %v3346 = vsel %vm1679, %v3307, 4286644096
        %v3349 = vsel %vm1679, %v3308, 4286644096
        %v3352 = vsel %vm1679, %v3309, 4286644096
        %v3355 = vsel %vm1679, %v3310, 4286644096
        %v3358 = vsel %vm1679, %v3311, 4286644096
        %v3360 = vunpack.c.l.bf16 %v3264
        %v3361 = vunpack.c.l.bf16 %v3265
        %v3362 = vunpack.c.l.bf16 %v3266
        %v3363 = vunpack.c.l.bf16 %v3267
        %v3364 = vunpack.c.l.bf16 %v3268
        %v3365 = vunpack.c.l.bf16 %v3269
        %v3366 = vunpack.c.l.bf16 %v3270
        %v3367 = vunpack.c.l.bf16 %v3271
        %v3368 = vunpack.c.l.bf16 %v3272
        %v3369 = vunpack.c.l.bf16 %v3273
        %v3370 = vunpack.c.l.bf16 %v3274
        %v3371 = vunpack.c.l.bf16 %v3275
        %v3372 = vunpack.c.l.bf16 %v3276
        %v3373 = vunpack.c.l.bf16 %v3277
        %v3374 = vunpack.c.l.bf16 %v3278
        %v3375 = vunpack.c.l.bf16 %v3279
        %v3376 = vunpack.c.l.bf16 %v3280
        %v3377 = vunpack.c.l.bf16 %v3281
        %v3378 = vunpack.c.l.bf16 %v3282
        %v3379 = vunpack.c.l.bf16 %v3283
        %v3380 = vunpack.c.l.bf16 %v3284
        %v3381 = vunpack.c.l.bf16 %v3285
        %v3382 = vunpack.c.l.bf16 %v3286
        %v3383 = vunpack.c.l.bf16 %v3287
        %v3384 = vunpack.c.l.bf16 %v3288
        %v3385 = vunpack.c.l.bf16 %v3289
        %v3386 = vunpack.c.l.bf16 %v3290
        %v3387 = vunpack.c.l.bf16 %v3291
        %v3388 = vunpack.c.l.bf16 %v3292
        %v3389 = vunpack.c.l.bf16 %v3293
        %v3390 = vunpack.c.l.bf16 %v3294
        %v3391 = vunpack.c.l.bf16 %v3295
        %v3392 = vunpack.c.l.bf16 %v3313
        %v3393 = vunpack.c.h.bf16 %v3313
        %v3394 = vunpack.c.l.bf16 %v3316
        %v3395 = vunpack.c.h.bf16 %v3316
        %v3396 = vunpack.c.l.bf16 %v3319
        %v3397 = vunpack.c.h.bf16 %v3319
        %v3398 = vunpack.c.l.bf16 %v3322
        %v3399 = vunpack.c.h.bf16 %v3322
        %v3400 = vunpack.c.l.bf16 %v3325
        %v3401 = vunpack.c.h.bf16 %v3325
        %v3402 = vunpack.c.l.bf16 %v3328
        %v3403 = vunpack.c.h.bf16 %v3328
        %v3404 = vunpack.c.l.bf16 %v3331
        %v3405 = vunpack.c.h.bf16 %v3331
        %v3406 = vunpack.c.l.bf16 %v3334
        %v3407 = vunpack.c.h.bf16 %v3334
        %v3408 = vunpack.c.l.bf16 %v3337
        %v3409 = vunpack.c.h.bf16 %v3337
        %v3410 = vunpack.c.l.bf16 %v3340
        %v3411 = vunpack.c.h.bf16 %v3340
        %v3412 = vunpack.c.l.bf16 %v3343
        %v3413 = vunpack.c.h.bf16 %v3343
        %v3414 = vunpack.c.l.bf16 %v3346
        %v3415 = vunpack.c.h.bf16 %v3346
        %v3416 = vunpack.c.l.bf16 %v3349
        %v3417 = vunpack.c.h.bf16 %v3349
        %v3418 = vunpack.c.l.bf16 %v3352
        %v3419 = vunpack.c.h.bf16 %v3352
        %v3420 = vunpack.c.l.bf16 %v3355
        %v3421 = vunpack.c.h.bf16 %v3355
        %v3422 = vunpack.c.l.bf16 %v3358
        %v3423 = vunpack.c.h.bf16 %v3358
        %v3424 = vmax.f32 %v3360, %v3392
        %v3425 = vmax.f32 %v3361, %v3393
        %v3426 = vmax.f32 %v3362, %v3394
        %v3427 = vmax.f32 %v3363, %v3395
        %v3428 = vmax.f32 %v3364, %v3396
        %v3429 = vmax.f32 %v3365, %v3397
        %v3430 = vmax.f32 %v3366, %v3398
        %v3431 = vmax.f32 %v3367, %v3399
        %v3432 = vmax.f32 %v3368, %v3400
        %v3433 = vmax.f32 %v3369, %v3401
        %v3434 = vmax.f32 %v3370, %v3402
        %v3435 = vmax.f32 %v3371, %v3403
        %v3436 = vmax.f32 %v3372, %v3404
        %v3437 = vmax.f32 %v3373, %v3405
        %v3438 = vmax.f32 %v3374, %v3406
        %v3439 = vmax.f32 %v3375, %v3407
        %v3440 = vmax.f32 %v3376, %v3408
        %v3441 = vmax.f32 %v3377, %v3409
        %v3442 = vmax.f32 %v3378, %v3410
        %v3443 = vmax.f32 %v3379, %v3411
        %v3444 = vmax.f32 %v3380, %v3412
        %v3445 = vmax.f32 %v3381, %v3413
        %v3446 = vmax.f32 %v3382, %v3414
        %v3447 = vmax.f32 %v3383, %v3415
        %v3448 = vmax.f32 %v3384, %v3416
        %v3449 = vmax.f32 %v3385, %v3417
        %v3450 = vmax.f32 %v3386, %v3418
        %v3451 = vmax.f32 %v3387, %v3419
        %v3452 = vmax.f32 %v3388, %v3420
        %v3453 = vmax.f32 %v3389, %v3421
        %v3454 = vmax.f32 %v3390, %v3422
        %v3455 = vmax.f32 %v3391, %v3423
        %v3456 = vpack.c.bf16 %v3424, %v3424
        %v3457 = vpack.c.bf16 %v3425, %v3425
        %v3458 = vpack.c.bf16 %v3426, %v3426
        %v3459 = vpack.c.bf16 %v3427, %v3427
        %v3460 = vpack.c.bf16 %v3428, %v3428
        %v3461 = vpack.c.bf16 %v3429, %v3429
        %v3462 = vpack.c.bf16 %v3430, %v3430
        %v3463 = vpack.c.bf16 %v3431, %v3431
        %v3464 = vpack.c.bf16 %v3432, %v3432
        %v3465 = vpack.c.bf16 %v3433, %v3433
        %v3466 = vpack.c.bf16 %v3434, %v3434
        %v3467 = vpack.c.bf16 %v3435, %v3435
        %v3468 = vpack.c.bf16 %v3436, %v3436
        %v3469 = vpack.c.bf16 %v3437, %v3437
        %v3470 = vpack.c.bf16 %v3438, %v3438
        %v3471 = vpack.c.bf16 %v3439, %v3439
        %v3472 = vpack.c.bf16 %v3440, %v3440
        %v3473 = vpack.c.bf16 %v3441, %v3441
        %v3474 = vpack.c.bf16 %v3442, %v3442
        %v3475 = vpack.c.bf16 %v3443, %v3443
        %v3476 = vpack.c.bf16 %v3444, %v3444
        %v3477 = vpack.c.bf16 %v3445, %v3445
        %v3478 = vpack.c.bf16 %v3446, %v3446
        %v3479 = vpack.c.bf16 %v3447, %v3447
        %v3480 = vpack.c.bf16 %v3448, %v3448
        %v3481 = vpack.c.bf16 %v3449, %v3449
        %v3482 = vpack.c.bf16 %v3450, %v3450
        %v3483 = vpack.c.bf16 %v3451, %v3451
        %v3484 = vpack.c.bf16 %v3452, %v3452
        %v3485 = vpack.c.bf16 %v3453, %v3453
        %v3486 = vpack.c.bf16 %v3454, %v3454
        %v3487 = vpack.c.bf16 %v3455, %v3455
        %3488 = vst [vmem:[%s211] sm:$0xf] %v3456
        %3489 = vst [vmem:[%s211 + $0x4] sm:$0xf] %v3457
        %3490 = vst [vmem:[%s211 + $0x8] sm:$0xf] %v3458
        %3491 = vst [vmem:[%s211 + $0xc] sm:$0xf] %v3459
        %3492 = vst [vmem:[%s211 + $0x10] sm:$0xf] %v3460
        %3493 = vst [vmem:[%s211 + $0x14] sm:$0xf] %v3461
        %3494 = vst [vmem:[%s211 + $0x18] sm:$0xf] %v3462
        %3495 = vst [vmem:[%s211 + $0x1c] sm:$0xf] %v3463
        %3496 = vst [vmem:[%s211 + $0x20] sm:$0xf] %v3464
        %3497 = vst [vmem:[%s211 + $0x24] sm:$0xf] %v3465
        %3498 = vst [vmem:[%s211 + $0x28] sm:$0xf] %v3466
        %3499 = vst [vmem:[%s211 + $0x2c] sm:$0xf] %v3467
        %3500 = vst [vmem:[%s211 + $0x30] sm:$0xf] %v3468
        %3501 = vst [vmem:[%s211 + $0x34] sm:$0xf] %v3469
        %3502 = vst [vmem:[%s211 + $0x38] sm:$0xf] %v3470
        %3503 = vst [vmem:[%s211 + $0x3c] sm:$0xf] %v3471
        %3504 = vst [vmem:[%s211 + $0x40] sm:$0xf] %v3472
        %3505 = vst [vmem:[%s211 + $0x44] sm:$0xf] %v3473
        %3506 = vst [vmem:[%s211 + $0x48] sm:$0xf] %v3474
        %3507 = vst [vmem:[%s211 + $0x4c] sm:$0xf] %v3475
        %3508 = vst [vmem:[%s211 + $0x50] sm:$0xf] %v3476
        %3509 = vst [vmem:[%s211 + $0x54] sm:$0xf] %v3477
        %3510 = vst [vmem:[%s211 + $0x58] sm:$0xf] %v3478
        %3511 = vst [vmem:[%s211 + $0x5c] sm:$0xf] %v3479
        %3512 = vst [vmem:[%s211 + $0x60] sm:$0xf] %v3480
        %3513 = vst [vmem:[%s211 + $0x64] sm:$0xf] %v3481
        %3514 = vst [vmem:[%s211 + $0x68] sm:$0xf] %v3482
        %3515 = vst [vmem:[%s211 + $0x6c] sm:$0xf] %v3483
        %3516 = vst [vmem:[%s211 + $0x70] sm:$0xf] %v3484
        %3517 = vst [vmem:[%s211 + $0x74] sm:$0xf] %v3485
        %3518 = vst [vmem:[%s211 + $0x78] sm:$0xf] %v3486
        %3519 = vst [vmem:[%s211 + $0x7c] sm:$0xf] %v3487
        %v3520 = vld [vmem:[#allocation2] sm:$0xf]
        %v3521 = vld [vmem:[#allocation2 + $0x4] sm:$0xf]
        %v3522 = vld [vmem:[#allocation2 + $0x8] sm:$0xf]
        %v3523 = vld [vmem:[#allocation2 + $0xc] sm:$0xf]
        %v3524 = vld [vmem:[#allocation2 + $0x10] sm:$0xf]
        %v3525 = vld [vmem:[#allocation2 + $0x14] sm:$0xf]
        %v3526 = vld [vmem:[#allocation2 + $0x18] sm:$0xf]
        %v3527 = vld [vmem:[#allocation2 + $0x1c] sm:$0xf]
        %v3528 = vld [vmem:[#allocation2 + $0x20] sm:$0xf]
        %v3529 = vld [vmem:[#allocation2 + $0x24] sm:$0xf]
        %v3530 = vld [vmem:[#allocation2 + $0x28] sm:$0xf]
        %v3531 = vld [vmem:[#allocation2 + $0x2c] sm:$0xf]
        %v3532 = vld [vmem:[#allocation2 + $0x30] sm:$0xf]
        %v3533 = vld [vmem:[#allocation2 + $0x34] sm:$0xf]
        %v3534 = vld [vmem:[#allocation2 + $0x38] sm:$0xf]
        %v3535 = vld [vmem:[#allocation2 + $0x3c] sm:$0xf]
        %v3536 = vld [vmem:[#allocation2 + $0x40] sm:$0xf]
        %v3537 = vld [vmem:[#allocation2 + $0x44] sm:$0xf]
        %v3538 = vld [vmem:[#allocation2 + $0x48] sm:$0xf]
        %v3539 = vld [vmem:[#allocation2 + $0x4c] sm:$0xf]
        %v3540 = vld [vmem:[#allocation2 + $0x50] sm:$0xf]
        %v3541 = vld [vmem:[#allocation2 + $0x54] sm:$0xf]
        %v3542 = vld [vmem:[#allocation2 + $0x58] sm:$0xf]
        %v3543 = vld [vmem:[#allocation2 + $0x5c] sm:$0xf]
        %v3544 = vld [vmem:[#allocation2 + $0x60] sm:$0xf]
        %v3545 = vld [vmem:[#allocation2 + $0x64] sm:$0xf]
        %v3546 = vld [vmem:[#allocation2 + $0x68] sm:$0xf]
        %v3547 = vld [vmem:[#allocation2 + $0x6c] sm:$0xf]
        %v3548 = vld [vmem:[#allocation2 + $0x70] sm:$0xf]
        %v3549 = vld [vmem:[#allocation2 + $0x74] sm:$0xf]
        %v3550 = vld [vmem:[#allocation2 + $0x78] sm:$0xf]
        %v3551 = vld [vmem:[#allocation2 + $0x7c] sm:$0xf]
        %v3552 = vld [vmem:[%s276] sm:$0xf]
        %v3553 = vld [vmem:[%s276 + $0x4] sm:$0xf]
        %v3554 = vld [vmem:[%s276 + $0x8] sm:$0xf]
        %v3555 = vld [vmem:[%s276 + $0xc] sm:$0xf]
        %v3556 = vld [vmem:[%s276 + $0x10] sm:$0xf]
        %v3557 = vld [vmem:[%s276 + $0x14] sm:$0xf]
        %v3558 = vld [vmem:[%s276 + $0x18] sm:$0xf]
        %v3559 = vld [vmem:[%s276 + $0x1c] sm:$0xf]
        %v3560 = vld [vmem:[%s276 + $0x20] sm:$0xf]
        %v3561 = vld [vmem:[%s276 + $0x24] sm:$0xf]
        %v3562 = vld [vmem:[%s276 + $0x28] sm:$0xf]
        %v3563 = vld [vmem:[%s276 + $0x2c] sm:$0xf]
        %v3564 = vld [vmem:[%s276 + $0x30] sm:$0xf]
        %v3565 = vld [vmem:[%s276 + $0x34] sm:$0xf]
        %v3566 = vld [vmem:[%s276 + $0x38] sm:$0xf]
        %v3567 = vld [vmem:[%s276 + $0x3c] sm:$0xf]
        %v3568 = vld [vmem:[%s276 + $0x40] sm:$0xf]
        %v3569 = vld [vmem:[%s276 + $0x44] sm:$0xf]
        %v3570 = vld [vmem:[%s276 + $0x48] sm:$0xf]
        %v3571 = vld [vmem:[%s276 + $0x4c] sm:$0xf]
        %v3572 = vld [vmem:[%s276 + $0x50] sm:$0xf]
        %v3573 = vld [vmem:[%s276 + $0x54] sm:$0xf]
        %v3574 = vld [vmem:[%s276 + $0x58] sm:$0xf]
        %v3575 = vld [vmem:[%s276 + $0x5c] sm:$0xf]
        %v3576 = vld [vmem:[%s276 + $0x60] sm:$0xf]
        %v3577 = vld [vmem:[%s276 + $0x64] sm:$0xf]
        %v3578 = vld [vmem:[%s276 + $0x68] sm:$0xf]
        %v3579 = vld [vmem:[%s276 + $0x6c] sm:$0xf]
        %v3580 = vld [vmem:[%s276 + $0x70] sm:$0xf]
        %v3581 = vld [vmem:[%s276 + $0x74] sm:$0xf]
        %v3582 = vld [vmem:[%s276 + $0x78] sm:$0xf]
        %v3583 = vld [vmem:[%s276 + $0x7c] sm:$0xf]
        %v3584 = vunpack.c.l.bf16 %v3520
        %v3585 = vunpack.c.l.bf16 %v3521
        %v3586 = vunpack.c.l.bf16 %v3522
        %v3587 = vunpack.c.l.bf16 %v3523
        %v3588 = vunpack.c.l.bf16 %v3524
        %v3589 = vunpack.c.l.bf16 %v3525
        %v3590 = vunpack.c.l.bf16 %v3526
        %v3591 = vunpack.c.l.bf16 %v3527
        %v3592 = vunpack.c.l.bf16 %v3528
        %v3593 = vunpack.c.l.bf16 %v3529
        %v3594 = vunpack.c.l.bf16 %v3530
        %v3595 = vunpack.c.l.bf16 %v3531
        %v3596 = vunpack.c.l.bf16 %v3532
        %v3597 = vunpack.c.l.bf16 %v3533
        %v3598 = vunpack.c.l.bf16 %v3534
        %v3599 = vunpack.c.l.bf16 %v3535
        %v3600 = vunpack.c.l.bf16 %v3536
        %v3601 = vunpack.c.l.bf16 %v3537
        %v3602 = vunpack.c.l.bf16 %v3538
        %v3603 = vunpack.c.l.bf16 %v3539
        %v3604 = vunpack.c.l.bf16 %v3540
        %v3605 = vunpack.c.l.bf16 %v3541
        %v3606 = vunpack.c.l.bf16 %v3542
        %v3607 = vunpack.c.l.bf16 %v3543
        %v3608 = vunpack.c.l.bf16 %v3544
        %v3609 = vunpack.c.l.bf16 %v3545
        %v3610 = vunpack.c.l.bf16 %v3546
        %v3611 = vunpack.c.l.bf16 %v3547
        %v3612 = vunpack.c.l.bf16 %v3548
        %v3613 = vunpack.c.l.bf16 %v3549
        %v3614 = vunpack.c.l.bf16 %v3550
        %v3615 = vunpack.c.l.bf16 %v3551
        %v3616 = vunpack.c.l.bf16 %v3552
        %v3617 = vunpack.c.l.bf16 %v3553
        %v3618 = vunpack.c.l.bf16 %v3554
        %v3619 = vunpack.c.l.bf16 %v3555
        %v3620 = vunpack.c.l.bf16 %v3556
        %v3621 = vunpack.c.l.bf16 %v3557
        %v3622 = vunpack.c.l.bf16 %v3558
        %v3623 = vunpack.c.l.bf16 %v3559
        %v3624 = vunpack.c.l.bf16 %v3560
        %v3625 = vunpack.c.l.bf16 %v3561
        %v3626 = vunpack.c.l.bf16 %v3562
        %v3627 = vunpack.c.l.bf16 %v3563
        %v3628 = vunpack.c.l.bf16 %v3564
        %v3629 = vunpack.c.l.bf16 %v3565
        %v3630 = vunpack.c.l.bf16 %v3566
        %v3631 = vunpack.c.l.bf16 %v3567
        %v3632 = vunpack.c.l.bf16 %v3568
        %v3633 = vunpack.c.l.bf16 %v3569
        %v3634 = vunpack.c.l.bf16 %v3570
        %v3635 = vunpack.c.l.bf16 %v3571
        %v3636 = vunpack.c.l.bf16 %v3572
        %v3637 = vunpack.c.l.bf16 %v3573
        %v3638 = vunpack.c.l.bf16 %v3574
        %v3639 = vunpack.c.l.bf16 %v3575
        %v3640 = vunpack.c.l.bf16 %v3576
        %v3641 = vunpack.c.l.bf16 %v3577
        %v3642 = vunpack.c.l.bf16 %v3578
        %v3643 = vunpack.c.l.bf16 %v3579
        %v3644 = vunpack.c.l.bf16 %v3580
        %v3645 = vunpack.c.l.bf16 %v3581
        %v3646 = vunpack.c.l.bf16 %v3582
        %v3647 = vunpack.c.l.bf16 %v3583
        %v3648 = vmax.f32 %v3584, %v3616
        %v3649 = vmax.f32 %v3585, %v3617
        %v3650 = vmax.f32 %v3586, %v3618
        %v3651 = vmax.f32 %v3587, %v3619
        %v3652 = vmax.f32 %v3588, %v3620
        %v3653 = vmax.f32 %v3589, %v3621
        %v3654 = vmax.f32 %v3590, %v3622
        %v3655 = vmax.f32 %v3591, %v3623
        %v3656 = vmax.f32 %v3592, %v3624
        %v3657 = vmax.f32 %v3593, %v3625
        %v3658 = vmax.f32 %v3594, %v3626
        %v3659 = vmax.f32 %v3595, %v3627
        %v3660 = vmax.f32 %v3596, %v3628
        %v3661 = vmax.f32 %v3597, %v3629
        %v3662 = vmax.f32 %v3598, %v3630
        %v3663 = vmax.f32 %v3599, %v3631
        %v3664 = vmax.f32 %v3600, %v3632
        %v3665 = vmax.f32 %v3601, %v3633
        %v3666 = vmax.f32 %v3602, %v3634
        %v3667 = vmax.f32 %v3603, %v3635
        %v3668 = vmax.f32 %v3604, %v3636
        %v3669 = vmax.f32 %v3605, %v3637
        %v3670 = vmax.f32 %v3606, %v3638
        %v3671 = vmax.f32 %v3607, %v3639
        %v3672 = vmax.f32 %v3608, %v3640
        %v3673 = vmax.f32 %v3609, %v3641
        %v3674 = vmax.f32 %v3610, %v3642
        %v3675 = vmax.f32 %v3611, %v3643
        %v3676 = vmax.f32 %v3612, %v3644
        %v3677 = vmax.f32 %v3613, %v3645
        %v3678 = vmax.f32 %v3614, %v3646
        %v3679 = vmax.f32 %v3615, %v3647
        %v3680 = vpack.c.bf16 %v3648, %v3648
        %v3681 = vpack.c.bf16 %v3649, %v3649
        %v3682 = vpack.c.bf16 %v3650, %v3650
        %v3683 = vpack.c.bf16 %v3651, %v3651
        %v3684 = vpack.c.bf16 %v3652, %v3652
        %v3685 = vpack.c.bf16 %v3653, %v3653
        %v3686 = vpack.c.bf16 %v3654, %v3654
        %v3687 = vpack.c.bf16 %v3655, %v3655
        %v3688 = vpack.c.bf16 %v3656, %v3656
        %v3689 = vpack.c.bf16 %v3657, %v3657
        %v3690 = vpack.c.bf16 %v3658, %v3658
        %v3691 = vpack.c.bf16 %v3659, %v3659
        %v3692 = vpack.c.bf16 %v3660, %v3660
        %v3693 = vpack.c.bf16 %v3661, %v3661
        %v3694 = vpack.c.bf16 %v3662, %v3662
        %v3695 = vpack.c.bf16 %v3663, %v3663
        %v3696 = vpack.c.bf16 %v3664, %v3664
        %v3697 = vpack.c.bf16 %v3665, %v3665
        %v3698 = vpack.c.bf16 %v3666, %v3666
        %v3699 = vpack.c.bf16 %v3667, %v3667
        %v3700 = vpack.c.bf16 %v3668, %v3668
        %v3701 = vpack.c.bf16 %v3669, %v3669
        %v3702 = vpack.c.bf16 %v3670, %v3670
        %v3703 = vpack.c.bf16 %v3671, %v3671
        %v3704 = vpack.c.bf16 %v3672, %v3672
        %v3705 = vpack.c.bf16 %v3673, %v3673
        %v3706 = vpack.c.bf16 %v3674, %v3674
        %v3707 = vpack.c.bf16 %v3675, %v3675
        %v3708 = vpack.c.bf16 %v3676, %v3676
        %v3709 = vpack.c.bf16 %v3677, %v3677
        %v3710 = vpack.c.bf16 %v3678, %v3678
        %v3711 = vpack.c.bf16 %v3679, %v3679
        %v3712 = vld [vmem:[%s211] sm:$0xf]
        %v3713 = vld [vmem:[%s211 + $0x4] sm:$0xf]
        %v3714 = vld [vmem:[%s211 + $0x8] sm:$0xf]
        %v3715 = vld [vmem:[%s211 + $0xc] sm:$0xf]
        %v3716 = vld [vmem:[%s211 + $0x10] sm:$0xf]
        %v3717 = vld [vmem:[%s211 + $0x14] sm:$0xf]
        %v3718 = vld [vmem:[%s211 + $0x18] sm:$0xf]
        %v3719 = vld [vmem:[%s211 + $0x1c] sm:$0xf]
        %v3720 = vld [vmem:[%s211 + $0x20] sm:$0xf]
        %v3721 = vld [vmem:[%s211 + $0x24] sm:$0xf]
        %v3722 = vld [vmem:[%s211 + $0x28] sm:$0xf]
        %v3723 = vld [vmem:[%s211 + $0x2c] sm:$0xf]
        %v3724 = vld [vmem:[%s211 + $0x30] sm:$0xf]
        %v3725 = vld [vmem:[%s211 + $0x34] sm:$0xf]
        %v3726 = vld [vmem:[%s211 + $0x38] sm:$0xf]
        %v3727 = vld [vmem:[%s211 + $0x3c] sm:$0xf]
        %v3728 = vld [vmem:[%s211 + $0x40] sm:$0xf]
        %v3729 = vld [vmem:[%s211 + $0x44] sm:$0xf]
        %v3730 = vld [vmem:[%s211 + $0x48] sm:$0xf]
        %v3731 = vld [vmem:[%s211 + $0x4c] sm:$0xf]
        %v3732 = vld [vmem:[%s211 + $0x50] sm:$0xf]
        %v3733 = vld [vmem:[%s211 + $0x54] sm:$0xf]
        %v3734 = vld [vmem:[%s211 + $0x58] sm:$0xf]
        %v3735 = vld [vmem:[%s211 + $0x5c] sm:$0xf]
        %v3736 = vld [vmem:[%s211 + $0x60] sm:$0xf]
        %v3737 = vld [vmem:[%s211 + $0x64] sm:$0xf]
        %v3738 = vld [vmem:[%s211 + $0x68] sm:$0xf]
        %v3739 = vld [vmem:[%s211 + $0x6c] sm:$0xf]
        %v3740 = vld [vmem:[%s211 + $0x70] sm:$0xf]
        %v3741 = vld [vmem:[%s211 + $0x74] sm:$0xf]
        %v3742 = vld [vmem:[%s211 + $0x78] sm:$0xf]
        %v3743 = vld [vmem:[%s211 + $0x7c] sm:$0xf]
        %v3744 = vunpack.c.l.bf16 %v3680
        %v3745 = vunpack.c.l.bf16 %v3681
        %v3746 = vunpack.c.l.bf16 %v3682
        %v3747 = vunpack.c.l.bf16 %v3683
        %v3748 = vunpack.c.l.bf16 %v3684
        %v3749 = vunpack.c.l.bf16 %v3685
        %v3750 = vunpack.c.l.bf16 %v3686
        %v3751 = vunpack.c.l.bf16 %v3687
        %v3752 = vunpack.c.l.bf16 %v3688
        %v3753 = vunpack.c.l.bf16 %v3689
        %v3754 = vunpack.c.l.bf16 %v3690
        %v3755 = vunpack.c.l.bf16 %v3691
        %v3756 = vunpack.c.l.bf16 %v3692
        %v3757 = vunpack.c.l.bf16 %v3693
        %v3758 = vunpack.c.l.bf16 %v3694
        %v3759 = vunpack.c.l.bf16 %v3695
        %v3760 = vunpack.c.l.bf16 %v3696
        %v3761 = vunpack.c.l.bf16 %v3697
        %v3762 = vunpack.c.l.bf16 %v3698
        %v3763 = vunpack.c.l.bf16 %v3699
        %v3764 = vunpack.c.l.bf16 %v3700
        %v3765 = vunpack.c.l.bf16 %v3701
        %v3766 = vunpack.c.l.bf16 %v3702
        %v3767 = vunpack.c.l.bf16 %v3703
        %v3768 = vunpack.c.l.bf16 %v3704
        %v3769 = vunpack.c.l.bf16 %v3705
        %v3770 = vunpack.c.l.bf16 %v3706
        %v3771 = vunpack.c.l.bf16 %v3707
        %v3772 = vunpack.c.l.bf16 %v3708
        %v3773 = vunpack.c.l.bf16 %v3709
        %v3774 = vunpack.c.l.bf16 %v3710
        %v3775 = vunpack.c.l.bf16 %v3711
        %v3776 = vunpack.c.l.bf16 %v3712
        %v3777 = vunpack.c.l.bf16 %v3713
        %v3778 = vunpack.c.l.bf16 %v3714
        %v3779 = vunpack.c.l.bf16 %v3715
        %v3780 = vunpack.c.l.bf16 %v3716
        %v3781 = vunpack.c.l.bf16 %v3717
        %v3782 = vunpack.c.l.bf16 %v3718
        %v3783 = vunpack.c.l.bf16 %v3719
        %v3784 = vunpack.c.l.bf16 %v3720
        %v3785 = vunpack.c.l.bf16 %v3721
        %v3786 = vunpack.c.l.bf16 %v3722
        %v3787 = vunpack.c.l.bf16 %v3723
        %v3788 = vunpack.c.l.bf16 %v3724
        %v3789 = vunpack.c.l.bf16 %v3725
        %v3790 = vunpack.c.l.bf16 %v3726
        %v3791 = vunpack.c.l.bf16 %v3727
        %v3792 = vunpack.c.l.bf16 %v3728
        %v3793 = vunpack.c.l.bf16 %v3729
        %v3794 = vunpack.c.l.bf16 %v3730
        %v3795 = vunpack.c.l.bf16 %v3731
        %v3796 = vunpack.c.l.bf16 %v3732
        %v3797 = vunpack.c.l.bf16 %v3733
        %v3798 = vunpack.c.l.bf16 %v3734
        %v3799 = vunpack.c.l.bf16 %v3735
        %v3800 = vunpack.c.l.bf16 %v3736
        %v3801 = vunpack.c.l.bf16 %v3737
        %v3802 = vunpack.c.l.bf16 %v3738
        %v3803 = vunpack.c.l.bf16 %v3739
        %v3804 = vunpack.c.l.bf16 %v3740
        %v3805 = vunpack.c.l.bf16 %v3741
        %v3806 = vunpack.c.l.bf16 %v3742
        %v3807 = vunpack.c.l.bf16 %v3743
        %v3808 = vmax.f32 %v3744, %v3776
        %v3809 = vmax.f32 %v3745, %v3777
        %v3810 = vmax.f32 %v3746, %v3778
        %v3811 = vmax.f32 %v3747, %v3779
        %v3812 = vmax.f32 %v3748, %v3780
        %v3813 = vmax.f32 %v3749, %v3781
        %v3814 = vmax.f32 %v3750, %v3782
        %v3815 = vmax.f32 %v3751, %v3783
        %v3816 = vmax.f32 %v3752, %v3784
        %v3817 = vmax.f32 %v3753, %v3785
        %v3818 = vmax.f32 %v3754, %v3786
        %v3819 = vmax.f32 %v3755, %v3787
        %v3820 = vmax.f32 %v3756, %v3788
        %v3821 = vmax.f32 %v3757, %v3789
        %v3822 = vmax.f32 %v3758, %v3790
        %v3823 = vmax.f32 %v3759, %v3791
        %v3824 = vmax.f32 %v3760, %v3792
        %v3825 = vmax.f32 %v3761, %v3793
        %v3826 = vmax.f32 %v3762, %v3794
        %v3827 = vmax.f32 %v3763, %v3795
        %v3828 = vmax.f32 %v3764, %v3796
        %v3829 = vmax.f32 %v3765, %v3797
        %v3830 = vmax.f32 %v3766, %v3798
        %v3831 = vmax.f32 %v3767, %v3799
        %v3832 = vmax.f32 %v3768, %v3800
        %v3833 = vmax.f32 %v3769, %v3801
        %v3834 = vmax.f32 %v3770, %v3802
        %v3835 = vmax.f32 %v3771, %v3803
        %v3836 = vmax.f32 %v3772, %v3804
        %v3837 = vmax.f32 %v3773, %v3805
        %v3838 = vmax.f32 %v3774, %v3806
        %v3839 = vmax.f32 %v3775, %v3807
        %v3840 = vpack.c.bf16 %v3808, %v3808
        %v3841 = vpack.c.bf16 %v3809, %v3809
        %v3842 = vpack.c.bf16 %v3810, %v3810
        %v3843 = vpack.c.bf16 %v3811, %v3811
        %v3844 = vpack.c.bf16 %v3812, %v3812
        %v3845 = vpack.c.bf16 %v3813, %v3813
        %v3846 = vpack.c.bf16 %v3814, %v3814
        %v3847 = vpack.c.bf16 %v3815, %v3815
        %v3848 = vpack.c.bf16 %v3816, %v3816
        %v3849 = vpack.c.bf16 %v3817, %v3817
        %v3850 = vpack.c.bf16 %v3818, %v3818
        %v3851 = vpack.c.bf16 %v3819, %v3819
        %v3852 = vpack.c.bf16 %v3820, %v3820
        %v3853 = vpack.c.bf16 %v3821, %v3821
        %v3854 = vpack.c.bf16 %v3822, %v3822
        %v3855 = vpack.c.bf16 %v3823, %v3823
        %v3856 = vpack.c.bf16 %v3824, %v3824
        %v3857 = vpack.c.bf16 %v3825, %v3825
        %v3858 = vpack.c.bf16 %v3826, %v3826
        %v3859 = vpack.c.bf16 %v3827, %v3827
        %v3860 = vpack.c.bf16 %v3828, %v3828
        %v3861 = vpack.c.bf16 %v3829, %v3829
        %v3862 = vpack.c.bf16 %v3830, %v3830
        %v3863 = vpack.c.bf16 %v3831, %v3831
        %v3864 = vpack.c.bf16 %v3832, %v3832
        %v3865 = vpack.c.bf16 %v3833, %v3833
        %v3866 = vpack.c.bf16 %v3834, %v3834
        %v3867 = vpack.c.bf16 %v3835, %v3835
        %v3868 = vpack.c.bf16 %v3836, %v3836
        %v3869 = vpack.c.bf16 %v3837, %v3837
        %v3870 = vpack.c.bf16 %v3838, %v3838
        %v3871 = vpack.c.bf16 %v3839, %v3839
        %v3872 = vld [vmem:[%s597] sm:$0xf]
        %v3873 = vld [vmem:[%s597 + $0x4] sm:$0xf]
        %v3874 = vld [vmem:[%s597 + $0x8] sm:$0xf]
        %v3875 = vld [vmem:[%s597 + $0xc] sm:$0xf]
        %v3876 = vld [vmem:[%s597 + $0x10] sm:$0xf]
        %v3877 = vld [vmem:[%s597 + $0x14] sm:$0xf]
        %v3878 = vld [vmem:[%s597 + $0x18] sm:$0xf]
        %v3879 = vld [vmem:[%s597 + $0x1c] sm:$0xf]
        %v3880 = vld [vmem:[%s597 + $0x20] sm:$0xf]
        %v3881 = vld [vmem:[%s597 + $0x24] sm:$0xf]
        %v3882 = vld [vmem:[%s597 + $0x28] sm:$0xf]
        %v3883 = vld [vmem:[%s597 + $0x2c] sm:$0xf]
        %v3884 = vld [vmem:[%s597 + $0x30] sm:$0xf]
        %v3885 = vld [vmem:[%s597 + $0x34] sm:$0xf]
        %v3886 = vld [vmem:[%s597 + $0x38] sm:$0xf]
        %v3887 = vld [vmem:[%s597 + $0x3c] sm:$0xf]
        %v3888 = vld [vmem:[%s597 + $0x40] sm:$0xf]
        %v3889 = vld [vmem:[%s597 + $0x44] sm:$0xf]
        %v3890 = vld [vmem:[%s597 + $0x48] sm:$0xf]
        %v3891 = vld [vmem:[%s597 + $0x4c] sm:$0xf]
        %v3892 = vld [vmem:[%s597 + $0x50] sm:$0xf]
        %v3893 = vld [vmem:[%s597 + $0x54] sm:$0xf]
        %v3894 = vld [vmem:[%s597 + $0x58] sm:$0xf]
        %v3895 = vld [vmem:[%s597 + $0x5c] sm:$0xf]
        %v3896 = vld [vmem:[%s597 + $0x60] sm:$0xf]
        %v3897 = vld [vmem:[%s597 + $0x64] sm:$0xf]
        %v3898 = vld [vmem:[%s597 + $0x68] sm:$0xf]
        %v3899 = vld [vmem:[%s597 + $0x6c] sm:$0xf]
        %v3900 = vld [vmem:[%s597 + $0x70] sm:$0xf]
        %v3901 = vld [vmem:[%s597 + $0x74] sm:$0xf]
        %v3902 = vld [vmem:[%s597 + $0x78] sm:$0xf]
        %v3903 = vld [vmem:[%s597 + $0x7c] sm:$0xf]
        %v3904 = vunpack.c.l.bf16 %v3840
        %v3905 = vunpack.c.l.bf16 %v3841
        %v3906 = vunpack.c.l.bf16 %v3842
        %v3907 = vunpack.c.l.bf16 %v3843
        %v3908 = vunpack.c.l.bf16 %v3844
        %v3909 = vunpack.c.l.bf16 %v3845
        %v3910 = vunpack.c.l.bf16 %v3846
        %v3911 = vunpack.c.l.bf16 %v3847
        %v3912 = vunpack.c.l.bf16 %v3848
        %v3913 = vunpack.c.l.bf16 %v3849
        %v3914 = vunpack.c.l.bf16 %v3850
        %v3915 = vunpack.c.l.bf16 %v3851
        %v3916 = vunpack.c.l.bf16 %v3852
        %v3917 = vunpack.c.l.bf16 %v3853
        %v3918 = vunpack.c.l.bf16 %v3854
        %v3919 = vunpack.c.l.bf16 %v3855
        %v3920 = vunpack.c.l.bf16 %v3856
        %v3921 = vunpack.c.l.bf16 %v3857
        %v3922 = vunpack.c.l.bf16 %v3858
        %v3923 = vunpack.c.l.bf16 %v3859
        %v3924 = vunpack.c.l.bf16 %v3860
        %v3925 = vunpack.c.l.bf16 %v3861
        %v3926 = vunpack.c.l.bf16 %v3862
        %v3927 = vunpack.c.l.bf16 %v3863
        %v3928 = vunpack.c.l.bf16 %v3864
        %v3929 = vunpack.c.l.bf16 %v3865
        %v3930 = vunpack.c.l.bf16 %v3866
        %v3931 = vunpack.c.l.bf16 %v3867
        %v3932 = vunpack.c.l.bf16 %v3868
        %v3933 = vunpack.c.l.bf16 %v3869
        %v3934 = vunpack.c.l.bf16 %v3870
        %v3935 = vunpack.c.l.bf16 %v3871
        %v3936 = vunpack.c.l.bf16 %v3872
        %v3937 = vunpack.c.l.bf16 %v3873
        %v3938 = vunpack.c.l.bf16 %v3874
        %v3939 = vunpack.c.l.bf16 %v3875
        %v3940 = vunpack.c.l.bf16 %v3876
        %v3941 = vunpack.c.l.bf16 %v3877
        %v3942 = vunpack.c.l.bf16 %v3878
        %v3943 = vunpack.c.l.bf16 %v3879
        %v3944 = vunpack.c.l.bf16 %v3880
        %v3945 = vunpack.c.l.bf16 %v3881
        %v3946 = vunpack.c.l.bf16 %v3882
        %v3947 = vunpack.c.l.bf16 %v3883
        %v3948 = vunpack.c.l.bf16 %v3884
        %v3949 = vunpack.c.l.bf16 %v3885
        %v3950 = vunpack.c.l.bf16 %v3886
        %v3951 = vunpack.c.l.bf16 %v3887
        %v3952 = vunpack.c.l.bf16 %v3888
        %v3953 = vunpack.c.l.bf16 %v3889
        %v3954 = vunpack.c.l.bf16 %v3890
        %v3955 = vunpack.c.l.bf16 %v3891
        %v3956 = vunpack.c.l.bf16 %v3892
        %v3957 = vunpack.c.l.bf16 %v3893
        %v3958 = vunpack.c.l.bf16 %v3894
        %v3959 = vunpack.c.l.bf16 %v3895
        %v3960 = vunpack.c.l.bf16 %v3896
        %v3961 = vunpack.c.l.bf16 %v3897
        %v3962 = vunpack.c.l.bf16 %v3898
        %v3963 = vunpack.c.l.bf16 %v3899
        %v3964 = vunpack.c.l.bf16 %v3900
        %v3965 = vunpack.c.l.bf16 %v3901
        %v3966 = vunpack.c.l.bf16 %v3902
        %v3967 = vunpack.c.l.bf16 %v3903
        %v3968 = vmax.f32 %v3904, %v3936
        %v3969 = vmax.f32 %v3905, %v3937
        %v3970 = vmax.f32 %v3906, %v3938
        %v3971 = vmax.f32 %v3907, %v3939
        %v3972 = vmax.f32 %v3908, %v3940
        %v3973 = vmax.f32 %v3909, %v3941
        %v3974 = vmax.f32 %v3910, %v3942
        %v3975 = vmax.f32 %v3911, %v3943
        %v3976 = vmax.f32 %v3912, %v3944
        %v3977 = vmax.f32 %v3913, %v3945
        %v3978 = vmax.f32 %v3914, %v3946
        %v3979 = vmax.f32 %v3915, %v3947
        %v3980 = vmax.f32 %v3916, %v3948
        %v3981 = vmax.f32 %v3917, %v3949
        %v3982 = vmax.f32 %v3918, %v3950
        %v3983 = vmax.f32 %v3919, %v3951
        %v3984 = vmax.f32 %v3920, %v3952
        %v3985 = vmax.f32 %v3921, %v3953
        %v3986 = vmax.f32 %v3922, %v3954
        %v3987 = vmax.f32 %v3923, %v3955
        %v3988 = vmax.f32 %v3924, %v3956
        %v3989 = vmax.f32 %v3925, %v3957
        %v3990 = vmax.f32 %v3926, %v3958
        %v3991 = vmax.f32 %v3927, %v3959
        %v3992 = vmax.f32 %v3928, %v3960
        %v3993 = vmax.f32 %v3929, %v3961
        %v3994 = vmax.f32 %v3930, %v3962
        %v3995 = vmax.f32 %v3931, %v3963
        %v3996 = vmax.f32 %v3932, %v3964
        %v3997 = vmax.f32 %v3933, %v3965
        %v3998 = vmax.f32 %v3934, %v3966
        %v3999 = vmax.f32 %v3935, %v3967
        %v4000 = vpack.c.bf16 %v3968, %v3968
        %v4001 = vpack.c.bf16 %v3969, %v3969
        %v4002 = vpack.c.bf16 %v3970, %v3970
        %v4003 = vpack.c.bf16 %v3971, %v3971
        %v4004 = vpack.c.bf16 %v3972, %v3972
        %v4005 = vpack.c.bf16 %v3973, %v3973
        %v4006 = vpack.c.bf16 %v3974, %v3974
        %v4007 = vpack.c.bf16 %v3975, %v3975
        %v4008 = vpack.c.bf16 %v3976, %v3976
        %v4009 = vpack.c.bf16 %v3977, %v3977
        %v4010 = vpack.c.bf16 %v3978, %v3978
        %v4011 = vpack.c.bf16 %v3979, %v3979
        %v4012 = vpack.c.bf16 %v3980, %v3980
        %v4013 = vpack.c.bf16 %v3981, %v3981
        %v4014 = vpack.c.bf16 %v3982, %v3982
        %v4015 = vpack.c.bf16 %v3983, %v3983
        %v4016 = vpack.c.bf16 %v3984, %v3984
        %v4017 = vpack.c.bf16 %v3985, %v3985
        %v4018 = vpack.c.bf16 %v3986, %v3986
        %v4019 = vpack.c.bf16 %v3987, %v3987
        %v4020 = vpack.c.bf16 %v3988, %v3988
        %v4021 = vpack.c.bf16 %v3989, %v3989
        %v4022 = vpack.c.bf16 %v3990, %v3990
        %v4023 = vpack.c.bf16 %v3991, %v3991
        %v4024 = vpack.c.bf16 %v3992, %v3992
        %v4025 = vpack.c.bf16 %v3993, %v3993
        %v4026 = vpack.c.bf16 %v3994, %v3994
        %v4027 = vpack.c.bf16 %v3995, %v3995
        %v4028 = vpack.c.bf16 %v3996, %v3996
        %v4029 = vpack.c.bf16 %v3997, %v3997
        %v4030 = vpack.c.bf16 %v3998, %v3998
        %v4031 = vpack.c.bf16 %v3999, %v3999
        %v4032 = vld [vmem:[%s758] sm:$0xf]
        %v4033 = vld [vmem:[%s758 + $0x4] sm:$0xf]
        %v4034 = vld [vmem:[%s758 + $0x8] sm:$0xf]
        %v4035 = vld [vmem:[%s758 + $0xc] sm:$0xf]
        %v4036 = vld [vmem:[%s758 + $0x10] sm:$0xf]
        %v4037 = vld [vmem:[%s758 + $0x14] sm:$0xf]
        %v4038 = vld [vmem:[%s758 + $0x18] sm:$0xf]
        %v4039 = vld [vmem:[%s758 + $0x1c] sm:$0xf]
        %v4040 = vld [vmem:[%s758 + $0x20] sm:$0xf]
        %v4041 = vld [vmem:[%s758 + $0x24] sm:$0xf]
        %v4042 = vld [vmem:[%s758 + $0x28] sm:$0xf]
        %v4043 = vld [vmem:[%s758 + $0x2c] sm:$0xf]
        %v4044 = vld [vmem:[%s758 + $0x30] sm:$0xf]
        %v4045 = vld [vmem:[%s758 + $0x34] sm:$0xf]
        %v4046 = vld [vmem:[%s758 + $0x38] sm:$0xf]
        %v4047 = vld [vmem:[%s758 + $0x3c] sm:$0xf]
        %v4048 = vld [vmem:[%s758 + $0x40] sm:$0xf]
        %v4049 = vld [vmem:[%s758 + $0x44] sm:$0xf]
        %v4050 = vld [vmem:[%s758 + $0x48] sm:$0xf]
        %v4051 = vld [vmem:[%s758 + $0x4c] sm:$0xf]
        %v4052 = vld [vmem:[%s758 + $0x50] sm:$0xf]
        %v4053 = vld [vmem:[%s758 + $0x54] sm:$0xf]
        %v4054 = vld [vmem:[%s758 + $0x58] sm:$0xf]
        %v4055 = vld [vmem:[%s758 + $0x5c] sm:$0xf]
        %v4056 = vld [vmem:[%s758 + $0x60] sm:$0xf]
        %v4057 = vld [vmem:[%s758 + $0x64] sm:$0xf]
        %v4058 = vld [vmem:[%s758 + $0x68] sm:$0xf]
        %v4059 = vld [vmem:[%s758 + $0x6c] sm:$0xf]
        %v4060 = vld [vmem:[%s758 + $0x70] sm:$0xf]
        %v4061 = vld [vmem:[%s758 + $0x74] sm:$0xf]
        %v4062 = vld [vmem:[%s758 + $0x78] sm:$0xf]
        %v4063 = vld [vmem:[%s758 + $0x7c] sm:$0xf]
        %v4064 = vunpack.c.l.bf16 %v4000
        %v4065 = vunpack.c.l.bf16 %v4001
        %v4066 = vunpack.c.l.bf16 %v4002
        %v4067 = vunpack.c.l.bf16 %v4003
        %v4068 = vunpack.c.l.bf16 %v4004
        %v4069 = vunpack.c.l.bf16 %v4005
        %v4070 = vunpack.c.l.bf16 %v4006
        %v4071 = vunpack.c.l.bf16 %v4007
        %v4072 = vunpack.c.l.bf16 %v4008
        %v4073 = vunpack.c.l.bf16 %v4009
        %v4074 = vunpack.c.l.bf16 %v4010
        %v4075 = vunpack.c.l.bf16 %v4011
        %v4076 = vunpack.c.l.bf16 %v4012
        %v4077 = vunpack.c.l.bf16 %v4013
        %v4078 = vunpack.c.l.bf16 %v4014
        %v4079 = vunpack.c.l.bf16 %v4015
        %v4080 = vunpack.c.l.bf16 %v4016
        %v4081 = vunpack.c.l.bf16 %v4017
        %v4082 = vunpack.c.l.bf16 %v4018
        %v4083 = vunpack.c.l.bf16 %v4019
        %v4084 = vunpack.c.l.bf16 %v4020
        %v4085 = vunpack.c.l.bf16 %v4021
        %v4086 = vunpack.c.l.bf16 %v4022
        %v4087 = vunpack.c.l.bf16 %v4023
        %v4088 = vunpack.c.l.bf16 %v4024
        %v4089 = vunpack.c.l.bf16 %v4025
        %v4090 = vunpack.c.l.bf16 %v4026
        %v4091 = vunpack.c.l.bf16 %v4027
        %v4092 = vunpack.c.l.bf16 %v4028
        %v4093 = vunpack.c.l.bf16 %v4029
        %v4094 = vunpack.c.l.bf16 %v4030
        %v4095 = vunpack.c.l.bf16 %v4031
        %v4096 = vunpack.c.l.bf16 %v4032
        %v4097 = vunpack.c.l.bf16 %v4033
        %v4098 = vunpack.c.l.bf16 %v4034
        %v4099 = vunpack.c.l.bf16 %v4035
        %v4100 = vunpack.c.l.bf16 %v4036
        %v4101 = vunpack.c.l.bf16 %v4037
        %v4102 = vunpack.c.l.bf16 %v4038
        %v4103 = vunpack.c.l.bf16 %v4039
        %v4104 = vunpack.c.l.bf16 %v4040
        %v4105 = vunpack.c.l.bf16 %v4041
        %v4106 = vunpack.c.l.bf16 %v4042
        %v4107 = vunpack.c.l.bf16 %v4043
        %v4108 = vunpack.c.l.bf16 %v4044
        %v4109 = vunpack.c.l.bf16 %v4045
        %v4110 = vunpack.c.l.bf16 %v4046
        %v4111 = vunpack.c.l.bf16 %v4047
        %v4112 = vunpack.c.l.bf16 %v4048
        %v4113 = vunpack.c.l.bf16 %v4049
        %v4114 = vunpack.c.l.bf16 %v4050
        %v4115 = vunpack.c.l.bf16 %v4051
        %v4116 = vunpack.c.l.bf16 %v4052
        %v4117 = vunpack.c.l.bf16 %v4053
        %v4118 = vunpack.c.l.bf16 %v4054
        %v4119 = vunpack.c.l.bf16 %v4055
        %v4120 = vunpack.c.l.bf16 %v4056
        %v4121 = vunpack.c.l.bf16 %v4057
        %v4122 = vunpack.c.l.bf16 %v4058
        %v4123 = vunpack.c.l.bf16 %v4059
        %v4124 = vunpack.c.l.bf16 %v4060
        %v4125 = vunpack.c.l.bf16 %v4061
        %v4126 = vunpack.c.l.bf16 %v4062
        %v4127 = vunpack.c.l.bf16 %v4063
        %v4128 = vmax.f32 %v4064, %v4096
        %v4129 = vmax.f32 %v4065, %v4097
        %v4130 = vmax.f32 %v4066, %v4098
        %v4131 = vmax.f32 %v4067, %v4099
        %v4132 = vmax.f32 %v4068, %v4100
        %v4133 = vmax.f32 %v4069, %v4101
        %v4134 = vmax.f32 %v4070, %v4102
        %v4135 = vmax.f32 %v4071, %v4103
        %v4136 = vmax.f32 %v4072, %v4104
        %v4137 = vmax.f32 %v4073, %v4105
        %v4138 = vmax.f32 %v4074, %v4106
        %v4139 = vmax.f32 %v4075, %v4107
        %v4140 = vmax.f32 %v4076, %v4108
        %v4141 = vmax.f32 %v4077, %v4109
        %v4142 = vmax.f32 %v4078, %v4110
        %v4143 = vmax.f32 %v4079, %v4111
        %v4144 = vmax.f32 %v4080, %v4112
        %v4145 = vmax.f32 %v4081, %v4113
        %v4146 = vmax.f32 %v4082, %v4114
        %v4147 = vmax.f32 %v4083, %v4115
        %v4148 = vmax.f32 %v4084, %v4116
        %v4149 = vmax.f32 %v4085, %v4117
        %v4150 = vmax.f32 %v4086, %v4118
        %v4151 = vmax.f32 %v4087, %v4119
        %v4152 = vmax.f32 %v4088, %v4120
        %v4153 = vmax.f32 %v4089, %v4121
        %v4154 = vmax.f32 %v4090, %v4122
        %v4155 = vmax.f32 %v4091, %v4123
        %v4156 = vmax.f32 %v4092, %v4124
        %v4157 = vmax.f32 %v4093, %v4125
        %v4158 = vmax.f32 %v4094, %v4126
        %v4159 = vmax.f32 %v4095, %v4127
        %v4160 = vpack.c.bf16 %v4128, %v4128
        %v4161 = vpack.c.bf16 %v4129, %v4129
        %v4162 = vpack.c.bf16 %v4130, %v4130
        %v4163 = vpack.c.bf16 %v4131, %v4131
        %v4164 = vpack.c.bf16 %v4132, %v4132
        %v4165 = vpack.c.bf16 %v4133, %v4133
        %v4166 = vpack.c.bf16 %v4134, %v4134
        %v4167 = vpack.c.bf16 %v4135, %v4135
        %v4168 = vpack.c.bf16 %v4136, %v4136
        %v4169 = vpack.c.bf16 %v4137, %v4137
        %v4170 = vpack.c.bf16 %v4138, %v4138
        %v4171 = vpack.c.bf16 %v4139, %v4139
        %v4172 = vpack.c.bf16 %v4140, %v4140
        %v4173 = vpack.c.bf16 %v4141, %v4141
        %v4174 = vpack.c.bf16 %v4142, %v4142
        %v4175 = vpack.c.bf16 %v4143, %v4143
        %v4176 = vpack.c.bf16 %v4144, %v4144
        %v4177 = vpack.c.bf16 %v4145, %v4145
        %v4178 = vpack.c.bf16 %v4146, %v4146
        %v4179 = vpack.c.bf16 %v4147, %v4147
        %v4180 = vpack.c.bf16 %v4148, %v4148
        %v4181 = vpack.c.bf16 %v4149, %v4149
        %v4182 = vpack.c.bf16 %v4150, %v4150
        %v4183 = vpack.c.bf16 %v4151, %v4151
        %v4184 = vpack.c.bf16 %v4152, %v4152
        %v4185 = vpack.c.bf16 %v4153, %v4153
        %v4186 = vpack.c.bf16 %v4154, %v4154
        %v4187 = vpack.c.bf16 %v4155, %v4155
        %v4188 = vpack.c.bf16 %v4156, %v4156
        %v4189 = vpack.c.bf16 %v4157, %v4157
        %v4190 = vpack.c.bf16 %v4158, %v4158
        %v4191 = vpack.c.bf16 %v4159, %v4159
        %v4224 = vunpack.c.l.b16 %v4160
        %v4225 = vunpack.c.l.b16 %v4161
        %v4226 = vunpack.c.l.b16 %v4162
        %v4227 = vunpack.c.l.b16 %v4163
        %v4228 = vunpack.c.l.b16 %v4164
        %v4229 = vunpack.c.l.b16 %v4165
        %v4230 = vunpack.c.l.b16 %v4166
        %v4231 = vunpack.c.l.b16 %v4167
        %v4232 = vunpack.c.l.b16 %v4168
        %v4233 = vunpack.c.l.b16 %v4169
        %v4234 = vunpack.c.l.b16 %v4170
        %v4235 = vunpack.c.l.b16 %v4171
        %v4236 = vunpack.c.l.b16 %v4172
        %v4237 = vunpack.c.l.b16 %v4173
        %v4238 = vunpack.c.l.b16 %v4174
        %v4239 = vunpack.c.l.b16 %v4175
        %v4240 = vunpack.c.l.b16 %v4176
        %v4241 = vunpack.c.l.b16 %v4177
        %v4242 = vunpack.c.l.b16 %v4178
        %v4243 = vunpack.c.l.b16 %v4179
        %v4244 = vunpack.c.l.b16 %v4180
        %v4245 = vunpack.c.l.b16 %v4181
        %v4246 = vunpack.c.l.b16 %v4182
        %v4247 = vunpack.c.l.b16 %v4183
        %v4248 = vunpack.c.l.b16 %v4184
        %v4249 = vunpack.c.l.b16 %v4185
        %v4250 = vunpack.c.l.b16 %v4186
        %v4251 = vunpack.c.l.b16 %v4187
        %v4252 = vunpack.c.l.b16 %v4188
        %v4253 = vunpack.c.l.b16 %v4189
        %v4254 = vunpack.c.l.b16 %v4190
        %v4255 = vunpack.c.l.b16 %v4191
        %v4256 = vpack.c.b16 %v4225, %v4224
        %v4257 = vpack.c.b16 %v4227, %v4226
        %v4258 = vpack.c.b16 %v4229, %v4228
        %v4259 = vpack.c.b16 %v4231, %v4230
        %v4260 = vpack.c.b16 %v4233, %v4232
        %v4261 = vpack.c.b16 %v4235, %v4234
        %v4262 = vpack.c.b16 %v4237, %v4236
        %v4263 = vpack.c.b16 %v4239, %v4238
        %v4264 = vpack.c.b16 %v4241, %v4240
        %v4265 = vpack.c.b16 %v4243, %v4242
        %v4266 = vpack.c.b16 %v4245, %v4244
        %v4267 = vpack.c.b16 %v4247, %v4246
        %v4268 = vpack.c.b16 %v4249, %v4248
        %v4269 = vpack.c.b16 %v4251, %v4250
        %v4270 = vpack.c.b16 %v4253, %v4252
        %v4271 = vpack.c.b16 %v4255, %v4254
        %v4273 = vshrl.u32 %v4256, 16
        %v4275 = vrot.slane %v4273, 7
        %v4276 = vshll.u32 %v4256, 16
        %v4278 = vor.u32 %v4275, %v4276
        %v4280 = vshrl.u32 %v4257, 16
        %v4282 = vrot.slane %v4280, 7
        %v4283 = vshll.u32 %v4257, 16
        %v4285 = vor.u32 %v4282, %v4283
        %v4287 = vshrl.u32 %v4258, 16
        %v4289 = vrot.slane %v4287, 7
        %v4290 = vshll.u32 %v4258, 16
        %v4292 = vor.u32 %v4289, %v4290
        %v4294 = vshrl.u32 %v4259, 16
        %v4296 = vrot.slane %v4294, 7
        %v4297 = vshll.u32 %v4259, 16
        %v4299 = vor.u32 %v4296, %v4297
        %v4301 = vshrl.u32 %v4260, 16
        %v4303 = vrot.slane %v4301, 7
        %v4304 = vshll.u32 %v4260, 16
        %v4306 = vor.u32 %v4303, %v4304
        %v4308 = vshrl.u32 %v4261, 16
        %v4310 = vrot.slane %v4308, 7
        %v4311 = vshll.u32 %v4261, 16
        %v4313 = vor.u32 %v4310, %v4311
        %v4315 = vshrl.u32 %v4262, 16
        %v4317 = vrot.slane %v4315, 7
        %v4318 = vshll.u32 %v4262, 16
        %v4320 = vor.u32 %v4317, %v4318
        %v4322 = vshrl.u32 %v4263, 16
        %v4324 = vrot.slane %v4322, 7
        %v4325 = vshll.u32 %v4263, 16
        %v4327 = vor.u32 %v4324, %v4325
        %v4329 = vshrl.u32 %v4264, 16
        %v4331 = vrot.slane %v4329, 7
        %v4332 = vshll.u32 %v4264, 16
        %v4334 = vor.u32 %v4331, %v4332
        %v4336 = vshrl.u32 %v4265, 16
        %v4338 = vrot.slane %v4336, 7
        %v4339 = vshll.u32 %v4265, 16
        %v4341 = vor.u32 %v4338, %v4339
        %v4343 = vshrl.u32 %v4266, 16
        %v4345 = vrot.slane %v4343, 7
        %v4346 = vshll.u32 %v4266, 16
        %v4348 = vor.u32 %v4345, %v4346
        %v4350 = vshrl.u32 %v4267, 16
        %v4352 = vrot.slane %v4350, 7
        %v4353 = vshll.u32 %v4267, 16
        %v4355 = vor.u32 %v4352, %v4353
        %v4357 = vshrl.u32 %v4268, 16
        %v4359 = vrot.slane %v4357, 7
        %v4360 = vshll.u32 %v4268, 16
        %v4362 = vor.u32 %v4359, %v4360
        %v4364 = vshrl.u32 %v4269, 16
        %v4366 = vrot.slane %v4364, 7
        %v4367 = vshll.u32 %v4269, 16
        %v4369 = vor.u32 %v4366, %v4367
        %v4371 = vshrl.u32 %v4270, 16
        %v4373 = vrot.slane %v4371, 7
        %v4374 = vshll.u32 %v4270, 16
        %v4376 = vor.u32 %v4373, %v4374
        %v4378 = vshrl.u32 %v4271, 16
        %v4380 = vrot.slane %v4378, 7
        %v4381 = vshll.u32 %v4271, 16
        %v4383 = vor.u32 %v4380, %v4381
        %v4400 = vsel %vm1129, 4286644096, %v4278
        %v4401 = vsel %vm1129, 4286644096, %v4285
        %v4402 = vsel %vm1129, 4286644096, %v4292
        %v4403 = vsel %vm1129, 4286644096, %v4299
        %v4404 = vsel %vm1129, 4286644096, %v4306
        %v4405 = vsel %vm1129, 4286644096, %v4313
        %v4406 = vsel %vm1129, 4286644096, %v4320
        %v4407 = vsel %vm1129, 4286644096, %v4327
        %v4408 = vsel %vm1129, 4286644096, %v4334
        %v4409 = vsel %vm1129, 4286644096, %v4341
        %v4410 = vsel %vm1129, 4286644096, %v4348
        %v4411 = vsel %vm1129, 4286644096, %v4355
        %v4412 = vsel %vm1129, 4286644096, %v4362
        %v4413 = vsel %vm1129, 4286644096, %v4369
        %v4414 = vsel %vm1129, 4286644096, %v4376
        %v4415 = vsel %vm1129, 4286644096, %v4383
        %v4416 = vunpack.c.l.bf16 %v4160
        %v4417 = vunpack.c.l.bf16 %v4161
        %v4418 = vunpack.c.l.bf16 %v4162
        %v4419 = vunpack.c.l.bf16 %v4163
        %v4420 = vunpack.c.l.bf16 %v4164
        %v4421 = vunpack.c.l.bf16 %v4165
        %v4422 = vunpack.c.l.bf16 %v4166
        %v4423 = vunpack.c.l.bf16 %v4167
        %v4424 = vunpack.c.l.bf16 %v4168
        %v4425 = vunpack.c.l.bf16 %v4169
        %v4426 = vunpack.c.l.bf16 %v4170
        %v4427 = vunpack.c.l.bf16 %v4171
        %v4428 = vunpack.c.l.bf16 %v4172
        %v4429 = vunpack.c.l.bf16 %v4173
        %v4430 = vunpack.c.l.bf16 %v4174
        %v4431 = vunpack.c.l.bf16 %v4175
        %v4432 = vunpack.c.l.bf16 %v4176
        %v4433 = vunpack.c.l.bf16 %v4177
        %v4434 = vunpack.c.l.bf16 %v4178
        %v4435 = vunpack.c.l.bf16 %v4179
        %v4436 = vunpack.c.l.bf16 %v4180
        %v4437 = vunpack.c.l.bf16 %v4181
        %v4438 = vunpack.c.l.bf16 %v4182
        %v4439 = vunpack.c.l.bf16 %v4183
        %v4440 = vunpack.c.l.bf16 %v4184
        %v4441 = vunpack.c.l.bf16 %v4185
        %v4442 = vunpack.c.l.bf16 %v4186
        %v4443 = vunpack.c.l.bf16 %v4187
        %v4444 = vunpack.c.l.bf16 %v4188
        %v4445 = vunpack.c.l.bf16 %v4189
        %v4446 = vunpack.c.l.bf16 %v4190
        %v4447 = vunpack.c.l.bf16 %v4191
        %v4448 = vunpack.c.l.bf16 %v4400
        %v4449 = vunpack.c.h.bf16 %v4400
        %v4450 = vunpack.c.l.bf16 %v4401
        %v4451 = vunpack.c.h.bf16 %v4401
        %v4452 = vunpack.c.l.bf16 %v4402
        %v4453 = vunpack.c.h.bf16 %v4402
        %v4454 = vunpack.c.l.bf16 %v4403
        %v4455 = vunpack.c.h.bf16 %v4403
        %v4456 = vunpack.c.l.bf16 %v4404
        %v4457 = vunpack.c.h.bf16 %v4404
        %v4458 = vunpack.c.l.bf16 %v4405
        %v4459 = vunpack.c.h.bf16 %v4405
        %v4460 = vunpack.c.l.bf16 %v4406
        %v4461 = vunpack.c.h.bf16 %v4406
        %v4462 = vunpack.c.l.bf16 %v4407
        %v4463 = vunpack.c.h.bf16 %v4407
        %v4464 = vunpack.c.l.bf16 %v4408
        %v4465 = vunpack.c.h.bf16 %v4408
        %v4466 = vunpack.c.l.bf16 %v4409
        %v4467 = vunpack.c.h.bf16 %v4409
        %v4468 = vunpack.c.l.bf16 %v4410
        %v4469 = vunpack.c.h.bf16 %v4410
        %v4470 = vunpack.c.l.bf16 %v4411
        %v4471 = vunpack.c.h.bf16 %v4411
        %v4472 = vunpack.c.l.bf16 %v4412
        %v4473 = vunpack.c.h.bf16 %v4412
        %v4474 = vunpack.c.l.bf16 %v4413
        %v4475 = vunpack.c.h.bf16 %v4413
        %v4476 = vunpack.c.l.bf16 %v4414
        %v4477 = vunpack.c.h.bf16 %v4414
        %v4478 = vunpack.c.l.bf16 %v4415
        %v4479 = vunpack.c.h.bf16 %v4415
        %v4480 = vmax.f32 %v4416, %v4448
        %v4481 = vmax.f32 %v4417, %v4449
        %v4482 = vmax.f32 %v4418, %v4450
        %v4483 = vmax.f32 %v4419, %v4451
        %v4484 = vmax.f32 %v4420, %v4452
        %v4485 = vmax.f32 %v4421, %v4453
        %v4486 = vmax.f32 %v4422, %v4454
        %v4487 = vmax.f32 %v4423, %v4455
        %v4488 = vmax.f32 %v4424, %v4456
        %v4489 = vmax.f32 %v4425, %v4457
        %v4490 = vmax.f32 %v4426, %v4458
        %v4491 = vmax.f32 %v4427, %v4459
        %v4492 = vmax.f32 %v4428, %v4460
        %v4493 = vmax.f32 %v4429, %v4461
        %v4494 = vmax.f32 %v4430, %v4462
        %v4495 = vmax.f32 %v4431, %v4463
        %v4496 = vmax.f32 %v4432, %v4464
        %v4497 = vmax.f32 %v4433, %v4465
        %v4498 = vmax.f32 %v4434, %v4466
        %v4499 = vmax.f32 %v4435, %v4467
        %v4500 = vmax.f32 %v4436, %v4468
        %v4501 = vmax.f32 %v4437, %v4469
        %v4502 = vmax.f32 %v4438, %v4470
        %v4503 = vmax.f32 %v4439, %v4471
        %v4504 = vmax.f32 %v4440, %v4472
        %v4505 = vmax.f32 %v4441, %v4473
        %v4506 = vmax.f32 %v4442, %v4474
        %v4507 = vmax.f32 %v4443, %v4475
        %v4508 = vmax.f32 %v4444, %v4476
        %v4509 = vmax.f32 %v4445, %v4477
        %v4510 = vmax.f32 %v4446, %v4478
        %v4511 = vmax.f32 %v4447, %v4479
        %v4512 = vpack.c.bf16 %v4480, %v4480
        %v4513 = vpack.c.bf16 %v4481, %v4481
        %v4514 = vpack.c.bf16 %v4482, %v4482
        %v4515 = vpack.c.bf16 %v4483, %v4483
        %v4516 = vpack.c.bf16 %v4484, %v4484
        %v4517 = vpack.c.bf16 %v4485, %v4485
        %v4518 = vpack.c.bf16 %v4486, %v4486
        %v4519 = vpack.c.bf16 %v4487, %v4487
        %v4520 = vpack.c.bf16 %v4488, %v4488
        %v4521 = vpack.c.bf16 %v4489, %v4489
        %v4522 = vpack.c.bf16 %v4490, %v4490
        %v4523 = vpack.c.bf16 %v4491, %v4491
        %v4524 = vpack.c.bf16 %v4492, %v4492
        %v4525 = vpack.c.bf16 %v4493, %v4493
        %v4526 = vpack.c.bf16 %v4494, %v4494
        %v4527 = vpack.c.bf16 %v4495, %v4495
        %v4528 = vpack.c.bf16 %v4496, %v4496
        %v4529 = vpack.c.bf16 %v4497, %v4497
        %v4530 = vpack.c.bf16 %v4498, %v4498
        %v4531 = vpack.c.bf16 %v4499, %v4499
        %v4532 = vpack.c.bf16 %v4500, %v4500
        %v4533 = vpack.c.bf16 %v4501, %v4501
        %v4534 = vpack.c.bf16 %v4502, %v4502
        %v4535 = vpack.c.bf16 %v4503, %v4503
        %v4536 = vpack.c.bf16 %v4504, %v4504
        %v4537 = vpack.c.bf16 %v4505, %v4505
        %v4538 = vpack.c.bf16 %v4506, %v4506
        %v4539 = vpack.c.bf16 %v4507, %v4507
        %v4540 = vpack.c.bf16 %v4508, %v4508
        %v4541 = vpack.c.bf16 %v4509, %v4509
        %v4542 = vpack.c.bf16 %v4510, %v4510
        %v4543 = vpack.c.bf16 %v4511, %v4511
        %v4544 = vrot.slane %v4256, 7
        %v4545 = vrot.slane %v4257, 7
        %v4546 = vrot.slane %v4258, 7
        %v4547 = vrot.slane %v4259, 7
        %v4548 = vrot.slane %v4260, 7
        %v4549 = vrot.slane %v4261, 7
        %v4550 = vrot.slane %v4262, 7
        %v4551 = vrot.slane %v4263, 7
        %v4552 = vrot.slane %v4264, 7
        %v4553 = vrot.slane %v4265, 7
        %v4554 = vrot.slane %v4266, 7
        %v4555 = vrot.slane %v4267, 7
        %v4556 = vrot.slane %v4268, 7
        %v4557 = vrot.slane %v4269, 7
        %v4558 = vrot.slane %v4270, 7
        %v4559 = vrot.slane %v4271, 7
        %v4561 = vsel %vm1290, 4286644096, %v4544
        %v4564 = vsel %vm1290, 4286644096, %v4545
        %v4567 = vsel %vm1290, 4286644096, %v4546
        %v4570 = vsel %vm1290, 4286644096, %v4547
        %v4573 = vsel %vm1290, 4286644096, %v4548
        %v4576 = vsel %vm1290, 4286644096, %v4549
        %v4579 = vsel %vm1290, 4286644096, %v4550
        %v4582 = vsel %vm1290, 4286644096, %v4551
        %v4585 = vsel %vm1290, 4286644096, %v4552
        %v4588 = vsel %vm1290, 4286644096, %v4553
        %v4591 = vsel %vm1290, 4286644096, %v4554
        %v4594 = vsel %vm1290, 4286644096, %v4555
        %v4597 = vsel %vm1290, 4286644096, %v4556
        %v4600 = vsel %vm1290, 4286644096, %v4557
        %v4603 = vsel %vm1290, 4286644096, %v4558
        %v4606 = vsel %vm1290, 4286644096, %v4559
        %v4608 = vunpack.c.l.bf16 %v4512
        %v4609 = vunpack.c.l.bf16 %v4513
        %v4610 = vunpack.c.l.bf16 %v4514
        %v4611 = vunpack.c.l.bf16 %v4515
        %v4612 = vunpack.c.l.bf16 %v4516
        %v4613 = vunpack.c.l.bf16 %v4517
        %v4614 = vunpack.c.l.bf16 %v4518
        %v4615 = vunpack.c.l.bf16 %v4519
        %v4616 = vunpack.c.l.bf16 %v4520
        %v4617 = vunpack.c.l.bf16 %v4521
        %v4618 = vunpack.c.l.bf16 %v4522
        %v4619 = vunpack.c.l.bf16 %v4523
        %v4620 = vunpack.c.l.bf16 %v4524
        %v4621 = vunpack.c.l.bf16 %v4525
        %v4622 = vunpack.c.l.bf16 %v4526
        %v4623 = vunpack.c.l.bf16 %v4527
        %v4624 = vunpack.c.l.bf16 %v4528
        %v4625 = vunpack.c.l.bf16 %v4529
        %v4626 = vunpack.c.l.bf16 %v4530
        %v4627 = vunpack.c.l.bf16 %v4531
        %v4628 = vunpack.c.l.bf16 %v4532
        %v4629 = vunpack.c.l.bf16 %v4533
        %v4630 = vunpack.c.l.bf16 %v4534
        %v4631 = vunpack.c.l.bf16 %v4535
        %v4632 = vunpack.c.l.bf16 %v4536
        %v4633 = vunpack.c.l.bf16 %v4537
        %v4634 = vunpack.c.l.bf16 %v4538
        %v4635 = vunpack.c.l.bf16 %v4539
        %v4636 = vunpack.c.l.bf16 %v4540
        %v4637 = vunpack.c.l.bf16 %v4541
        %v4638 = vunpack.c.l.bf16 %v4542
        %v4639 = vunpack.c.l.bf16 %v4543
        %v4640 = vunpack.c.l.bf16 %v4561
        %v4641 = vunpack.c.h.bf16 %v4561
        %v4642 = vunpack.c.l.bf16 %v4564
        %v4643 = vunpack.c.h.bf16 %v4564
        %v4644 = vunpack.c.l.bf16 %v4567
        %v4645 = vunpack.c.h.bf16 %v4567
        %v4646 = vunpack.c.l.bf16 %v4570
        %v4647 = vunpack.c.h.bf16 %v4570
        %v4648 = vunpack.c.l.bf16 %v4573
        %v4649 = vunpack.c.h.bf16 %v4573
        %v4650 = vunpack.c.l.bf16 %v4576
        %v4651 = vunpack.c.h.bf16 %v4576
        %v4652 = vunpack.c.l.bf16 %v4579
        %v4653 = vunpack.c.h.bf16 %v4579
        %v4654 = vunpack.c.l.bf16 %v4582
        %v4655 = vunpack.c.h.bf16 %v4582
        %v4656 = vunpack.c.l.bf16 %v4585
        %v4657 = vunpack.c.h.bf16 %v4585
        %v4658 = vunpack.c.l.bf16 %v4588
        %v4659 = vunpack.c.h.bf16 %v4588
        %v4660 = vunpack.c.l.bf16 %v4591
        %v4661 = vunpack.c.h.bf16 %v4591
        %v4662 = vunpack.c.l.bf16 %v4594
        %v4663 = vunpack.c.h.bf16 %v4594
        %v4664 = vunpack.c.l.bf16 %v4597
        %v4665 = vunpack.c.h.bf16 %v4597
        %v4666 = vunpack.c.l.bf16 %v4600
        %v4667 = vunpack.c.h.bf16 %v4600
        %v4668 = vunpack.c.l.bf16 %v4603
        %v4669 = vunpack.c.h.bf16 %v4603
        %v4670 = vunpack.c.l.bf16 %v4606
        %v4671 = vunpack.c.h.bf16 %v4606
        %v4672 = vmax.f32 %v4608, %v4640
        %v4673 = vmax.f32 %v4609, %v4641
        %v4674 = vmax.f32 %v4610, %v4642
        %v4675 = vmax.f32 %v4611, %v4643
        %v4676 = vmax.f32 %v4612, %v4644
        %v4677 = vmax.f32 %v4613, %v4645
        %v4678 = vmax.f32 %v4614, %v4646
        %v4679 = vmax.f32 %v4615, %v4647
        %v4680 = vmax.f32 %v4616, %v4648
        %v4681 = vmax.f32 %v4617, %v4649
        %v4682 = vmax.f32 %v4618, %v4650
        %v4683 = vmax.f32 %v4619, %v4651
        %v4684 = vmax.f32 %v4620, %v4652
        %v4685 = vmax.f32 %v4621, %v4653
        %v4686 = vmax.f32 %v4622, %v4654
        %v4687 = vmax.f32 %v4623, %v4655
        %v4688 = vmax.f32 %v4624, %v4656
        %v4689 = vmax.f32 %v4625, %v4657
        %v4690 = vmax.f32 %v4626, %v4658
        %v4691 = vmax.f32 %v4627, %v4659
        %v4692 = vmax.f32 %v4628, %v4660
        %v4693 = vmax.f32 %v4629, %v4661
        %v4694 = vmax.f32 %v4630, %v4662
        %v4695 = vmax.f32 %v4631, %v4663
        %v4696 = vmax.f32 %v4632, %v4664
        %v4697 = vmax.f32 %v4633, %v4665
        %v4698 = vmax.f32 %v4634, %v4666
        %v4699 = vmax.f32 %v4635, %v4667
        %v4700 = vmax.f32 %v4636, %v4668
        %v4701 = vmax.f32 %v4637, %v4669
        %v4702 = vmax.f32 %v4638, %v4670
        %v4703 = vmax.f32 %v4639, %v4671
        %v4704 = vpack.c.bf16 %v4672, %v4672
        %v4705 = vpack.c.bf16 %v4673, %v4673
        %v4706 = vpack.c.bf16 %v4674, %v4674
        %v4707 = vpack.c.bf16 %v4675, %v4675
        %v4708 = vpack.c.bf16 %v4676, %v4676
        %v4709 = vpack.c.bf16 %v4677, %v4677
        %v4710 = vpack.c.bf16 %v4678, %v4678
        %v4711 = vpack.c.bf16 %v4679, %v4679
        %v4712 = vpack.c.bf16 %v4680, %v4680
        %v4713 = vpack.c.bf16 %v4681, %v4681
        %v4714 = vpack.c.bf16 %v4682, %v4682
        %v4715 = vpack.c.bf16 %v4683, %v4683
        %v4716 = vpack.c.bf16 %v4684, %v4684
        %v4717 = vpack.c.bf16 %v4685, %v4685
        %v4718 = vpack.c.bf16 %v4686, %v4686
        %v4719 = vpack.c.bf16 %v4687, %v4687
        %v4720 = vpack.c.bf16 %v4688, %v4688
        %v4721 = vpack.c.bf16 %v4689, %v4689
        %v4722 = vpack.c.bf16 %v4690, %v4690
        %v4723 = vpack.c.bf16 %v4691, %v4691
        %v4724 = vpack.c.bf16 %v4692, %v4692
        %v4725 = vpack.c.bf16 %v4693, %v4693
        %v4726 = vpack.c.bf16 %v4694, %v4694
        %v4727 = vpack.c.bf16 %v4695, %v4695
        %v4728 = vpack.c.bf16 %v4696, %v4696
        %v4729 = vpack.c.bf16 %v4697, %v4697
        %v4730 = vpack.c.bf16 %v4698, %v4698
        %v4731 = vpack.c.bf16 %v4699, %v4699
        %v4732 = vpack.c.bf16 %v4700, %v4700
        %v4733 = vpack.c.bf16 %v4701, %v4701
        %v4734 = vpack.c.bf16 %v4702, %v4702
        %v4735 = vpack.c.bf16 %v4703, %v4703
        %v4736 = vrot.slane %v4276, 1
        %v4737 = vor.u32 %v4273, %v4736
        %v4738 = vrot.slane %v4283, 1
        %v4739 = vor.u32 %v4280, %v4738
        %v4740 = vrot.slane %v4290, 1
        %v4741 = vor.u32 %v4287, %v4740
        %v4742 = vrot.slane %v4297, 1
        %v4743 = vor.u32 %v4294, %v4742
        %v4744 = vrot.slane %v4304, 1
        %v4745 = vor.u32 %v4301, %v4744
        %v4746 = vrot.slane %v4311, 1
        %v4747 = vor.u32 %v4308, %v4746
        %v4748 = vrot.slane %v4318, 1
        %v4749 = vor.u32 %v4315, %v4748
        %v4750 = vrot.slane %v4325, 1
        %v4751 = vor.u32 %v4322, %v4750
        %v4752 = vrot.slane %v4332, 1
        %v4753 = vor.u32 %v4329, %v4752
        %v4754 = vrot.slane %v4339, 1
        %v4755 = vor.u32 %v4336, %v4754
        %v4756 = vrot.slane %v4346, 1
        %v4757 = vor.u32 %v4343, %v4756
        %v4758 = vrot.slane %v4353, 1
        %v4759 = vor.u32 %v4350, %v4758
        %v4760 = vrot.slane %v4360, 1
        %v4761 = vor.u32 %v4357, %v4760
        %v4762 = vrot.slane %v4367, 1
        %v4763 = vor.u32 %v4364, %v4762
        %v4764 = vrot.slane %v4374, 1
        %v4765 = vor.u32 %v4371, %v4764
        %v4766 = vrot.slane %v4381, 1
        %v4767 = vor.u32 %v4378, %v4766
        %v4784 = vsel %vm1518, %v4737, 4286644096
        %v4785 = vsel %vm1518, %v4739, 4286644096
        %v4786 = vsel %vm1518, %v4741, 4286644096
        %v4787 = vsel %vm1518, %v4743, 4286644096
        %v4788 = vsel %vm1518, %v4745, 4286644096
        %v4789 = vsel %vm1518, %v4747, 4286644096
        %v4790 = vsel %vm1518, %v4749, 4286644096
        %v4791 = vsel %vm1518, %v4751, 4286644096
        %v4792 = vsel %vm1518, %v4753, 4286644096
        %v4793 = vsel %vm1518, %v4755, 4286644096
        %v4794 = vsel %vm1518, %v4757, 4286644096
        %v4795 = vsel %vm1518, %v4759, 4286644096
        %v4796 = vsel %vm1518, %v4761, 4286644096
        %v4797 = vsel %vm1518, %v4763, 4286644096
        %v4798 = vsel %vm1518, %v4765, 4286644096
        %v4799 = vsel %vm1518, %v4767, 4286644096
        %v4800 = vunpack.c.l.bf16 %v4704
        %v4801 = vunpack.c.l.bf16 %v4705
        %v4802 = vunpack.c.l.bf16 %v4706
        %v4803 = vunpack.c.l.bf16 %v4707
        %v4804 = vunpack.c.l.bf16 %v4708
        %v4805 = vunpack.c.l.bf16 %v4709
        %v4806 = vunpack.c.l.bf16 %v4710
        %v4807 = vunpack.c.l.bf16 %v4711
        %v4808 = vunpack.c.l.bf16 %v4712
        %v4809 = vunpack.c.l.bf16 %v4713
        %v4810 = vunpack.c.l.bf16 %v4714
        %v4811 = vunpack.c.l.bf16 %v4715
        %v4812 = vunpack.c.l.bf16 %v4716
        %v4813 = vunpack.c.l.bf16 %v4717
        %v4814 = vunpack.c.l.bf16 %v4718
        %v4815 = vunpack.c.l.bf16 %v4719
        %v4816 = vunpack.c.l.bf16 %v4720
        %v4817 = vunpack.c.l.bf16 %v4721
        %v4818 = vunpack.c.l.bf16 %v4722
        %v4819 = vunpack.c.l.bf16 %v4723
        %v4820 = vunpack.c.l.bf16 %v4724
        %v4821 = vunpack.c.l.bf16 %v4725
        %v4822 = vunpack.c.l.bf16 %v4726
        %v4823 = vunpack.c.l.bf16 %v4727
        %v4824 = vunpack.c.l.bf16 %v4728
        %v4825 = vunpack.c.l.bf16 %v4729
        %v4826 = vunpack.c.l.bf16 %v4730
        %v4827 = vunpack.c.l.bf16 %v4731
        %v4828 = vunpack.c.l.bf16 %v4732
        %v4829 = vunpack.c.l.bf16 %v4733
        %v4830 = vunpack.c.l.bf16 %v4734
        %v4831 = vunpack.c.l.bf16 %v4735
        %v4832 = vunpack.c.l.bf16 %v4784
        %v4833 = vunpack.c.h.bf16 %v4784
        %v4834 = vunpack.c.l.bf16 %v4785
        %v4835 = vunpack.c.h.bf16 %v4785
        %v4836 = vunpack.c.l.bf16 %v4786
        %v4837 = vunpack.c.h.bf16 %v4786
        %v4838 = vunpack.c.l.bf16 %v4787
        %v4839 = vunpack.c.h.bf16 %v4787
        %v4840 = vunpack.c.l.bf16 %v4788
        %v4841 = vunpack.c.h.bf16 %v4788
        %v4842 = vunpack.c.l.bf16 %v4789
        %v4843 = vunpack.c.h.bf16 %v4789
        %v4844 = vunpack.c.l.bf16 %v4790
        %v4845 = vunpack.c.h.bf16 %v4790
        %v4846 = vunpack.c.l.bf16 %v4791
        %v4847 = vunpack.c.h.bf16 %v4791
        %v4848 = vunpack.c.l.bf16 %v4792
        %v4849 = vunpack.c.h.bf16 %v4792
        %v4850 = vunpack.c.l.bf16 %v4793
        %v4851 = vunpack.c.h.bf16 %v4793
        %v4852 = vunpack.c.l.bf16 %v4794
        %v4853 = vunpack.c.h.bf16 %v4794
        %v4854 = vunpack.c.l.bf16 %v4795
        %v4855 = vunpack.c.h.bf16 %v4795
        %v4856 = vunpack.c.l.bf16 %v4796
        %v4857 = vunpack.c.h.bf16 %v4796
        %v4858 = vunpack.c.l.bf16 %v4797
        %v4859 = vunpack.c.h.bf16 %v4797
        %v4860 = vunpack.c.l.bf16 %v4798
        %v4861 = vunpack.c.h.bf16 %v4798
        %v4862 = vunpack.c.l.bf16 %v4799
        %v4863 = vunpack.c.h.bf16 %v4799
        %v4864 = vmax.f32 %v4800, %v4832
        %v4865 = vmax.f32 %v4801, %v4833
        %v4866 = vmax.f32 %v4802, %v4834
        %v4867 = vmax.f32 %v4803, %v4835
        %v4868 = vmax.f32 %v4804, %v4836
        %v4869 = vmax.f32 %v4805, %v4837
        %v4870 = vmax.f32 %v4806, %v4838
        %v4871 = vmax.f32 %v4807, %v4839
        %v4872 = vmax.f32 %v4808, %v4840
        %v4873 = vmax.f32 %v4809, %v4841
        %v4874 = vmax.f32 %v4810, %v4842
        %v4875 = vmax.f32 %v4811, %v4843
        %v4876 = vmax.f32 %v4812, %v4844
        %v4877 = vmax.f32 %v4813, %v4845
        %v4878 = vmax.f32 %v4814, %v4846
        %v4879 = vmax.f32 %v4815, %v4847
        %v4880 = vmax.f32 %v4816, %v4848
        %v4881 = vmax.f32 %v4817, %v4849
        %v4882 = vmax.f32 %v4818, %v4850
        %v4883 = vmax.f32 %v4819, %v4851
        %v4884 = vmax.f32 %v4820, %v4852
        %v4885 = vmax.f32 %v4821, %v4853
        %v4886 = vmax.f32 %v4822, %v4854
        %v4887 = vmax.f32 %v4823, %v4855
        %v4888 = vmax.f32 %v4824, %v4856
        %v4889 = vmax.f32 %v4825, %v4857
        %v4890 = vmax.f32 %v4826, %v4858
        %v4891 = vmax.f32 %v4827, %v4859
        %v4892 = vmax.f32 %v4828, %v4860
        %v4893 = vmax.f32 %v4829, %v4861
        %v4894 = vmax.f32 %v4830, %v4862
        %v4895 = vmax.f32 %v4831, %v4863
        %v4896 = vpack.c.bf16 %v4864, %v4864
        %v4897 = vpack.c.bf16 %v4865, %v4865
        %v4898 = vpack.c.bf16 %v4866, %v4866
        %v4899 = vpack.c.bf16 %v4867, %v4867
        %v4900 = vpack.c.bf16 %v4868, %v4868
        %v4901 = vpack.c.bf16 %v4869, %v4869
        %v4902 = vpack.c.bf16 %v4870, %v4870
        %v4903 = vpack.c.bf16 %v4871, %v4871
        %v4904 = vpack.c.bf16 %v4872, %v4872
        %v4905 = vpack.c.bf16 %v4873, %v4873
        %v4906 = vpack.c.bf16 %v4874, %v4874
        %v4907 = vpack.c.bf16 %v4875, %v4875
        %v4908 = vpack.c.bf16 %v4876, %v4876
        %v4909 = vpack.c.bf16 %v4877, %v4877
        %v4910 = vpack.c.bf16 %v4878, %v4878
        %v4911 = vpack.c.bf16 %v4879, %v4879
        %v4912 = vpack.c.bf16 %v4880, %v4880
        %v4913 = vpack.c.bf16 %v4881, %v4881
        %v4914 = vpack.c.bf16 %v4882, %v4882
        %v4915 = vpack.c.bf16 %v4883, %v4883
        %v4916 = vpack.c.bf16 %v4884, %v4884
        %v4917 = vpack.c.bf16 %v4885, %v4885
        %v4918 = vpack.c.bf16 %v4886, %v4886
        %v4919 = vpack.c.bf16 %v4887, %v4887
        %v4920 = vpack.c.bf16 %v4888, %v4888
        %v4921 = vpack.c.bf16 %v4889, %v4889
        %v4922 = vpack.c.bf16 %v4890, %v4890
        %v4923 = vpack.c.bf16 %v4891, %v4891
        %v4924 = vpack.c.bf16 %v4892, %v4892
        %v4925 = vpack.c.bf16 %v4893, %v4893
        %v4926 = vpack.c.bf16 %v4894, %v4894
        %v4927 = vpack.c.bf16 %v4895, %v4895
        %v4928 = vrot.slane %v4256, 1
        %v4929 = vrot.slane %v4257, 1
        %v4930 = vrot.slane %v4258, 1
        %v4931 = vrot.slane %v4259, 1
        %v4932 = vrot.slane %v4260, 1
        %v4933 = vrot.slane %v4261, 1
        %v4934 = vrot.slane %v4262, 1
        %v4935 = vrot.slane %v4263, 1
        %v4936 = vrot.slane %v4264, 1
        %v4937 = vrot.slane %v4265, 1
        %v4938 = vrot.slane %v4266, 1
        %v4939 = vrot.slane %v4267, 1
        %v4940 = vrot.slane %v4268, 1
        %v4941 = vrot.slane %v4269, 1
        %v4942 = vrot.slane %v4270, 1
        %v4943 = vrot.slane %v4271, 1
        %v4945 = vsel %vm1679, %v4928, 4286644096
        %v4948 = vsel %vm1679, %v4929, 4286644096
        %v4951 = vsel %vm1679, %v4930, 4286644096
        %v4954 = vsel %vm1679, %v4931, 4286644096
        %v4957 = vsel %vm1679, %v4932, 4286644096
        %v4960 = vsel %vm1679, %v4933, 4286644096
        %v4963 = vsel %vm1679, %v4934, 4286644096
        %v4966 = vsel %vm1679, %v4935, 4286644096
        %v4969 = vsel %vm1679, %v4936, 4286644096
        %v4972 = vsel %vm1679, %v4937, 4286644096
        %v4975 = vsel %vm1679, %v4938, 4286644096
        %v4978 = vsel %vm1679, %v4939, 4286644096
        %v4981 = vsel %vm1679, %v4940, 4286644096
        %v4984 = vsel %vm1679, %v4941, 4286644096
        %v4987 = vsel %vm1679, %v4942, 4286644096
        %v4990 = vsel %vm1679, %v4943, 4286644096
        %v4992 = vunpack.c.l.bf16 %v4896
        %v4993 = vunpack.c.l.bf16 %v4897
        %v4994 = vunpack.c.l.bf16 %v4898
        %v4995 = vunpack.c.l.bf16 %v4899
        %v4996 = vunpack.c.l.bf16 %v4900
        %v4997 = vunpack.c.l.bf16 %v4901
        %v4998 = vunpack.c.l.bf16 %v4902
        %v4999 = vunpack.c.l.bf16 %v4903
        %v5000 = vunpack.c.l.bf16 %v4904
        %v5001 = vunpack.c.l.bf16 %v4905
        %v5002 = vunpack.c.l.bf16 %v4906
        %v5003 = vunpack.c.l.bf16 %v4907
        %v5004 = vunpack.c.l.bf16 %v4908
        %v5005 = vunpack.c.l.bf16 %v4909
        %v5006 = vunpack.c.l.bf16 %v4910
        %v5007 = vunpack.c.l.bf16 %v4911
        %v5008 = vunpack.c.l.bf16 %v4912
        %v5009 = vunpack.c.l.bf16 %v4913
        %v5010 = vunpack.c.l.bf16 %v4914
        %v5011 = vunpack.c.l.bf16 %v4915
        %v5012 = vunpack.c.l.bf16 %v4916
        %v5013 = vunpack.c.l.bf16 %v4917
        %v5014 = vunpack.c.l.bf16 %v4918
        %v5015 = vunpack.c.l.bf16 %v4919
        %v5016 = vunpack.c.l.bf16 %v4920
        %v5017 = vunpack.c.l.bf16 %v4921
        %v5018 = vunpack.c.l.bf16 %v4922
        %v5019 = vunpack.c.l.bf16 %v4923
        %v5020 = vunpack.c.l.bf16 %v4924
        %v5021 = vunpack.c.l.bf16 %v4925
        %v5022 = vunpack.c.l.bf16 %v4926
        %v5023 = vunpack.c.l.bf16 %v4927
        %v5024 = vunpack.c.l.bf16 %v4945
        %v5025 = vunpack.c.h.bf16 %v4945
        %v5026 = vunpack.c.l.bf16 %v4948
        %v5027 = vunpack.c.h.bf16 %v4948
        %v5028 = vunpack.c.l.bf16 %v4951
        %v5029 = vunpack.c.h.bf16 %v4951
        %v5030 = vunpack.c.l.bf16 %v4954
        %v5031 = vunpack.c.h.bf16 %v4954
        %v5032 = vunpack.c.l.bf16 %v4957
        %v5033 = vunpack.c.h.bf16 %v4957
        %v5034 = vunpack.c.l.bf16 %v4960
        %v5035 = vunpack.c.h.bf16 %v4960
        %v5036 = vunpack.c.l.bf16 %v4963
        %v5037 = vunpack.c.h.bf16 %v4963
        %v5038 = vunpack.c.l.bf16 %v4966
        %v5039 = vunpack.c.h.bf16 %v4966
        %v5040 = vunpack.c.l.bf16 %v4969
        %v5041 = vunpack.c.h.bf16 %v4969
        %v5042 = vunpack.c.l.bf16 %v4972
        %v5043 = vunpack.c.h.bf16 %v4972
        %v5044 = vunpack.c.l.bf16 %v4975
        %v5045 = vunpack.c.h.bf16 %v4975
        %v5046 = vunpack.c.l.bf16 %v4978
        %v5047 = vunpack.c.h.bf16 %v4978
        %v5048 = vunpack.c.l.bf16 %v4981
        %v5049 = vunpack.c.h.bf16 %v4981
        %v5050 = vunpack.c.l.bf16 %v4984
        %v5051 = vunpack.c.h.bf16 %v4984
        %v5052 = vunpack.c.l.bf16 %v4987
        %v5053 = vunpack.c.h.bf16 %v4987
        %v5054 = vunpack.c.l.bf16 %v4990
        %v5055 = vunpack.c.h.bf16 %v4990
        %v5056 = vmax.f32 %v4992, %v5024
        %v5057 = vmax.f32 %v4993, %v5025
        %v5058 = vmax.f32 %v4994, %v5026
        %v5059 = vmax.f32 %v4995, %v5027
        %v5060 = vmax.f32 %v4996, %v5028
        %v5061 = vmax.f32 %v4997, %v5029
        %v5062 = vmax.f32 %v4998, %v5030
        %v5063 = vmax.f32 %v4999, %v5031
        %v5064 = vmax.f32 %v5000, %v5032
        %v5065 = vmax.f32 %v5001, %v5033
        %v5066 = vmax.f32 %v5002, %v5034
        %v5067 = vmax.f32 %v5003, %v5035
        %v5068 = vmax.f32 %v5004, %v5036
        %v5069 = vmax.f32 %v5005, %v5037
        %v5070 = vmax.f32 %v5006, %v5038
        %v5071 = vmax.f32 %v5007, %v5039
        %v5072 = vmax.f32 %v5008, %v5040
        %v5073 = vmax.f32 %v5009, %v5041
        %v5074 = vmax.f32 %v5010, %v5042
        %v5075 = vmax.f32 %v5011, %v5043
        %v5076 = vmax.f32 %v5012, %v5044
        %v5077 = vmax.f32 %v5013, %v5045
        %v5078 = vmax.f32 %v5014, %v5046
        %v5079 = vmax.f32 %v5015, %v5047
        %v5080 = vmax.f32 %v5016, %v5048
        %v5081 = vmax.f32 %v5017, %v5049
        %v5082 = vmax.f32 %v5018, %v5050
        %v5083 = vmax.f32 %v5019, %v5051
        %v5084 = vmax.f32 %v5020, %v5052
        %v5085 = vmax.f32 %v5021, %v5053
        %v5086 = vmax.f32 %v5022, %v5054
        %v5087 = vmax.f32 %v5023, %v5055
        %v5088 = vpack.c.bf16 %v5056, %v5056
        %v5089 = vpack.c.bf16 %v5057, %v5057
        %v5090 = vpack.c.bf16 %v5058, %v5058
        %v5091 = vpack.c.bf16 %v5059, %v5059
        %v5092 = vpack.c.bf16 %v5060, %v5060
        %v5093 = vpack.c.bf16 %v5061, %v5061
        %v5094 = vpack.c.bf16 %v5062, %v5062
        %v5095 = vpack.c.bf16 %v5063, %v5063
        %v5096 = vpack.c.bf16 %v5064, %v5064
        %v5097 = vpack.c.bf16 %v5065, %v5065
        %v5098 = vpack.c.bf16 %v5066, %v5066
        %v5099 = vpack.c.bf16 %v5067, %v5067
        %v5100 = vpack.c.bf16 %v5068, %v5068
        %v5101 = vpack.c.bf16 %v5069, %v5069
        %v5102 = vpack.c.bf16 %v5070, %v5070
        %v5103 = vpack.c.bf16 %v5071, %v5071
        %v5104 = vpack.c.bf16 %v5072, %v5072
        %v5105 = vpack.c.bf16 %v5073, %v5073
        %v5106 = vpack.c.bf16 %v5074, %v5074
        %v5107 = vpack.c.bf16 %v5075, %v5075
        %v5108 = vpack.c.bf16 %v5076, %v5076
        %v5109 = vpack.c.bf16 %v5077, %v5077
        %v5110 = vpack.c.bf16 %v5078, %v5078
        %v5111 = vpack.c.bf16 %v5079, %v5079
        %v5112 = vpack.c.bf16 %v5080, %v5080
        %v5113 = vpack.c.bf16 %v5081, %v5081
        %v5114 = vpack.c.bf16 %v5082, %v5082
        %v5115 = vpack.c.bf16 %v5083, %v5083
        %v5116 = vpack.c.bf16 %v5084, %v5084
        %v5117 = vpack.c.bf16 %v5085, %v5085
        %v5118 = vpack.c.bf16 %v5086, %v5086
        %v5119 = vpack.c.bf16 %v5087, %v5087
        %v5152 = vunpack.c.l.b16 %v179
        %v5153 = vunpack.c.l.b16 %v180
        %v5154 = vunpack.c.l.b16 %v181
        %v5155 = vunpack.c.l.b16 %v182
        %v5156 = vunpack.c.l.b16 %v183
        %v5157 = vunpack.c.l.b16 %v184
        %v5158 = vunpack.c.l.b16 %v185
        %v5159 = vunpack.c.l.b16 %v186
        %v5160 = vunpack.c.l.b16 %v187
        %v5161 = vunpack.c.l.b16 %v188
        %v5162 = vunpack.c.l.b16 %v189
        %v5163 = vunpack.c.l.b16 %v190
        %v5164 = vunpack.c.l.b16 %v191
        %v5165 = vunpack.c.l.b16 %v192
        %v5166 = vunpack.c.l.b16 %v193
        %v5167 = vunpack.c.l.b16 %v194
        %v5168 = vunpack.c.l.b16 %v195
        %v5169 = vunpack.c.l.b16 %v196
        %v5170 = vunpack.c.l.b16 %v197
        %v5171 = vunpack.c.l.b16 %v198
        %v5172 = vunpack.c.l.b16 %v199
        %v5173 = vunpack.c.l.b16 %v200
        %v5174 = vunpack.c.l.b16 %v201
        %v5175 = vunpack.c.l.b16 %v202
        %v5176 = vunpack.c.l.b16 %v203
        %v5177 = vunpack.c.l.b16 %v204
        %v5178 = vunpack.c.l.b16 %v205
        %v5179 = vunpack.c.l.b16 %v206
        %v5180 = vunpack.c.l.b16 %v207
        %v5181 = vunpack.c.l.b16 %v208
        %v5182 = vunpack.c.l.b16 %v209
        %v5183 = vunpack.c.l.b16 %v210
        %v5184 = vpack.c.b16 %v5153, %v5152
        %v5185 = vpack.c.b16 %v5155, %v5154
        %v5186 = vpack.c.b16 %v5157, %v5156
        %v5187 = vpack.c.b16 %v5159, %v5158
        %v5188 = vpack.c.b16 %v5161, %v5160
        %v5189 = vpack.c.b16 %v5163, %v5162
        %v5190 = vpack.c.b16 %v5165, %v5164
        %v5191 = vpack.c.b16 %v5167, %v5166
        %v5192 = vpack.c.b16 %v5169, %v5168
        %v5193 = vpack.c.b16 %v5171, %v5170
        %v5194 = vpack.c.b16 %v5173, %v5172
        %v5195 = vpack.c.b16 %v5175, %v5174
        %v5196 = vpack.c.b16 %v5177, %v5176
        %v5197 = vpack.c.b16 %v5179, %v5178
        %v5198 = vpack.c.b16 %v5181, %v5180
        %v5199 = vpack.c.b16 %v5183, %v5182
        %v5248 = vunpack.c.l.b16 %v1824
        %v5249 = vunpack.c.l.b16 %v1825
        %v5250 = vunpack.c.l.b16 %v1826
        %v5251 = vunpack.c.l.b16 %v1827
        %v5252 = vunpack.c.l.b16 %v1828
        %v5253 = vunpack.c.l.b16 %v1829
        %v5254 = vunpack.c.l.b16 %v1830
        %v5255 = vunpack.c.l.b16 %v1831
        %v5256 = vunpack.c.l.b16 %v1832
        %v5257 = vunpack.c.l.b16 %v1833
        %v5258 = vunpack.c.l.b16 %v1834
        %v5259 = vunpack.c.l.b16 %v1835
        %v5260 = vunpack.c.l.b16 %v1836
        %v5261 = vunpack.c.l.b16 %v1837
        %v5262 = vunpack.c.l.b16 %v1838
        %v5263 = vunpack.c.l.b16 %v1839
        %v5264 = vunpack.c.l.b16 %v1840
        %v5265 = vunpack.c.l.b16 %v1841
        %v5266 = vunpack.c.l.b16 %v1842
        %v5267 = vunpack.c.l.b16 %v1843
        %v5268 = vunpack.c.l.b16 %v1844
        %v5269 = vunpack.c.l.b16 %v1845
        %v5270 = vunpack.c.l.b16 %v1846
        %v5271 = vunpack.c.l.b16 %v1847
        %v5272 = vunpack.c.l.b16 %v1848
        %v5273 = vunpack.c.l.b16 %v1849
        %v5274 = vunpack.c.l.b16 %v1850
        %v5275 = vunpack.c.l.b16 %v1851
        %v5276 = vunpack.c.l.b16 %v1852
        %v5277 = vunpack.c.l.b16 %v1853
        %v5278 = vunpack.c.l.b16 %v1854
        %v5279 = vunpack.c.l.b16 %v1855
        %v5280 = vpack.c.b16 %v5249, %v5248
        %v5281 = vpack.c.b16 %v5251, %v5250
        %v5282 = vpack.c.b16 %v5253, %v5252
        %v5283 = vpack.c.b16 %v5255, %v5254
        %v5284 = vpack.c.b16 %v5257, %v5256
        %v5285 = vpack.c.b16 %v5259, %v5258
        %v5286 = vpack.c.b16 %v5261, %v5260
        %v5287 = vpack.c.b16 %v5263, %v5262
        %v5288 = vpack.c.b16 %v5265, %v5264
        %v5289 = vpack.c.b16 %v5267, %v5266
        %v5290 = vpack.c.b16 %v5269, %v5268
        %v5291 = vpack.c.b16 %v5271, %v5270
        %v5292 = vpack.c.b16 %v5273, %v5272
        %v5293 = vpack.c.b16 %v5275, %v5274
        %v5294 = vpack.c.b16 %v5277, %v5276
        %v5295 = vpack.c.b16 %v5279, %v5278
        %v5344 = vunpack.c.l.b16 %v3456
        %v5345 = vunpack.c.l.b16 %v3457
        %v5346 = vunpack.c.l.b16 %v3458
        %v5347 = vunpack.c.l.b16 %v3459
        %v5348 = vunpack.c.l.b16 %v3460
        %v5349 = vunpack.c.l.b16 %v3461
        %v5350 = vunpack.c.l.b16 %v3462
        %v5351 = vunpack.c.l.b16 %v3463
        %v5352 = vunpack.c.l.b16 %v3464
        %v5353 = vunpack.c.l.b16 %v3465
        %v5354 = vunpack.c.l.b16 %v3466
        %v5355 = vunpack.c.l.b16 %v3467
        %v5356 = vunpack.c.l.b16 %v3468
        %v5357 = vunpack.c.l.b16 %v3469
        %v5358 = vunpack.c.l.b16 %v3470
        %v5359 = vunpack.c.l.b16 %v3471
        %v5360 = vunpack.c.l.b16 %v3472
        %v5361 = vunpack.c.l.b16 %v3473
        %v5362 = vunpack.c.l.b16 %v3474
        %v5363 = vunpack.c.l.b16 %v3475
        %v5364 = vunpack.c.l.b16 %v3476
        %v5365 = vunpack.c.l.b16 %v3477
        %v5366 = vunpack.c.l.b16 %v3478
        %v5367 = vunpack.c.l.b16 %v3479
        %v5368 = vunpack.c.l.b16 %v3480
        %v5369 = vunpack.c.l.b16 %v3481
        %v5370 = vunpack.c.l.b16 %v3482
        %v5371 = vunpack.c.l.b16 %v3483
        %v5372 = vunpack.c.l.b16 %v3484
        %v5373 = vunpack.c.l.b16 %v3485
        %v5374 = vunpack.c.l.b16 %v3486
        %v5375 = vunpack.c.l.b16 %v3487
        %v5376 = vpack.c.b16 %v5345, %v5344
        %v5377 = vpack.c.b16 %v5347, %v5346
        %v5378 = vpack.c.b16 %v5349, %v5348
        %v5379 = vpack.c.b16 %v5351, %v5350
        %v5380 = vpack.c.b16 %v5353, %v5352
        %v5381 = vpack.c.b16 %v5355, %v5354
        %v5382 = vpack.c.b16 %v5357, %v5356
        %v5383 = vpack.c.b16 %v5359, %v5358
        %v5384 = vpack.c.b16 %v5361, %v5360
        %v5385 = vpack.c.b16 %v5363, %v5362
        %v5386 = vpack.c.b16 %v5365, %v5364
        %v5387 = vpack.c.b16 %v5367, %v5366
        %v5388 = vpack.c.b16 %v5369, %v5368
        %v5389 = vpack.c.b16 %v5371, %v5370
        %v5390 = vpack.c.b16 %v5373, %v5372
        %v5391 = vpack.c.b16 %v5375, %v5374
        %v5440 = vunpack.c.l.b16 %v5088
        %v5441 = vunpack.c.l.b16 %v5089
        %v5442 = vunpack.c.l.b16 %v5090
        %v5443 = vunpack.c.l.b16 %v5091
        %v5444 = vunpack.c.l.b16 %v5092
        %v5445 = vunpack.c.l.b16 %v5093
        %v5446 = vunpack.c.l.b16 %v5094
        %v5447 = vunpack.c.l.b16 %v5095
        %v5448 = vunpack.c.l.b16 %v5096
        %v5449 = vunpack.c.l.b16 %v5097
        %v5450 = vunpack.c.l.b16 %v5098
        %v5451 = vunpack.c.l.b16 %v5099
        %v5452 = vunpack.c.l.b16 %v5100
        %v5453 = vunpack.c.l.b16 %v5101
        %v5454 = vunpack.c.l.b16 %v5102
        %v5455 = vunpack.c.l.b16 %v5103
        %v5456 = vunpack.c.l.b16 %v5104
        %v5457 = vunpack.c.l.b16 %v5105
        %v5458 = vunpack.c.l.b16 %v5106
        %v5459 = vunpack.c.l.b16 %v5107
        %v5460 = vunpack.c.l.b16 %v5108
        %v5461 = vunpack.c.l.b16 %v5109
        %v5462 = vunpack.c.l.b16 %v5110
        %v5463 = vunpack.c.l.b16 %v5111
        %v5464 = vunpack.c.l.b16 %v5112
        %v5465 = vunpack.c.l.b16 %v5113
        %v5466 = vunpack.c.l.b16 %v5114
        %v5467 = vunpack.c.l.b16 %v5115
        %v5468 = vunpack.c.l.b16 %v5116
        %v5469 = vunpack.c.l.b16 %v5117
        %v5470 = vunpack.c.l.b16 %v5118
        %v5471 = vunpack.c.l.b16 %v5119
        %v5472 = vpack.c.b16 %v5441, %v5440
        %v5473 = vpack.c.b16 %v5443, %v5442
        %v5474 = vpack.c.b16 %v5445, %v5444
        %v5475 = vpack.c.b16 %v5447, %v5446
        %v5476 = vpack.c.b16 %v5449, %v5448
        %v5477 = vpack.c.b16 %v5451, %v5450
        %v5478 = vpack.c.b16 %v5453, %v5452
        %v5479 = vpack.c.b16 %v5455, %v5454
        %v5480 = vpack.c.b16 %v5457, %v5456
        %v5481 = vpack.c.b16 %v5459, %v5458
        %v5482 = vpack.c.b16 %v5461, %v5460
        %v5483 = vpack.c.b16 %v5463, %v5462
        %v5484 = vpack.c.b16 %v5465, %v5464
        %v5485 = vpack.c.b16 %v5467, %v5466
        %v5486 = vpack.c.b16 %v5469, %v5468
        %v5487 = vpack.c.b16 %v5471, %v5470
        %v5504 = vld [vmem:[%s1] sm:$0xf]
        %v5505 = vld [vmem:[%s1 + $0x4] sm:$0xf]
        %v5506 = vld [vmem:[%s1 + $0x8] sm:$0xf]
        %v5507 = vld [vmem:[%s1 + $0xc] sm:$0xf]
        %v5508 = vld [vmem:[%s1 + $0x10] sm:$0xf]
        %v5509 = vld [vmem:[%s1 + $0x14] sm:$0xf]
        %v5510 = vld [vmem:[%s1 + $0x18] sm:$0xf]
        %v5511 = vld [vmem:[%s1 + $0x1c] sm:$0xf]
        %v5512 = vld [vmem:[%s1 + $0x20] sm:$0xf]
        %v5513 = vld [vmem:[%s1 + $0x24] sm:$0xf]
        %v5514 = vld [vmem:[%s1 + $0x28] sm:$0xf]
        %v5515 = vld [vmem:[%s1 + $0x2c] sm:$0xf]
        %v5516 = vld [vmem:[%s1 + $0x30] sm:$0xf]
        %v5517 = vld [vmem:[%s1 + $0x34] sm:$0xf]
        %v5518 = vld [vmem:[%s1 + $0x38] sm:$0xf]
        %v5519 = vld [vmem:[%s1 + $0x3c] sm:$0xf]
        %v5520 = vld [vmem:[%s1 + $0x40] sm:$0xf]
        %v5521 = vld [vmem:[%s1 + $0x44] sm:$0xf]
        %v5522 = vld [vmem:[%s1 + $0x48] sm:$0xf]
        %v5523 = vld [vmem:[%s1 + $0x4c] sm:$0xf]
        %v5524 = vld [vmem:[%s1 + $0x50] sm:$0xf]
        %v5525 = vld [vmem:[%s1 + $0x54] sm:$0xf]
        %v5526 = vld [vmem:[%s1 + $0x58] sm:$0xf]
        %v5527 = vld [vmem:[%s1 + $0x5c] sm:$0xf]
        %v5528 = vld [vmem:[%s1 + $0x60] sm:$0xf]
        %v5529 = vld [vmem:[%s1 + $0x64] sm:$0xf]
        %v5530 = vld [vmem:[%s1 + $0x68] sm:$0xf]
        %v5531 = vld [vmem:[%s1 + $0x6c] sm:$0xf]
        %v5532 = vld [vmem:[%s1 + $0x70] sm:$0xf]
        %v5533 = vld [vmem:[%s1 + $0x74] sm:$0xf]
        %v5534 = vld [vmem:[%s1 + $0x78] sm:$0xf]
        %v5535 = vld [vmem:[%s1 + $0x7c] sm:$0xf]
        %v5536 = vld [vmem:[%s1 + $0x80] sm:$0xf]
        %v5537 = vld [vmem:[%s1 + $0x84] sm:$0xf]
        %v5538 = vld [vmem:[%s1 + $0x88] sm:$0xf]
        %v5539 = vld [vmem:[%s1 + $0x8c] sm:$0xf]
        %v5540 = vld [vmem:[%s1 + $0x90] sm:$0xf]
        %v5541 = vld [vmem:[%s1 + $0x94] sm:$0xf]
        %v5542 = vld [vmem:[%s1 + $0x98] sm:$0xf]
        %v5543 = vld [vmem:[%s1 + $0x9c] sm:$0xf]
        %v5544 = vld [vmem:[%s1 + $0xa0] sm:$0xf]
        %v5545 = vld [vmem:[%s1 + $0xa4] sm:$0xf]
        %v5546 = vld [vmem:[%s1 + $0xa8] sm:$0xf]
        %v5547 = vld [vmem:[%s1 + $0xac] sm:$0xf]
        %v5548 = vld [vmem:[%s1 + $0xb0] sm:$0xf]
        %v5549 = vld [vmem:[%s1 + $0xb4] sm:$0xf]
        %v5550 = vld [vmem:[%s1 + $0xb8] sm:$0xf]
        %v5551 = vld [vmem:[%s1 + $0xbc] sm:$0xf]
        %v5552 = vld [vmem:[%s1 + $0xc0] sm:$0xf]
        %v5553 = vld [vmem:[%s1 + $0xc4] sm:$0xf]
        %v5554 = vld [vmem:[%s1 + $0xc8] sm:$0xf]
        %v5555 = vld [vmem:[%s1 + $0xcc] sm:$0xf]
        %v5556 = vld [vmem:[%s1 + $0xd0] sm:$0xf]
        %v5557 = vld [vmem:[%s1 + $0xd4] sm:$0xf]
        %v5558 = vld [vmem:[%s1 + $0xd8] sm:$0xf]
        %v5559 = vld [vmem:[%s1 + $0xdc] sm:$0xf]
        %v5560 = vld [vmem:[%s1 + $0xe0] sm:$0xf]
        %v5561 = vld [vmem:[%s1 + $0xe4] sm:$0xf]
        %v5562 = vld [vmem:[%s1 + $0xe8] sm:$0xf]
        %v5563 = vld [vmem:[%s1 + $0xec] sm:$0xf]
        %v5564 = vld [vmem:[%s1 + $0xf0] sm:$0xf]
        %v5565 = vld [vmem:[%s1 + $0xf4] sm:$0xf]
        %v5566 = vld [vmem:[%s1 + $0xf8] sm:$0xf]
        %v5567 = vld [vmem:[%s1 + $0xfc] sm:$0xf]
        %v5568 = vld [vmem:[%s2] sm:$0x1]
        %v5570 = vperm.slane %v5568, 0
        %v5636 = vunpack.c.l.b16 %v5504
        %v5637 = vunpack.c.l.b16 %v5505
        %v5638 = vunpack.c.l.b16 %v5506
        %v5639 = vunpack.c.l.b16 %v5507
        %v5640 = vunpack.c.l.b16 %v5508
        %v5641 = vunpack.c.l.b16 %v5509
        %v5642 = vunpack.c.l.b16 %v5510
        %v5643 = vunpack.c.l.b16 %v5511
        %v5644 = vunpack.c.l.b16 %v5512
        %v5645 = vunpack.c.l.b16 %v5513
        %v5646 = vunpack.c.l.b16 %v5514
        %v5647 = vunpack.c.l.b16 %v5515
        %v5648 = vunpack.c.l.b16 %v5516
        %v5649 = vunpack.c.l.b16 %v5517
        %v5650 = vunpack.c.l.b16 %v5518
        %v5651 = vunpack.c.l.b16 %v5519
        %v5652 = vunpack.c.l.b16 %v5520
        %v5653 = vunpack.c.l.b16 %v5521
        %v5654 = vunpack.c.l.b16 %v5522
        %v5655 = vunpack.c.l.b16 %v5523
        %v5656 = vunpack.c.l.b16 %v5524
        %v5657 = vunpack.c.l.b16 %v5525
        %v5658 = vunpack.c.l.b16 %v5526
        %v5659 = vunpack.c.l.b16 %v5527
        %v5660 = vunpack.c.l.b16 %v5528
        %v5661 = vunpack.c.l.b16 %v5529
        %v5662 = vunpack.c.l.b16 %v5530
        %v5663 = vunpack.c.l.b16 %v5531
        %v5664 = vunpack.c.l.b16 %v5532
        %v5665 = vunpack.c.l.b16 %v5533
        %v5666 = vunpack.c.l.b16 %v5534
        %v5667 = vunpack.c.l.b16 %v5535
        %v5668 = vunpack.c.l.b16 %v5536
        %v5669 = vunpack.c.l.b16 %v5537
        %v5670 = vunpack.c.l.b16 %v5538
        %v5671 = vunpack.c.l.b16 %v5539
        %v5672 = vunpack.c.l.b16 %v5540
        %v5673 = vunpack.c.l.b16 %v5541
        %v5674 = vunpack.c.l.b16 %v5542
        %v5675 = vunpack.c.l.b16 %v5543
        %v5676 = vunpack.c.l.b16 %v5544
        %v5677 = vunpack.c.l.b16 %v5545
        %v5678 = vunpack.c.l.b16 %v5546
        %v5679 = vunpack.c.l.b16 %v5547
        %v5680 = vunpack.c.l.b16 %v5548
        %v5681 = vunpack.c.l.b16 %v5549
        %v5682 = vunpack.c.l.b16 %v5550
        %v5683 = vunpack.c.l.b16 %v5551
        %v5684 = vunpack.c.l.b16 %v5552
        %v5685 = vunpack.c.l.b16 %v5553
        %v5686 = vunpack.c.l.b16 %v5554
        %v5687 = vunpack.c.l.b16 %v5555
        %v5688 = vunpack.c.l.b16 %v5556
        %v5689 = vunpack.c.l.b16 %v5557
        %v5690 = vunpack.c.l.b16 %v5558
        %v5691 = vunpack.c.l.b16 %v5559
        %v5692 = vunpack.c.l.b16 %v5560
        %v5693 = vunpack.c.l.b16 %v5561
        %v5694 = vunpack.c.l.b16 %v5562
        %v5695 = vunpack.c.l.b16 %v5563
        %v5696 = vunpack.c.l.b16 %v5564
        %v5697 = vunpack.c.l.b16 %v5565
        %v5698 = vunpack.c.l.b16 %v5566
        %v5699 = vunpack.c.l.b16 %v5567
        %v5700 = vpack.c.b16 %v5637, %v5636
        %v5701 = vpack.c.b16 %v5639, %v5638
        %v5702 = vpack.c.b16 %v5641, %v5640
        %v5703 = vpack.c.b16 %v5643, %v5642
        %v5704 = vpack.c.b16 %v5645, %v5644
        %v5705 = vpack.c.b16 %v5647, %v5646
        %v5706 = vpack.c.b16 %v5649, %v5648
        %v5707 = vpack.c.b16 %v5651, %v5650
        %v5708 = vpack.c.b16 %v5653, %v5652
        %v5709 = vpack.c.b16 %v5655, %v5654
        %v5710 = vpack.c.b16 %v5657, %v5656
        %v5711 = vpack.c.b16 %v5659, %v5658
        %v5712 = vpack.c.b16 %v5661, %v5660
        %v5713 = vpack.c.b16 %v5663, %v5662
        %v5714 = vpack.c.b16 %v5665, %v5664
        %v5715 = vpack.c.b16 %v5667, %v5666
        %v5716 = vpack.c.b16 %v5669, %v5668
        %v5717 = vpack.c.b16 %v5671, %v5670
        %v5718 = vpack.c.b16 %v5673, %v5672
        %v5719 = vpack.c.b16 %v5675, %v5674
        %v5720 = vpack.c.b16 %v5677, %v5676
        %v5721 = vpack.c.b16 %v5679, %v5678
        %v5722 = vpack.c.b16 %v5681, %v5680
        %v5723 = vpack.c.b16 %v5683, %v5682
        %v5724 = vpack.c.b16 %v5685, %v5684
        %v5725 = vpack.c.b16 %v5687, %v5686
        %v5726 = vpack.c.b16 %v5689, %v5688
        %v5727 = vpack.c.b16 %v5691, %v5690
        %v5728 = vpack.c.b16 %v5693, %v5692
        %v5729 = vpack.c.b16 %v5695, %v5694
        %v5730 = vpack.c.b16 %v5697, %v5696
        %v5731 = vpack.c.b16 %v5699, %v5698
        %5764 = vmatpush.bf16.msra.mxu0 %v5707
        %5765 = vmatpush.bf16.msra.mxu0 %v5706
        %5766 = vmatpush.bf16.msra.mxu0 %v5705
        %5767 = vmatpush.bf16.msra.mxu0 %v5704
        %5768 = vmatpush.bf16.msra.mxu0 %v5703
        %5769 = vmatpush.bf16.msra.mxu0 %v5702
        %5770 = vmatpush.bf16.msra.mxu0 %v5701
        %5771 = vmatpush.bf16.msra.mxu0 %v5700
        %5772 = vmatmul.bf16.gmra.mxu0 %v5184
        %v5773 = vpop.f32.mrf.mxu0
        %v5774 = vadd.f32 %v5570, %v5773
        %v5775 = vpop.f32.mrf.mxu0
        %v5776 = vadd.f32 %v5570, %v5775
        %5777 = vmatmul.bf16.gmra.mxu0 %v5185
        %v5778 = vpop.f32.mrf.mxu0
        %v5779 = vadd.f32 %v5570, %v5778
        %v5780 = vpop.f32.mrf.mxu0
        %v5781 = vadd.f32 %v5570, %v5780
        %5782 = vmatmul.bf16.gmra.mxu0 %v5186
        %v5783 = vpop.f32.mrf.mxu0
        %v5784 = vadd.f32 %v5570, %v5783
        %v5785 = vpop.f32.mrf.mxu0
        %v5786 = vadd.f32 %v5570, %v5785
        %5787 = vmatmul.bf16.gmra.mxu0 %v5187
        %v5788 = vpop.f32.mrf.mxu0
        %v5789 = vadd.f32 %v5570, %v5788
        %v5790 = vpop.f32.mrf.mxu0
        %v5791 = vadd.f32 %v5570, %v5790
        %5792 = vmatmul.bf16.gmra.mxu0 %v5188
        %v5793 = vpop.f32.mrf.mxu0
        %v5794 = vadd.f32 %v5570, %v5793
        %v5795 = vpop.f32.mrf.mxu0
        %v5796 = vadd.f32 %v5570, %v5795
        %5797 = vmatmul.bf16.gmra.mxu0 %v5189
        %v5798 = vpop.f32.mrf.mxu0
        %v5799 = vadd.f32 %v5570, %v5798
        %v5800 = vpop.f32.mrf.mxu0
        %v5801 = vadd.f32 %v5570, %v5800
        %5802 = vmatmul.bf16.gmra.mxu0 %v5190
        %v5803 = vpop.f32.mrf.mxu0
        %v5804 = vadd.f32 %v5570, %v5803
        %v5805 = vpop.f32.mrf.mxu0
        %v5806 = vadd.f32 %v5570, %v5805
        %5807 = vmatmul.bf16.gmra.mxu0 %v5191
        %v5808 = vpop.f32.mrf.mxu0
        %v5809 = vadd.f32 %v5570, %v5808
        %v5810 = vpop.f32.mrf.mxu0
        %v5811 = vadd.f32 %v5570, %v5810
        %5812 = vmatmul.bf16.gmra.mxu0 %v5192
        %v5813 = vpop.f32.mrf.mxu0
        %v5814 = vadd.f32 %v5570, %v5813
        %v5815 = vpop.f32.mrf.mxu0
        %v5816 = vadd.f32 %v5570, %v5815
        %5817 = vmatmul.bf16.gmra.mxu0 %v5193
        %v5818 = vpop.f32.mrf.mxu0
        %v5819 = vadd.f32 %v5570, %v5818
        %v5820 = vpop.f32.mrf.mxu0
        %v5821 = vadd.f32 %v5570, %v5820
        %5822 = vmatmul.bf16.gmra.mxu0 %v5194
        %v5823 = vpop.f32.mrf.mxu0
        %v5824 = vadd.f32 %v5570, %v5823
        %v5825 = vpop.f32.mrf.mxu0
        %v5826 = vadd.f32 %v5570, %v5825
        %5827 = vmatmul.bf16.gmra.mxu0 %v5195
        %v5828 = vpop.f32.mrf.mxu0
        %v5829 = vadd.f32 %v5570, %v5828
        %v5830 = vpop.f32.mrf.mxu0
        %v5831 = vadd.f32 %v5570, %v5830
        %5832 = vmatmul.bf16.gmra.mxu0 %v5196
        %v5833 = vpop.f32.mrf.mxu0
        %v5834 = vadd.f32 %v5570, %v5833
        %v5835 = vpop.f32.mrf.mxu0
        %v5836 = vadd.f32 %v5570, %v5835
        %5837 = vmatmul.bf16.gmra.mxu0 %v5197
        %v5838 = vpop.f32.mrf.mxu0
        %v5839 = vadd.f32 %v5570, %v5838
        %v5840 = vpop.f32.mrf.mxu0
        %v5841 = vadd.f32 %v5570, %v5840
        %5842 = vmatmul.bf16.gmra.mxu0 %v5198
        %v5843 = vpop.f32.mrf.mxu0
        %v5844 = vadd.f32 %v5570, %v5843
        %v5845 = vpop.f32.mrf.mxu0
        %v5846 = vadd.f32 %v5570, %v5845
        %5847 = vmatmul.bf16.gmra.mxu0 %v5199
        %v5848 = vpop.f32.mrf.mxu0
        %v5849 = vadd.f32 %v5570, %v5848
        %v5850 = vpop.f32.mrf.mxu0
        %v5851 = vadd.f32 %v5570, %v5850
        %5852 = vdwg.mxu0
        %5853 = vmatpush.bf16.msra.mxu0 %v5715
        %5854 = vmatpush.bf16.msra.mxu0 %v5714
        %5855 = vmatpush.bf16.msra.mxu0 %v5713
        %5856 = vmatpush.bf16.msra.mxu0 %v5712
        %5857 = vmatpush.bf16.msra.mxu0 %v5711
        %5858 = vmatpush.bf16.msra.mxu0 %v5710
        %5859 = vmatpush.bf16.msra.mxu0 %v5709
        %5860 = vmatpush.bf16.msra.mxu0 %v5708
        %5861 = vmatmul.bf16.gmra.mxu0 %v5280
        %v5862 = vpop.f32.mrf.mxu0
        %v5863 = vadd.f32 %v5774, %v5862
        %v5864 = vpop.f32.mrf.mxu0
        %v5865 = vadd.f32 %v5776, %v5864
        %5866 = vmatmul.bf16.gmra.mxu0 %v5281
        %v5867 = vpop.f32.mrf.mxu0
        %v5868 = vadd.f32 %v5779, %v5867
        %v5869 = vpop.f32.mrf.mxu0
        %v5870 = vadd.f32 %v5781, %v5869
        %5871 = vmatmul.bf16.gmra.mxu0 %v5282
        %v5872 = vpop.f32.mrf.mxu0
        %v5873 = vadd.f32 %v5784, %v5872
        %v5874 = vpop.f32.mrf.mxu0
        %v5875 = vadd.f32 %v5786, %v5874
        %5876 = vmatmul.bf16.gmra.mxu0 %v5283
        %v5877 = vpop.f32.mrf.mxu0
        %v5878 = vadd.f32 %v5789, %v5877
        %v5879 = vpop.f32.mrf.mxu0
        %v5880 = vadd.f32 %v5791, %v5879
        %5881 = vmatmul.bf16.gmra.mxu0 %v5284
        %v5882 = vpop.f32.mrf.mxu0
        %v5883 = vadd.f32 %v5794, %v5882
        %v5884 = vpop.f32.mrf.mxu0
        %v5885 = vadd.f32 %v5796, %v5884
        %5886 = vmatmul.bf16.gmra.mxu0 %v5285
        %v5887 = vpop.f32.mrf.mxu0
        %v5888 = vadd.f32 %v5799, %v5887
        %v5889 = vpop.f32.mrf.mxu0
        %v5890 = vadd.f32 %v5801, %v5889
        %5891 = vmatmul.bf16.gmra.mxu0 %v5286
        %v5892 = vpop.f32.mrf.mxu0
        %v5893 = vadd.f32 %v5804, %v5892
        %v5894 = vpop.f32.mrf.mxu0
        %v5895 = vadd.f32 %v5806, %v5894
        %5896 = vmatmul.bf16.gmra.mxu0 %v5287
        %v5897 = vpop.f32.mrf.mxu0
        %v5898 = vadd.f32 %v5809, %v5897
        %v5899 = vpop.f32.mrf.mxu0
        %v5900 = vadd.f32 %v5811, %v5899
        %5901 = vmatmul.bf16.gmra.mxu0 %v5288
        %v5902 = vpop.f32.mrf.mxu0
        %v5903 = vadd.f32 %v5814, %v5902
        %v5904 = vpop.f32.mrf.mxu0
        %v5905 = vadd.f32 %v5816, %v5904
        %5906 = vmatmul.bf16.gmra.mxu0 %v5289
        %v5907 = vpop.f32.mrf.mxu0
        %v5908 = vadd.f32 %v5819, %v5907
        %v5909 = vpop.f32.mrf.mxu0
        %v5910 = vadd.f32 %v5821, %v5909
        %5911 = vmatmul.bf16.gmra.mxu0 %v5290
        %v5912 = vpop.f32.mrf.mxu0
        %v5913 = vadd.f32 %v5824, %v5912
        %v5914 = vpop.f32.mrf.mxu0
        %v5915 = vadd.f32 %v5826, %v5914
        %5916 = vmatmul.bf16.gmra.mxu0 %v5291
        %v5917 = vpop.f32.mrf.mxu0
        %v5918 = vadd.f32 %v5829, %v5917
        %v5919 = vpop.f32.mrf.mxu0
        %v5920 = vadd.f32 %v5831, %v5919
        %5921 = vmatmul.bf16.gmra.mxu0 %v5292
        %v5922 = vpop.f32.mrf.mxu0
        %v5923 = vadd.f32 %v5834, %v5922
        %v5924 = vpop.f32.mrf.mxu0
        %v5925 = vadd.f32 %v5836, %v5924
        %5926 = vmatmul.bf16.gmra.mxu0 %v5293
        %v5927 = vpop.f32.mrf.mxu0
        %v5928 = vadd.f32 %v5839, %v5927
        %v5929 = vpop.f32.mrf.mxu0
        %v5930 = vadd.f32 %v5841, %v5929
        %5931 = vmatmul.bf16.gmra.mxu0 %v5294
        %v5932 = vpop.f32.mrf.mxu0
        %v5933 = vadd.f32 %v5844, %v5932
        %v5934 = vpop.f32.mrf.mxu0
        %v5935 = vadd.f32 %v5846, %v5934
        %5936 = vmatmul.bf16.gmra.mxu0 %v5295
        %v5937 = vpop.f32.mrf.mxu0
        %v5938 = vadd.f32 %v5849, %v5937
        %v5939 = vpop.f32.mrf.mxu0
        %v5940 = vadd.f32 %v5851, %v5939
        %5941 = vdwg.mxu0
        %5942 = vmatpush.bf16.msra.mxu0 %v5723
        %5943 = vmatpush.bf16.msra.mxu0 %v5722
        %5944 = vmatpush.bf16.msra.mxu0 %v5721
        %5945 = vmatpush.bf16.msra.mxu0 %v5720
        %5946 = vmatpush.bf16.msra.mxu0 %v5719
        %5947 = vmatpush.bf16.msra.mxu0 %v5718
        %5948 = vmatpush.bf16.msra.mxu0 %v5717
        %5949 = vmatpush.bf16.msra.mxu0 %v5716
        %5950 = vmatmul.bf16.gmra.mxu0 %v5376
        %v5951 = vpop.f32.mrf.mxu0
        %v5952 = vadd.f32 %v5863, %v5951
        %v5953 = vpop.f32.mrf.mxu0
        %v5954 = vadd.f32 %v5865, %v5953
        %5955 = vmatmul.bf16.gmra.mxu0 %v5377
        %v5956 = vpop.f32.mrf.mxu0
        %v5957 = vadd.f32 %v5868, %v5956
        %v5958 = vpop.f32.mrf.mxu0
        %v5959 = vadd.f32 %v5870, %v5958
        %5960 = vmatmul.bf16.gmra.mxu0 %v5378
        %v5961 = vpop.f32.mrf.mxu0
        %v5962 = vadd.f32 %v5873, %v5961
        %v5963 = vpop.f32.mrf.mxu0
        %v5964 = vadd.f32 %v5875, %v5963
        %5965 = vmatmul.bf16.gmra.mxu0 %v5379
        %v5966 = vpop.f32.mrf.mxu0
        %v5967 = vadd.f32 %v5878, %v5966
        %v5968 = vpop.f32.mrf.mxu0
        %v5969 = vadd.f32 %v5880, %v5968
        %5970 = vmatmul.bf16.gmra.mxu0 %v5380
        %v5971 = vpop.f32.mrf.mxu0
        %v5972 = vadd.f32 %v5883, %v5971
        %v5973 = vpop.f32.mrf.mxu0
        %v5974 = vadd.f32 %v5885, %v5973
        %5975 = vmatmul.bf16.gmra.mxu0 %v5381
        %v5976 = vpop.f32.mrf.mxu0
        %v5977 = vadd.f32 %v5888, %v5976
        %v5978 = vpop.f32.mrf.mxu0
        %v5979 = vadd.f32 %v5890, %v5978
        %5980 = vmatmul.bf16.gmra.mxu0 %v5382
        %v5981 = vpop.f32.mrf.mxu0
        %v5982 = vadd.f32 %v5893, %v5981
        %v5983 = vpop.f32.mrf.mxu0
        %v5984 = vadd.f32 %v5895, %v5983
        %5985 = vmatmul.bf16.gmra.mxu0 %v5383
        %v5986 = vpop.f32.mrf.mxu0
        %v5987 = vadd.f32 %v5898, %v5986
        %v5988 = vpop.f32.mrf.mxu0
        %v5989 = vadd.f32 %v5900, %v5988
        %5990 = vmatmul.bf16.gmra.mxu0 %v5384
        %v5991 = vpop.f32.mrf.mxu0
        %v5992 = vadd.f32 %v5903, %v5991
        %v5993 = vpop.f32.mrf.mxu0
        %v5994 = vadd.f32 %v5905, %v5993
        %5995 = vmatmul.bf16.gmra.mxu0 %v5385
        %v5996 = vpop.f32.mrf.mxu0
        %v5997 = vadd.f32 %v5908, %v5996
        %v5998 = vpop.f32.mrf.mxu0
        %v5999 = vadd.f32 %v5910, %v5998
        %6000 = vmatmul.bf16.gmra.mxu0 %v5386
        %v6001 = vpop.f32.mrf.mxu0
        %v6002 = vadd.f32 %v5913, %v6001
        %v6003 = vpop.f32.mrf.mxu0
        %v6004 = vadd.f32 %v5915, %v6003
        %6005 = vmatmul.bf16.gmra.mxu0 %v5387
        %v6006 = vpop.f32.mrf.mxu0
        %v6007 = vadd.f32 %v5918, %v6006
        %v6008 = vpop.f32.mrf.mxu0
        %v6009 = vadd.f32 %v5920, %v6008
        %6010 = vmatmul.bf16.gmra.mxu0 %v5388
        %v6011 = vpop.f32.mrf.mxu0
        %v6012 = vadd.f32 %v5923, %v6011
        %v6013 = vpop.f32.mrf.mxu0
        %v6014 = vadd.f32 %v5925, %v6013
        %6015 = vmatmul.bf16.gmra.mxu0 %v5389
        %v6016 = vpop.f32.mrf.mxu0
        %v6017 = vadd.f32 %v5928, %v6016
        %v6018 = vpop.f32.mrf.mxu0
        %v6019 = vadd.f32 %v5930, %v6018
        %6020 = vmatmul.bf16.gmra.mxu0 %v5390
        %v6021 = vpop.f32.mrf.mxu0
        %v6022 = vadd.f32 %v5933, %v6021
        %v6023 = vpop.f32.mrf.mxu0
        %v6024 = vadd.f32 %v5935, %v6023
        %6025 = vmatmul.bf16.gmra.mxu0 %v5391
        %v6026 = vpop.f32.mrf.mxu0
        %v6027 = vadd.f32 %v5938, %v6026
        %v6028 = vpop.f32.mrf.mxu0
        %v6029 = vadd.f32 %v5940, %v6028
        %6030 = vdwg.mxu0
        %6031 = vmatpush.bf16.msra.mxu0 %v5731
        %6032 = vmatpush.bf16.msra.mxu0 %v5730
        %6033 = vmatpush.bf16.msra.mxu0 %v5729
        %6034 = vmatpush.bf16.msra.mxu0 %v5728
        %6035 = vmatpush.bf16.msra.mxu0 %v5727
        %6036 = vmatpush.bf16.msra.mxu0 %v5726
        %6037 = vmatpush.bf16.msra.mxu0 %v5725
        %6038 = vmatpush.bf16.msra.mxu0 %v5724
        %6039 = vmatmul.bf16.gmra.mxu0 %v5472
        %v6040 = vpop.f32.mrf.mxu0
        %v6041 = vadd.f32 %v5952, %v6040
        %v6042 = vpop.f32.mrf.mxu0
        %v6043 = vadd.f32 %v5954, %v6042
        %6044 = vmatmul.bf16.gmra.mxu0 %v5473
        %v6045 = vpop.f32.mrf.mxu0
        %v6046 = vadd.f32 %v5957, %v6045
        %v6047 = vpop.f32.mrf.mxu0
        %v6048 = vadd.f32 %v5959, %v6047
        %6049 = vmatmul.bf16.gmra.mxu0 %v5474
        %v6050 = vpop.f32.mrf.mxu0
        %v6051 = vadd.f32 %v5962, %v6050
        %v6052 = vpop.f32.mrf.mxu0
        %v6053 = vadd.f32 %v5964, %v6052
        %6054 = vmatmul.bf16.gmra.mxu0 %v5475
        %v6055 = vpop.f32.mrf.mxu0
        %v6056 = vadd.f32 %v5967, %v6055
        %v6057 = vpop.f32.mrf.mxu0
        %v6058 = vadd.f32 %v5969, %v6057
        %6059 = vmatmul.bf16.gmra.mxu0 %v5476
        %v6060 = vpop.f32.mrf.mxu0
        %v6061 = vadd.f32 %v5972, %v6060
        %v6062 = vpop.f32.mrf.mxu0
        %v6063 = vadd.f32 %v5974, %v6062
        %6064 = vmatmul.bf16.gmra.mxu0 %v5477
        %v6065 = vpop.f32.mrf.mxu0
        %v6066 = vadd.f32 %v5977, %v6065
        %v6067 = vpop.f32.mrf.mxu0
        %v6068 = vadd.f32 %v5979, %v6067
        %6069 = vmatmul.bf16.gmra.mxu0 %v5478
        %v6070 = vpop.f32.mrf.mxu0
        %v6071 = vadd.f32 %v5982, %v6070
        %v6072 = vpop.f32.mrf.mxu0
        %v6073 = vadd.f32 %v5984, %v6072
        %6074 = vmatmul.bf16.gmra.mxu0 %v5479
        %v6075 = vpop.f32.mrf.mxu0
        %v6076 = vadd.f32 %v5987, %v6075
        %v6077 = vpop.f32.mrf.mxu0
        %v6078 = vadd.f32 %v5989, %v6077
        %6079 = vmatmul.bf16.gmra.mxu0 %v5480
        %v6080 = vpop.f32.mrf.mxu0
        %v6081 = vadd.f32 %v5992, %v6080
        %v6082 = vpop.f32.mrf.mxu0
        %v6083 = vadd.f32 %v5994, %v6082
        %6084 = vmatmul.bf16.gmra.mxu0 %v5481
        %v6085 = vpop.f32.mrf.mxu0
        %v6086 = vadd.f32 %v5997, %v6085
        %v6087 = vpop.f32.mrf.mxu0
        %v6088 = vadd.f32 %v5999, %v6087
        %6089 = vmatmul.bf16.gmra.mxu0 %v5482
        %v6090 = vpop.f32.mrf.mxu0
        %v6091 = vadd.f32 %v6002, %v6090
        %v6092 = vpop.f32.mrf.mxu0
        %v6093 = vadd.f32 %v6004, %v6092
        %6094 = vmatmul.bf16.gmra.mxu0 %v5483
        %v6095 = vpop.f32.mrf.mxu0
        %v6096 = vadd.f32 %v6007, %v6095
        %v6097 = vpop.f32.mrf.mxu0
        %v6098 = vadd.f32 %v6009, %v6097
        %6099 = vmatmul.bf16.gmra.mxu0 %v5484
        %v6100 = vpop.f32.mrf.mxu0
        %v6101 = vadd.f32 %v6012, %v6100
        %v6102 = vpop.f32.mrf.mxu0
        %v6103 = vadd.f32 %v6014, %v6102
        %6104 = vmatmul.bf16.gmra.mxu0 %v5485
        %v6105 = vpop.f32.mrf.mxu0
        %v6106 = vadd.f32 %v6017, %v6105
        %v6107 = vpop.f32.mrf.mxu0
        %v6108 = vadd.f32 %v6019, %v6107
        %6109 = vmatmul.bf16.gmra.mxu0 %v5486
        %v6110 = vpop.f32.mrf.mxu0
        %v6111 = vadd.f32 %v6022, %v6110
        %v6112 = vpop.f32.mrf.mxu0
        %v6113 = vadd.f32 %v6024, %v6112
        %6114 = vmatmul.bf16.gmra.mxu0 %v5487
        %v6115 = vpop.f32.mrf.mxu0
        %v6116 = vadd.f32 %v6027, %v6115
        %v6117 = vpop.f32.mrf.mxu0
        %v6118 = vadd.f32 %v6029, %v6117
        %6119 = vdwg.mxu0
        %6120 = vst [vmem:[%s163] sm:$0xff] %v6041
        %6121 = vst [vmem:[%s163 + $0x8] sm:$0xff] %v6043
        %6122 = vst [vmem:[%s163 + $0x10] sm:$0xff] %v6046
        %6123 = vst [vmem:[%s163 + $0x18] sm:$0xff] %v6048
        %6124 = vst [vmem:[%s163 + $0x20] sm:$0xff] %v6051
        %6125 = vst [vmem:[%s163 + $0x28] sm:$0xff] %v6053
        %6126 = vst [vmem:[%s163 + $0x30] sm:$0xff] %v6056
        %6127 = vst [vmem:[%s163 + $0x38] sm:$0xff] %v6058
        %6128 = vst [vmem:[%s163 + $0x40] sm:$0xff] %v6061
        %6129 = vst [vmem:[%s163 + $0x48] sm:$0xff] %v6063
        %6130 = vst [vmem:[%s163 + $0x50] sm:$0xff] %v6066
        %6131 = vst [vmem:[%s163 + $0x58] sm:$0xff] %v6068
        %6132 = vst [vmem:[%s163 + $0x60] sm:$0xff] %v6071
        %6133 = vst [vmem:[%s163 + $0x68] sm:$0xff] %v6073
        %6134 = vst [vmem:[%s163 + $0x70] sm:$0xff] %v6076
        %6135 = vst [vmem:[%s163 + $0x78] sm:$0xff] %v6078
        %6136 = vst [vmem:[%s163 + $0x80] sm:$0xff] %v6081
        %6137 = vst [vmem:[%s163 + $0x88] sm:$0xff] %v6083
        %6138 = vst [vmem:[%s163 + $0x90] sm:$0xff] %v6086
        %6139 = vst [vmem:[%s163 + $0x98] sm:$0xff] %v6088
        %6140 = vst [vmem:[%s163 + $0xa0] sm:$0xff] %v6091
        %6141 = vst [vmem:[%s163 + $0xa8] sm:$0xff] %v6093
        %6142 = vst [vmem:[%s163 + $0xb0] sm:$0xff] %v6096
        %6143 = vst [vmem:[%s163 + $0xb8] sm:$0xff] %v6098
        %6144 = vst [vmem:[%s163 + $0xc0] sm:$0xff] %v6101
        %6145 = vst [vmem:[%s163 + $0xc8] sm:$0xff] %v6103
        %6146 = vst [vmem:[%s163 + $0xd0] sm:$0xff] %v6106
        %6147 = vst [vmem:[%s163 + $0xd8] sm:$0xff] %v6108
        %6148 = vst [vmem:[%s163 + $0xe0] sm:$0xff] %v6111
        %6149 = vst [vmem:[%s163 + $0xe8] sm:$0xff] %v6113
        %6150 = vst [vmem:[%s163 + $0xf0] sm:$0xff] %v6116
        %6151 = vst [vmem:[%s163 + $0xf8] sm:$0xff] %v6118
        %s6152 = sand.u32 %s93, 1
        %s6153 = scalar_lea.sflag [#allocation4], %s6152
        %s6154 = sand.u32 %s93, 1
        %s6155 = smul.addr %s6154, 256
        %s6156 = scalar_lea.vmem [#allocation3], %s6155
        // Predicated region
        $region33: #{sppf_forward.1} parent=31 // pred_check
          %p6157 = pneg %p103
        $region34: #{sppf_forward.1} parent=31 // pred_check_branch
          %6159 = sbr.rel (%p6157) target = $region36
        $region35: #{sppf_forward.1} parent=31 // pred_region
          %6161 = vsyncadd %s6153, 0
          %s6162 = smul.addr %s17, 32
          %s6163 = smul.addr %s6162, 8
          %s6164 = scalar_lea.hbm %s3, %s6163
          %s6165 = sshll.u32 %s6156, 4
          %s6166 = int_to_ptr.vmem [resolvable:$true] %s6165
          %s6167 = sshll.u32 %s6164, 4
          %s6168 = int_to_ptr.hbm [resolvable:$true] %s6167
          %6173 = dma.vmem_to_hbm [thread:$0]  %s6166, 4096, %s6168, %s6153, 128, 128, 8
        $region36: #{sppf_forward.1} parent=31 // pred_fallthru
          _
      $region32: #{sppf_forward.1} parent=5 // pred_fallthru
        _
      %p6174 = scmp.le.s32.totalorder 2, %s12
      // Predicated region
      $region37: #{sppf_forward.1} parent=5 // pred_check
        %p6175 = pneg %p6174
      $region38: #{sppf_forward.1} parent=5 // pred_check_branch
        %6177 = sbr.rel (%p6175) target = $region40
      $region39: #{sppf_forward.1} parent=5 // pred_region
        %s6178 = ssub.s32 %s12, 2
        // Predicated region
        $region41: #{sppf_forward.1} parent=39 // pred_check
          %p6179 = pneg %p109
        $region42: #{sppf_forward.1} parent=39 // pred_check_branch
          %6181 = sbr.rel (%p6179) target = $region44
        $region43: #{sppf_forward.1} parent=39 // pred_region
          %s6182 = sand.u32 %s94, 1
          %s6183 = scalar_lea.sflag [#allocation4], %s6182
          %s6184 = sand.u32 %s94, 1
          %s6185 = smul.addr %s6184, 256
          %s6186 = scalar_lea.vmem [#allocation3], %s6185
          %6188 = dma.done %s6183, 4096
        $region44: #{sppf_forward.1} parent=39 // pred_fallthru
          _
      $region40: #{sppf_forward.1} parent=5 // pred_fallthru
        _
    $region6: #{sppf_forward.1} parent=1 // loop_footer
      %s16 = sadd.s32 1, %s12
    $region7: #{sppf_forward.1} parent=1 // loop_footer_branch
      %11 = sbr.rel target = $region3
    $region8: #{sppf_forward.1} parent=1 // loop_exit
      _
    %6189 = vsyncpa [#allocation4], 1
    %s6190 = scalar_lea.sflag [#allocation4], 1
    %6191 = vsyncpa %s6190, 1

</llo_original>
